<compile_context>
chip_gen: v7x
topology: tpu7x:2x2x1
jax: 0.10.0
libtpu: 0.0.40
codegen_flags: <defaults>
</compile_context>

<pallas_src>
import functools

import jax
import jax.numpy as jnp
from jax import lax
from jax.experimental import pallas as pl
from jax.experimental.pallas import tpu as pltpu


LANE = 128      # pad Cout to a multiple of this -> lane-dense output stores
SUBLANE = 8     # pad the network-input channel count to a multiple of this


def _round_up(x, m):
    return (x + m - 1) // m * m


# --------------------------------------------------------------------------
# Fused per-block Pallas kernel: [maxpool] -> (conv3x3 + folded BN [+ReLU]) x L
# --------------------------------------------------------------------------
def _vgg_block_kernel(x_ref, *rest, num_layers, H, W, do_pool, relu,
                      cin_list, cout_pad):
    """One VGG block for one batch element.

    x_ref   : (1, H_in, W_in, cin_list[0]) bf16  (H_in=2H, W_in=2W if pooling)
    rest    : w_0, b_0, ..., w_{L-1}, b_{L-1}, o_ref, xpad_scratch
              w_l : (9 * cin_list[l], cout_pad) bf16  BN-folded, tap-major
              b_l : (1, cout_pad) f32                 BN-folded bias
    o_ref   : (1, H, W, cout_pad) bf16
    scratch : (H + 2, W + 2, max(cin_list)) bf16      zero-bordered halo buffer
    """
    w_refs = rest[0:2 * num_layers:2]
    b_refs = rest[1:2 * num_layers:2]
    o_ref = rest[2 * num_layers]
    xpad_ref = rest[2 * num_layers + 1]

    cur = x_ref[0]                                     # (H_in, W_in, Cin) bf16
    if do_pool:
        # register-resident 2x2/stride-2 max pool via reshape + max
        c0 = cin_list[0]
        cur = jnp.max(cur.reshape(H, 2, 2 * W, c0), axis=1)   # row pairs
        cur = jnp.max(cur.reshape(H, W, 2, c0), axis=2)       # column pairs

    # In-kernel halo padding: zero the scratch once; every layer only rewrites
    # the interior, so the 1-pixel zero border is preserved for all layers.
    xpad_ref[...] = jnp.zeros_like(xpad_ref)

    for l in range(num_layers):
        cin = cin_list[l]
        xpad_ref[1:H + 1, 1:W + 1, 0:cin] = cur

        # im2col slab: a single K = 9*Cin matmul instead of nine K = Cin dots.
        taps = [xpad_ref[dy:dy + H, dx:dx + W, 0:cin]
                for dy in range(3) for dx in range(3)]
        slab = jnp.concatenate(taps, axis=-1).reshape(H * W, 9 * cin)

        acc = jnp.dot(slab, w_refs[l][...],
                      preferred_element_type=jnp.float32)     # f32 accumulate
        acc = acc + b_refs[l][...]                             # one f32 bias add
        if relu:
            acc = jnp.maximum(acc, 0.0)
        cur = acc.astype(jnp.bfloat16).reshape(H, W, cout_pad)

    o_ref[0] = cur                     # lane-dense store (cout_pad % 128 == 0)


# --------------------------------------------------------------------------
# Wrappers (pallas_call plumbing + parameter packing)
# --------------------------------------------------------------------------
def _vgg_block(x, prepped, *, do_pool, relu):
    """x: (N, H_in, W_in, Cin_pad) bf16 -> (N, H_out, W_out, Cout_pad) bf16."""
    N, H_in, W_in, cin_pad = x.shape
    H = H_in // 2 if do_pool else H_in
    W = W_in // 2 if do_pool else W_in
    num_layers = len(prepped)
    cin_list = tuple(w.shape[0] // 9 for (w, _) in prepped)
    cout_pad = prepped[-1][0].shape[1]
    assert cin_list[0] == cin_pad, (cin_list, cin_pad)

    kernel = functools.partial(
        _vgg_block_kernel, num_layers=num_layers, H=H, W=W, do_pool=do_pool,
        relu=relu, cin_list=cin_list, cout_pad=cout_pad)

    in_specs = [pl.BlockSpec((1, H_in, W_in, cin_pad), lambda n: (n, 0, 0, 0))]
    args = [x]
    for (w, b) in prepped:
        in_specs.append(pl.BlockSpec(w.shape, lambda n: (0, 0)))
        in_specs.append(pl.BlockSpec(b.shape, lambda n: (0, 0)))
        args += [w, b]

    return pl.pallas_call(
        kernel,
        out_shape=jax.ShapeDtypeStruct((N, H, W, cout_pad), jnp.bfloat16),
        grid=(N,),
        in_specs=in_specs,
        out_specs=pl.BlockSpec((1, H, W, cout_pad), lambda n: (n, 0, 0, 0)),
        scratch_shapes=[
            pltpu.VMEM((H + 2, W + 2, max(cin_list)), jnp.bfloat16)],
        compiler_params=pltpu.CompilerParams(
            dimension_semantics=("parallel",),
            # explicit scoped-VMEM budget (v5e default is only 16 MiB)
            vmem_limit_bytes=32 * 1024 * 1024),
    )(*args)


def _prep_block_params(layers, cin_pad_first):
    """Pad channels and fold each layer's weights to matmul (MXU) form.

    Returns ([(w_col (9*Cin_pad, Cout_pad) bf16, b (1, Cout_pad) f32)],
             Cout, Cout_pad).
    """
    cout = layers[0][0].shape[-1]
    cout_pad = _round_up(cout, LANE)
    prepped = []
    for l, (w_eff, b_eff) in enumerate(layers):
        cin = w_eff.shape[2]
        cin_pad = cin_pad_first if l == 0 else cout_pad
        w = jnp.zeros((3, 3, cin_pad, cout_pad), jnp.float32)
        w = w.at[:, :, :cin, :cout].set(w_eff)
        w_col = w.reshape(9 * cin_pad, cout_pad).astype(jnp.bfloat16)
        b = jnp.zeros((1, cout_pad), jnp.float32).at[0, :cout].set(b_eff)
        prepped.append((w_col, b))
    return prepped, cout, cout_pad


def vgg_encoder(x_nchw, blocks):
    """Forward pass.  Input NCHW f32 -> (conv1, conv2, conv3, conv4) NCHW f32."""
    N, C, H, W = x_nchw.shape
    cin_pad = _round_up(C, SUBLANE)
    cur = jnp.transpose(x_nchw, (0, 2, 3, 1)).astype(jnp.float32)   # -> NHWC
    cur = jnp.pad(cur, ((0, 0), (0, 0), (0, 0), (0, cin_pad - C)))
    cur = cur.astype(jnp.bfloat16)

    outs = []
    for bi, layers in enumerate(blocks):
        prepped, cout, cout_pad = _prep_block_params(layers, cin_pad)
        cur = _vgg_block(cur, prepped, do_pool=(bi > 0), relu=(bi == 0))
        outs.append(
            jnp.transpose(cur[..., :cout].astype(jnp.float32), (0, 3, 1, 2)))
        cin_pad = cout_pad
    return tuple(outs)


# --------------------------------------------------------------------------
# Deterministic parameter construction (conv + folded eval-mode BatchNorm)
# --------------------------------------------------------------------------
def init_vgg_params(key, in_channel, conv_channels, repeats, eps=1e-5):
    blocks = []
    cin = in_channel
    for bi in range(4):
        cout = conv_channels[bi]
        layers = []
        for r in range(repeats[bi]):
            key, k1, k2, k3, k4, k5, k6 = jax.random.split(key, 7)
            cin_l = cin if r == 0 else cout
            w = 0.1 * jax.random.normal(k1, (3, 3, cin_l, cout), jnp.float32)
            b = 0.1 * jax.random.normal(k2, (cout,), jnp.float32)
            gamma = 1.0 + 0.1 * jax.random.normal(k3, (cout,), jnp.float32)
            beta = 0.1 * jax.random.normal(k4, (cout,), jnp.float32)
            mean = 0.1 * jax.random.normal(k5, (cout,), jnp.float32)
            var = jax.random.uniform(k6, (cout,), jnp.float32, 0.5, 1.5)
            s = gamma / jnp.sqrt(var + eps)
            w_eff = w * s                      # fold BN scale into conv weights
            b_eff = (b - mean) * s + beta      # fold BN shift into conv bias
            layers.append((w_eff, b_eff))
        cin = cout
        blocks.append(layers)
    return blocks


# --------------------------------------------------------------------------
# Pure-JAX references (for numerical validation of the Pallas kernels)
# --------------------------------------------------------------------------
def _ref_pool(x):
    return lax.reduce_window(x, jnp.array(-jnp.inf, x.dtype), lax.max,
                             (1, 2, 2, 1), (1, 2, 2, 1), "VALID")


def vgg_encoder_ref_bf16(x_nchw, blocks):
    """Precision-matched reference: bf16 weights/activations, f32 accumulate."""
    cur = jnp.transpose(x_nchw, (0, 2, 3, 1)).astype(jnp.float32)
    cur = cur.astype(jnp.bfloat16)
    outs = []
    for bi, layers in enumerate(blocks):
        if bi > 0:
            cur = _ref_pool(cur)
        for (w_eff, b_eff) in layers:
            y = lax.conv_general_dilated(
                cur, w_eff.astype(jnp.bfloat16), (1, 1), "SAME",
                dimension_numbers=("NHWC", "HWIO", "NHWC"),
                preferred_element_type=jnp.float32)
            y = y + b_eff
            if bi == 0:
                y = jnp.maximum(y, 0.0)
            cur = y.astype(jnp.bfloat16)
        outs.append(jnp.transpose(cur.astype(jnp.float32), (0, 3, 1, 2)))
    return tuple(outs)


def vgg_encoder_ref_f32(x_nchw, blocks):
    """Full-f32 reference (exact module semantics, no bf16 policy)."""
    cur = jnp.transpose(x_nchw, (0, 2, 3, 1)).astype(jnp.float32)
    outs = []
    for bi, layers in enumerate(blocks):
        if bi > 0:
            cur = _ref_pool(cur)
        for (w_eff, b_eff) in layers:
            y = lax.conv_general_dilated(
                cur, w_eff, (1, 1), "SAME",
                dimension_numbers=("NHWC", "HWIO", "NHWC"))
            y = y + b_eff
            if bi == 0:
                y = jnp.maximum(y, 0.0)
            cur = y
        outs.append(jnp.transpose(cur, (0, 3, 1, 2)))
    return tuple(outs)


# --------------------------------------------------------------------------
if __name__ == "__main__":
    key = jax.random.PRNGKey(0)
    kx, kp = jax.random.split(key)

    # Small shapes consistent with the module
    N, in_channel, H, W = 2, 3, 16, 16
    conv_channels = (8, 16, 32, 64)
    repeats = (2, 2, 2, 2)

    x = jax.random.normal(kx, (N, in_channel, H, W), jnp.float32)   # NCHW
    blocks = init_vgg_params(kp, in_channel, conv_channels, repeats)

    outs = jax.block_until_ready(vgg_encoder(x, blocks))

    # Expected shapes: conv1 (2,8,16,16), conv2 (2,16,8,8),
    #                  conv3 (2,32,4,4),  conv4 (2,64,2,2)
    expected = [(N, conv_channels[0], 16, 16),
                (N, conv_channels[1], 8, 8),
                (N, conv_channels[2], 4, 4),
                (N, conv_channels[3], 2, 2)]
    for o, e in zip(outs, expected):
        assert o.shape == e, (o.shape, e)
        assert o.dtype == jnp.float32, o.dtype

    # Primary check: precision-matched reference (bf16 weights/activations,
    # f32 accumulation) -> differences are only dot accumulation order.
    refs = jax.block_until_ready(vgg_encoder_ref_bf16(x, blocks))
    for i, (o, r) in enumerate(zip(outs, refs)):
        err = float(jnp.max(jnp.abs(o - r)))
        assert jnp.allclose(o, r, atol=5e-2, rtol=5e-2), (i, err)

    # Loose sanity check against the exact f32 module semantics (bounds the
    # drift introduced by the bf16 compute policy through 8 conv layers).
    refs32 = jax.block_until_ready(vgg_encoder_ref_f32(x, blocks))
    for i, (o, r) in enumerate(zip(outs, refs32)):
        err = float(jnp.max(jnp.abs(o - r)))
        scale = float(jnp.max(jnp.abs(r)))
        assert err <= 5e-2 * scale + 5e-2, (i, err, scale)

    print("KERNEL_OK")
</pallas_src>

<mosaic_0001>
module attributes {stable_mosaic.version = 11 : i64} {
  func.func @_vgg_block_kernel(%arg0: i32, %arg1: memref<1x16x16x8xbf16, #tpu.memory_space<vmem>>, %arg2: memref<72x128xbf16, #tpu.memory_space<vmem>>, %arg3: memref<1x128xf32, #tpu.memory_space<vmem>>, %arg4: memref<1152x128xbf16, #tpu.memory_space<vmem>>, %arg5: memref<1x128xf32, #tpu.memory_space<vmem>>, %arg6: memref<1x16x16x128xbf16, #tpu.memory_space<vmem>>, %arg7: memref<18x18x128xbf16, #tpu.memory_space<vmem>>) attributes {dimension_semantics = [#tpu.dimension_semantics<parallel>], iteration_bounds = array<i64: 2>, scalar_prefetch = 0 : i64, scratch_operands = 1 : i64, tpu.core_type = #tpu.core_type<tc>, window_params = [{transform_indices = @transform_0, window_bounds = array<i64: 1, 16, 16, 8>}, {pipeline_mode = #tpu.pipeline_mode<synchronous>, transform_indices = @transform_1, window_bounds = array<i64: 72, 128>}, {pipeline_mode = #tpu.pipeline_mode<synchronous>, transform_indices = @transform_2, window_bounds = array<i64: 1, 128>}, {pipeline_mode = #tpu.pipeline_mode<synchronous>, transform_indices = @transform_3, window_bounds = array<i64: 1152, 128>}, {pipeline_mode = #tpu.pipeline_mode<synchronous>, transform_indices = @transform_4, window_bounds = array<i64: 1, 128>}, {transform_indices = @transform_5, window_bounds = array<i64: 1, 16, 16, 128>}]} {
    %c0 = arith.constant 0 : index
    %c0_0 = arith.constant 0 : index
    %c0_1 = arith.constant 0 : index
    %c0_2 = arith.constant 0 : index
    %0 = vector.load %arg1[%c0, %c0_0, %c0_1, %c0_2] : memref<1x16x16x8xbf16, #tpu.memory_space<vmem>>, vector<1x16x16x8xbf16>
    %1 = vector.shape_cast %0 : vector<1x16x16x8xbf16> to vector<16x16x8xbf16>
    %cst = arith.constant 0.000000e+00 : bf16
    %2 = vector.broadcast %cst : bf16 to vector<18x18x128xbf16>
    %c0_3 = arith.constant 0 : index
    %c0_4 = arith.constant 0 : index
    %c0_5 = arith.constant 0 : index
    %3 = vector.load %arg7[%c0_3, %c0_4, %c0_5] : memref<18x18x128xbf16, #tpu.memory_space<vmem>>, vector<18x18x128xbf16>
    tpu.vector_store %arg7[%c0_3, %c0_4, %c0_5], %2 {strides = array<i32>} : memref<18x18x128xbf16, #tpu.memory_space<vmem>>, vector<18x18x128xbf16>,
    %c1 = arith.constant 1 : index
    %c1_6 = arith.constant 1 : index
    %c0_7 = arith.constant 0 : index
    %4 = vector.load %arg7[%c1, %c1_6, %c0_7] : memref<18x18x128xbf16, #tpu.memory_space<vmem>>, vector<16x16x8xbf16>
    tpu.vector_store %arg7[%c1, %c1_6, %c0_7], %1 {strides = array<i32>} : memref<18x18x128xbf16, #tpu.memory_space<vmem>>, vector<16x16x8xbf16>,
    %c0_8 = arith.constant 0 : index
    %c0_9 = arith.constant 0 : index
    %c0_10 = arith.constant 0 : index
    %5 = vector.load %arg7[%c0_8, %c0_9, %c0_10] : memref<18x18x128xbf16, #tpu.memory_space<vmem>>, vector<16x16x8xbf16>
    %c0_11 = arith.constant 0 : index
    %c1_12 = arith.constant 1 : index
    %c0_13 = arith.constant 0 : index
    %6 = vector.load %arg7[%c0_11, %c1_12, %c0_13] : memref<18x18x128xbf16, #tpu.memory_space<vmem>>, vector<16x16x8xbf16>
    %c0_14 = arith.constant 0 : index
    %c2 = arith.constant 2 : index
    %c0_15 = arith.constant 0 : index
    %7 = vector.load %arg7[%c0_14, %c2, %c0_15] : memref<18x18x128xbf16, #tpu.memory_space<vmem>>, vector<16x16x8xbf16>
    %c1_16 = arith.constant 1 : index
    %c0_17 = arith.constant 0 : index
    %c0_18 = arith.constant 0 : index
    %8 = vector.load %arg7[%c1_16, %c0_17, %c0_18] : memref<18x18x128xbf16, #tpu.memory_space<vmem>>, vector<16x16x8xbf16>
    %c1_19 = arith.constant 1 : index
    %c1_20 = arith.constant 1 : index
    %c0_21 = arith.constant 0 : index
    %9 = vector.load %arg7[%c1_19, %c1_20, %c0_21] : memref<18x18x128xbf16, #tpu.memory_space<vmem>>, vector<16x16x8xbf16>
    %c1_22 = arith.constant 1 : index
    %c2_23 = arith.constant 2 : index
    %c0_24 = arith.constant 0 : index
    %10 = vector.load %arg7[%c1_22, %c2_23, %c0_24] : memref<18x18x128xbf16, #tpu.memory_space<vmem>>, vector<16x16x8xbf16>
    %c2_25 = arith.constant 2 : index
    %c0_26 = arith.constant 0 : index
    %c0_27 = arith.constant 0 : index
    %11 = vector.load %arg7[%c2_25, %c0_26, %c0_27] : memref<18x18x128xbf16, #tpu.memory_space<vmem>>, vector<16x16x8xbf16>
    %c2_28 = arith.constant 2 : index
    %c1_29 = arith.constant 1 : index
    %c0_30 = arith.constant 0 : index
    %12 = vector.load %arg7[%c2_28, %c1_29, %c0_30] : memref<18x18x128xbf16, #tpu.memory_space<vmem>>, vector<16x16x8xbf16>
    %c2_31 = arith.constant 2 : index
    %c2_32 = arith.constant 2 : index
    %c0_33 = arith.constant 0 : index
    %13 = vector.load %arg7[%c2_31, %c2_32, %c0_33] : memref<18x18x128xbf16, #tpu.memory_space<vmem>>, vector<16x16x8xbf16>
    %14 = tpu.concatenate %5, %6, %7, %8, %9, %10, %11, %12, %13 in 2 : vector<16x16x8xbf16>, vector<16x16x8xbf16>, vector<16x16x8xbf16>, vector<16x16x8xbf16>, vector<16x16x8xbf16>, vector<16x16x8xbf16>, vector<16x16x8xbf16>, vector<16x16x8xbf16>, vector<16x16x8xbf16> -> vector<16x16x72xbf16>
    %15 = vector.shape_cast %14 : vector<16x16x72xbf16> to vector<256x72xbf16>
    %c0_34 = arith.constant 0 : index
    %c0_35 = arith.constant 0 : index
    %16 = vector.load %arg2[%c0_34, %c0_35] : memref<72x128xbf16, #tpu.memory_space<vmem>>, vector<72x128xbf16>
    %cst_36 = arith.constant dense<0.000000e+00> : vector<256x128xf32>
    %17 = tpu.matmul %15, %16, %cst_36 {dimension_numbers = #tpu.dot_dimension_numbers<[1], [0], [0], [1], [0, 0, 1, 1], [], []>} : vector<256x72xbf16>, vector<72x128xbf16>, vector<256x128xf32> -> vector<256x128xf32>
    %c0_37 = arith.constant 0 : index
    %c0_38 = arith.constant 0 : index
    %18 = vector.load %arg3[%c0_37, %c0_38] : memref<1x128xf32, #tpu.memory_space<vmem>>, vector<1x128xf32>
    %19 = vector.broadcast %18 : vector<1x128xf32> to vector<256x128xf32>
    %20 = arith.addf %17, %19 : vector<256x128xf32>
    %cst_39 = arith.constant 0.000000e+00 : f32
    %21 = vector.broadcast %cst_39 : f32 to vector<256x128xf32>
    %22 = arith.maximumf %20, %21 : vector<256x128xf32>
    %23 = arith.truncf %22 : vector<256x128xf32> to vector<256x128xbf16>
    %24 = vector.shape_cast %23 : vector<256x128xbf16> to vector<16x16x128xbf16>
    %c1_40 = arith.constant 1 : index
    %c1_41 = arith.constant 1 : index
    %c0_42 = arith.constant 0 : index
    %25 = vector.load %arg7[%c1_40, %c1_41, %c0_42] : memref<18x18x128xbf16, #tpu.memory_space<vmem>>, vector<16x16x128xbf16>
    tpu.vector_store %arg7[%c1_40, %c1_41, %c0_42], %24 {strides = array<i32>} : memref<18x18x128xbf16, #tpu.memory_space<vmem>>, vector<16x16x128xbf16>,
    %c0_43 = arith.constant 0 : index
    %c0_44 = arith.constant 0 : index
    %c0_45 = arith.constant 0 : index
    %26 = vector.load %arg7[%c0_43, %c0_44, %c0_45] : memref<18x18x128xbf16, #tpu.memory_space<vmem>>, vector<16x16x128xbf16>
    %c0_46 = arith.constant 0 : index
    %c1_47 = arith.constant 1 : index
    %c0_48 = arith.constant 0 : index
    %27 = vector.load %arg7[%c0_46, %c1_47, %c0_48] : memref<18x18x128xbf16, #tpu.memory_space<vmem>>, vector<16x16x128xbf16>
    %c0_49 = arith.constant 0 : index
    %c2_50 = arith.constant 2 : index
    %c0_51 = arith.constant 0 : index
    %28 = vector.load %arg7[%c0_49, %c2_50, %c0_51] : memref<18x18x128xbf16, #tpu.memory_space<vmem>>, vector<16x16x128xbf16>
    %c1_52 = arith.constant 1 : index
    %c0_53 = arith.constant 0 : index
    %c0_54 = arith.constant 0 : index
    %29 = vector.load %arg7[%c1_52, %c0_53, %c0_54] : memref<18x18x128xbf16, #tpu.memory_space<vmem>>, vector<16x16x128xbf16>
    %c1_55 = arith.constant 1 : index
    %c1_56 = arith.constant 1 : index
    %c0_57 = arith.constant 0 : index
    %30 = vector.load %arg7[%c1_55, %c1_56, %c0_57] : memref<18x18x128xbf16, #tpu.memory_space<vmem>>, vector<16x16x128xbf16>
    %c1_58 = arith.constant 1 : index
    %c2_59 = arith.constant 2 : index
    %c0_60 = arith.constant 0 : index
    %31 = vector.load %arg7[%c1_58, %c2_59, %c0_60] : memref<18x18x128xbf16, #tpu.memory_space<vmem>>, vector<16x16x128xbf16>
    %c2_61 = arith.constant 2 : index
    %c0_62 = arith.constant 0 : index
    %c0_63 = arith.constant 0 : index
    %32 = vector.load %arg7[%c2_61, %c0_62, %c0_63] : memref<18x18x128xbf16, #tpu.memory_space<vmem>>, vector<16x16x128xbf16>
    %c2_64 = arith.constant 2 : index
    %c1_65 = arith.constant 1 : index
    %c0_66 = arith.constant 0 : index
    %33 = vector.load %arg7[%c2_64, %c1_65, %c0_66] : memref<18x18x128xbf16, #tpu.memory_space<vmem>>, vector<16x16x128xbf16>
    %c2_67 = arith.constant 2 : index
    %c2_68 = arith.constant 2 : index
    %c0_69 = arith.constant 0 : index
    %34 = vector.load %arg7[%c2_67, %c2_68, %c0_69] : memref<18x18x128xbf16, #tpu.memory_space<vmem>>, vector<16x16x128xbf16>
    %35 = tpu.concatenate %26, %27, %28, %29, %30, %31, %32, %33, %34 in 2 : vector<16x16x128xbf16>, vector<16x16x128xbf16>, vector<16x16x128xbf16>, vector<16x16x128xbf16>, vector<16x16x128xbf16>, vector<16x16x128xbf16>, vector<16x16x128xbf16>, vector<16x16x128xbf16>, vector<16x16x128xbf16> -> vector<16x16x1152xbf16>
    %36 = vector.shape_cast %35 : vector<16x16x1152xbf16> to vector<256x1152xbf16>
    %c0_70 = arith.constant 0 : index
    %c0_71 = arith.constant 0 : index
    %37 = vector.load %arg4[%c0_70, %c0_71] : memref<1152x128xbf16, #tpu.memory_space<vmem>>, vector<1152x128xbf16>
    %cst_72 = arith.constant dense<0.000000e+00> : vector<256x128xf32>
    %38 = tpu.matmul %36, %37, %cst_72 {dimension_numbers = #tpu.dot_dimension_numbers<[1], [0], [0], [1], [0, 0, 1, 1], [], []>} : vector<256x1152xbf16>, vector<1152x128xbf16>, vector<256x128xf32> -> vector<256x128xf32>
    %c0_73 = arith.constant 0 : index
    %c0_74 = arith.constant 0 : index
    %39 = vector.load %arg5[%c0_73, %c0_74] : memref<1x128xf32, #tpu.memory_space<vmem>>, vector<1x128xf32>
    %40 = vector.broadcast %39 : vector<1x128xf32> to vector<256x128xf32>
    %41 = arith.addf %38, %40 : vector<256x128xf32>
    %cst_75 = arith.constant 0.000000e+00 : f32
    %42 = vector.broadcast %cst_75 : f32 to vector<256x128xf32>
    %43 = arith.maximumf %41, %42 : vector<256x128xf32>
    %44 = arith.truncf %43 : vector<256x128xf32> to vector<256x128xbf16>
    %45 = vector.shape_cast %44 : vector<256x128xbf16> to vector<16x16x128xbf16>
    %c0_76 = arith.constant 0 : index
    %c0_77 = arith.constant 0 : index
    %c0_78 = arith.constant 0 : index
    %c0_79 = arith.constant 0 : index
    %46 = vector.load %arg6[%c0_76, %c0_77, %c0_78, %c0_79] : memref<1x16x16x128xbf16, #tpu.memory_space<vmem>>, vector<1x16x16x128xbf16>
    %47 = vector.shape_cast %46 : vector<1x16x16x128xbf16> to vector<16x16x128xbf16>
    %48 = vector.shape_cast %45 : vector<16x16x128xbf16> to vector<1x16x16x128xbf16>
    tpu.vector_store %arg6[%c0_76, %c0_77, %c0_78, %c0_79], %48 {strides = array<i32>} : memref<1x16x16x128xbf16, #tpu.memory_space<vmem>>, vector<1x16x16x128xbf16>,
    return
  }
  func.func @transform_0(%arg0: i32) -> (i32, i32, i32, i32) {
    %c0_i32 = arith.constant 0 : i32
    %c0_i32_0 = arith.constant 0 : i32
    %c0_i32_1 = arith.constant 0 : i32
    %c0_i32_2 = arith.constant 0 : i32
    return %arg0, %c0_i32, %c0_i32_0, %c0_i32_1 : i32, i32, i32, i32
  }
  func.func @transform_1(%arg0: i32) -> (i32, i32) {
    %c0_i32 = arith.constant 0 : i32
    %c0_i32_0 = arith.constant 0 : i32
    %c0_i32_1 = arith.constant 0 : i32
    return %c0_i32, %c0_i32_0 : i32, i32
  }
  func.func @transform_2(%arg0: i32) -> (i32, i32) {
    %c0_i32 = arith.constant 0 : i32
    %c0_i32_0 = arith.constant 0 : i32
    %c0_i32_1 = arith.constant 0 : i32
    return %c0_i32, %c0_i32_0 : i32, i32
  }
  func.func @transform_3(%arg0: i32) -> (i32, i32) {
    %c0_i32 = arith.constant 0 : i32
    %c0_i32_0 = arith.constant 0 : i32
    %c0_i32_1 = arith.constant 0 : i32
    return %c0_i32, %c0_i32_0 : i32, i32
  }
  func.func @transform_4(%arg0: i32) -> (i32, i32) {
    %c0_i32 = arith.constant 0 : i32
    %c0_i32_0 = arith.constant 0 : i32
    %c0_i32_1 = arith.constant 0 : i32
    return %c0_i32, %c0_i32_0 : i32, i32
  }
  func.func @transform_5(%arg0: i32) -> (i32, i32, i32, i32) {
    %c0_i32 = arith.constant 0 : i32
    %c0_i32_0 = arith.constant 0 : i32
    %c0_i32_1 = arith.constant 0 : i32
    %c0_i32_2 = arith.constant 0 : i32
    return %arg0, %c0_i32, %c0_i32_0, %c0_i32_1 : i32, i32, i32, i32
  }
}

</mosaic_0001>

<llo_original>
// kernel: tpu_custom_call.1
$region0: #{tpu_custom_call.1}
  #allocation0 [shape = 'u32[]', space=smem, size = 0x4, offset = 0x4, fixed_abs, tag = 'smem constant byte address 0x4 - core index']
  #allocation1 [shape = 'u32[144,128]{1,0:T(1,128)}', space=vmem, size = 0x12000, scoped, tag = 'internal scratch']
  #allocation2 [shape = 'bf16[18,18,128]{2,1,0:T(8,128)(2,1)}', space=vmem, size = 0x1b000, scoped, tag = 'scratch operand']
  %s0 = inlined_call_operand.vmem [shape: bf16[2,16,16,8], index: 0, kind: input, shape index: {}]
  %s1 = inlined_call_operand.vmem [shape: bf16[72,128], index: 1, kind: input, shape index: {}]
  %s2 = inlined_call_operand.vmem [shape: f32[1,128], index: 2, kind: input, shape index: {}]
  %s3 = inlined_call_operand.hbm [shape: bf16[1152,128], index: 3, kind: input, shape index: {}]
  %s4 = inlined_call_operand.vmem [shape: f32[1,128], index: 4, kind: input, shape index: {}]
  %s5 = inlined_call_operand.hbm [shape: bf16[2,16,16,128], index: 5, kind: output, shape index: {}]
  %s6 = sld [smem:[#allocation0]]
  $region57: #{tpu_custom_call.1} parent=0
    _
  %s8 = ssub.s32 1, %s6
  %s9 = scalar_select 0, %s8, %s6
  $region1: #{tpu_custom_call.1} parent=0
    #allocation3 [shape = 'u8[294912]{0}', space=vmem, size = 0x48000, scoped, tag = 'input window, operand 3, single buffered']
    #allocation4 [shape = 's32[2]{0}', space=sflag, size = 0x8, scoped, tag = 'scoped memory for tpu_custom_call.1']
    #allocation5 [shape = 's32[2]{0}', space=sflag, size = 0x8, scoped, tag = 'scoped memory for tpu_custom_call.1']
    #allocation6 [shape = 'u8[131072]{0}', space=vmem, size = 0x20000, scoped, tag = 'output window, operand 0']
    %10 = vsyncpa [#allocation4], 0
    %11 = vsyncpa [#allocation5], 0
    %s12 = scalar_lea.sflag [#allocation5], 1
    %13 = vsyncpa %s12, 0
    loop: start=0, step=1, limit=4
    $region2: #{tpu_custom_call.1} parent=1 // loop_pre_header
      _
    $region3: #{tpu_custom_call.1} parent=1 // loop_header
      %s15 = sphi 0, %s19
      %p16 = scmp.ge.s32.totalorder %s15, 4
      %s25 = sphi 0, %s27
      %s28 = sphi 0, %s25
      %s29 = sphi 0, %s28
      %s45 = sphi 0, %s29
      %s49 = sphi 0, %s49
      %s51 = sphi 0, %s49
      %s52 = sphi 0, %s51
      %s66 = sphi 0, %s52
      %s70 = sphi 0, %s70
      %s72 = sphi 0, %s70
      %s73 = sphi 0, %s72
      %s87 = sphi 0, %s73
      %s91 = sphi 0, %s91
      %s93 = sphi 0, %s91
      %s94 = sphi 0, %s93
      %s108 = sphi 0, %s94
      %s112 = sphi 0, %s112
      %s114 = sphi 0, %s112
      %s115 = sphi 0, %s114
      %s129 = sphi 0, %s115
      %s135 = sphi 0, %s137
      %s138 = sphi 0, %s135
      %s139 = sphi 0, %s138
      %s155 = sphi 0, %s139
    $region4: #{tpu_custom_call.1} parent=1 // loop_header_branch
      %18 = sbr.rel (%p16) target = $region8
    $region5: #{tpu_custom_call.1} parent=1 // loop_body
      %s20 = ssub.s32 %s15, 1
      %s21 = ssub.s32 %s15, 2
      %s22 = sadd.s32 %s15, 1
      %s23 = ssub.s32 %s15, %s22
      %p24 = scmp.eq.s32.totalorder %s23, 0
      %s26 = sadd.s32 %s25, 1
      %s27 = scalar_select %p24, %s25, %s26
      %p30 = pneg %p24
      %p31 = scmp.eq.s32.totalorder %s15, 1
      %p32 = por %p30, %p31
      %p33 = scmp.ne.s32.totalorder %s25, %s28
      %p34 = scmp.eq.s32.totalorder %s15, 0
      %p35 = por %p33, %p34
      %p36 = scmp.ne.s32.totalorder %s25, %s28
      %p37 = scmp.eq.s32.totalorder %s20, 1
      %p38 = por %p36, %p37
      %p39 = scmp.ne.s32.totalorder %s28, %s29
      %p40 = scmp.eq.s32.totalorder %s20, 0
      %p41 = por %p39, %p40
      %p42 = scmp.ne.s32.totalorder %s28, %s29
      %p43 = scmp.eq.s32.totalorder %s21, 1
      %p44 = por %p42, %p43
      %p46 = scmp.ne.s32.totalorder %s29, %s45
      %p47 = scmp.eq.s32.totalorder %s21, 0
      %p48 = por %p46, %p47
      %s50 = sadd.s32 %s49, 1
      %p53 = scmp.eq.s32.totalorder %s15, 1
      %p54 = scmp.ne.s32.totalorder %s49, %s51
      %p55 = scmp.eq.s32.totalorder %s15, 0
      %p56 = por %p54, %p55
      %p57 = scmp.ne.s32.totalorder %s49, %s51
      %p58 = scmp.eq.s32.totalorder %s20, 1
      %p59 = por %p57, %p58
      %p60 = scmp.ne.s32.totalorder %s51, %s52
      %p61 = scmp.eq.s32.totalorder %s20, 0
      %p62 = por %p60, %p61
      %p63 = scmp.ne.s32.totalorder %s51, %s52
      %p64 = scmp.eq.s32.totalorder %s21, 1
      %p65 = por %p63, %p64
      %p67 = scmp.ne.s32.totalorder %s52, %s66
      %p68 = scmp.eq.s32.totalorder %s21, 0
      %p69 = por %p67, %p68
      %s71 = sadd.s32 %s70, 1
      %p74 = scmp.eq.s32.totalorder %s15, 1
      %p75 = scmp.ne.s32.totalorder %s70, %s72
      %p76 = scmp.eq.s32.totalorder %s15, 0
      %p77 = por %p75, %p76
      %p78 = scmp.ne.s32.totalorder %s70, %s72
      %p79 = scmp.eq.s32.totalorder %s20, 1
      %p80 = por %p78, %p79
      %p81 = scmp.ne.s32.totalorder %s72, %s73
      %p82 = scmp.eq.s32.totalorder %s20, 0
      %p83 = por %p81, %p82
      %p84 = scmp.ne.s32.totalorder %s72, %s73
      %p85 = scmp.eq.s32.totalorder %s21, 1
      %p86 = por %p84, %p85
      %p88 = scmp.ne.s32.totalorder %s73, %s87
      %p89 = scmp.eq.s32.totalorder %s21, 0
      %p90 = por %p88, %p89
      %s92 = sadd.s32 %s91, 1
      %p95 = scmp.eq.s32.totalorder %s15, 1
      %p96 = scmp.ne.s32.totalorder %s91, %s93
      %p97 = scmp.eq.s32.totalorder %s15, 0
      %p98 = por %p96, %p97
      %p99 = scmp.ne.s32.totalorder %s91, %s93
      %p100 = scmp.eq.s32.totalorder %s20, 1
      %p101 = por %p99, %p100
      %p102 = scmp.ne.s32.totalorder %s93, %s94
      %p103 = scmp.eq.s32.totalorder %s20, 0
      %p104 = por %p102, %p103
      %p105 = scmp.ne.s32.totalorder %s93, %s94
      %p106 = scmp.eq.s32.totalorder %s21, 1
      %p107 = por %p105, %p106
      %p109 = scmp.ne.s32.totalorder %s94, %s108
      %p110 = scmp.eq.s32.totalorder %s21, 0
      %p111 = por %p109, %p110
      %s113 = sadd.s32 %s112, 1
      %p116 = scmp.eq.s32.totalorder %s15, 1
      %p117 = scmp.ne.s32.totalorder %s112, %s114
      %p118 = scmp.eq.s32.totalorder %s15, 0
      %p119 = por %p117, %p118
      %p120 = scmp.ne.s32.totalorder %s112, %s114
      %p121 = scmp.eq.s32.totalorder %s20, 1
      %p122 = por %p120, %p121
      %p123 = scmp.ne.s32.totalorder %s114, %s115
      %p124 = scmp.eq.s32.totalorder %s20, 0
      %p125 = por %p123, %p124
      %p126 = scmp.ne.s32.totalorder %s114, %s115
      %p127 = scmp.eq.s32.totalorder %s21, 1
      %p128 = por %p126, %p127
      %p130 = scmp.ne.s32.totalorder %s115, %s129
      %p131 = scmp.eq.s32.totalorder %s21, 0
      %p132 = por %p130, %p131
      %s133 = ssub.s32 %s15, %s22
      %p134 = scmp.eq.s32.totalorder %s133, 0
      %s136 = sadd.s32 %s135, 1
      %s137 = scalar_select %p134, %s135, %s136
      %p140 = pneg %p134
      %p141 = scmp.eq.s32.totalorder %s15, 1
      %p142 = por %p140, %p141
      %p143 = scmp.ne.s32.totalorder %s135, %s138
      %p144 = scmp.eq.s32.totalorder %s15, 0
      %p145 = por %p143, %p144
      %p146 = scmp.ne.s32.totalorder %s135, %s138
      %p147 = scmp.eq.s32.totalorder %s20, 1
      %p148 = por %p146, %p147
      %p149 = scmp.ne.s32.totalorder %s138, %s139
      %p150 = scmp.eq.s32.totalorder %s20, 0
      %p151 = por %p149, %p150
      %p152 = scmp.ne.s32.totalorder %s138, %s139
      %p153 = scmp.eq.s32.totalorder %s21, 1
      %p154 = por %p152, %p153
      %p156 = scmp.ne.s32.totalorder %s139, %s155
      %p157 = scmp.eq.s32.totalorder %s21, 0
      %p158 = por %p156, %p157
      %p159 = scmp.le.s32.totalorder 1, %s15
      %p160 = scmp.lt.s32.totalorder %s15, 3
      %p161 = pnand %p159, %p160
      %p162 = pneg %p161
      // Predicated region
      $region9: #{tpu_custom_call.1} parent=5 // pred_check
        _
      $region10: #{tpu_custom_call.1} parent=5 // pred_check_branch
        %164 = sbr.rel (%p161) target = $region12
      $region11: #{tpu_custom_call.1} parent=5 // pred_region
        %s165 = ssub.s32 %s15, 1
        // Predicated region
        $region13: #{tpu_custom_call.1} parent=11 // pred_check
          %p166 = pneg %p62
        $region14: #{tpu_custom_call.1} parent=11 // pred_check_branch
          %168 = sbr.rel (%p166) target = $region16
        $region15: #{tpu_custom_call.1} parent=11 // pred_region
          _
        $region16: #{tpu_custom_call.1} parent=11 // pred_fallthru
          _
        // Predicated region
        $region17: #{tpu_custom_call.1} parent=11 // pred_check
          %p169 = pneg %p83
        $region18: #{tpu_custom_call.1} parent=11 // pred_check_branch
          %171 = sbr.rel (%p169) target = $region20
        $region19: #{tpu_custom_call.1} parent=11 // pred_region
          _
        $region20: #{tpu_custom_call.1} parent=11 // pred_fallthru
          _
        // Predicated region
        $region21: #{tpu_custom_call.1} parent=11 // pred_check
          %p172 = pneg %p104
        $region22: #{tpu_custom_call.1} parent=11 // pred_check_branch
          %174 = sbr.rel (%p172) target = $region24
        $region23: #{tpu_custom_call.1} parent=11 // pred_region
          %s176 = ssub.s32 9216, 9216
          %177 = vsyncadd [#allocation4], %s176
          %s178 = sshll.u32 [#allocation3], 4
          %s179 = int_to_ptr.vmem [resolvable:$true] %s178
          %184 = dma.hbm_to_vmem [thread:$0]  %s3, 9216, %s179, [#allocation4], 64, 64, 4
        $region24: #{tpu_custom_call.1} parent=11 // pred_fallthru
          _
        // Predicated region
        $region25: #{tpu_custom_call.1} parent=11 // pred_check
          %p185 = pneg %p125
        $region26: #{tpu_custom_call.1} parent=11 // pred_check_branch
          %187 = sbr.rel (%p185) target = $region28
        $region27: #{tpu_custom_call.1} parent=11 // pred_region
          _
        $region28: #{tpu_custom_call.1} parent=11 // pred_fallthru
          _
      $region12: #{tpu_custom_call.1} parent=5 // pred_fallthru
        _
      %p188 = scmp.lt.s32.totalorder %s15, 2
      // Predicated region
      $region29: #{tpu_custom_call.1} parent=5 // pred_check
        %p189 = pneg %p188
      $region30: #{tpu_custom_call.1} parent=5 // pred_check_branch
        %191 = sbr.rel (%p189) target = $region32
      $region31: #{tpu_custom_call.1} parent=5 // pred_region
        // Predicated region
        $region33: #{tpu_custom_call.1} parent=31 // pred_check
          %p192 = pneg %p35
        $region34: #{tpu_custom_call.1} parent=31 // pred_check_branch
          %194 = sbr.rel (%p192) target = $region36
        $region35: #{tpu_custom_call.1} parent=31 // pred_region
          %p195 = scmp.lt.s32.totalorder %s15, 1
          %s196 = scalar_select %p195, %s15, 1
          %s197 = smul.addr %s196, 32
          %s198 = smul.addr %s197, 4
          %s199 = scalar_lea.vmem %s0, %s198
        $region36: #{tpu_custom_call.1} parent=31 // pred_fallthru
          _
      $region32: #{tpu_custom_call.1} parent=5 // pred_fallthru
        _
      %p200 = scmp.le.s32.totalorder 1, %s15
      %p201 = scmp.lt.s32.totalorder %s15, 3
      %p202 = pnand %p200, %p201
      %p203 = pneg %p202
      // Predicated region
      $region37: #{tpu_custom_call.1} parent=5 // pred_check
        _
      $region38: #{tpu_custom_call.1} parent=5 // pred_check_branch
        %205 = sbr.rel (%p202) target = $region40
      $region39: #{tpu_custom_call.1} parent=5 // pred_region
        %s206 = ssub.s32 %s15, 1
        // Predicated region
        $region41: #{tpu_custom_call.1} parent=39 // pred_check
          %p207 = pneg %p104
        $region42: #{tpu_custom_call.1} parent=39 // pred_check_branch
          %209 = sbr.rel (%p207) target = $region44
        $region43: #{tpu_custom_call.1} parent=39 // pred_region
          %210 = dma.done [#allocation4], 9216
        $region44: #{tpu_custom_call.1} parent=39 // pred_fallthru
          _
        %p211 = scmp.lt.s32.totalorder %s20, 1
        %s212 = scalar_select %p211, %s20, 1
        %s213 = smul.addr %s212, 32
        %s214 = smul.addr %s213, 4
        %s215 = scalar_lea.vmem %s0, %s214
        %p216 = pneg %p41
        %p217 = pneg %p38
        %p218 = pneg %p62
        %p219 = pneg %p59
        %p220 = pneg %p83
        %p221 = pneg %p80
        %p222 = pneg %p104
        %p223 = pneg %p101
        %p224 = pneg %p125
        %p225 = pneg %p122
        %p226 = pneg %p151
        %p227 = pneg %p148
        %s228 = sand.u32 %s138, 1
        %s229 = scalar_lea.sflag [#allocation5], %s228
        %s230 = sand.u32 %s138, 1
        %s231 = smul.addr %s230, 128
        %s232 = scalar_lea.vmem [#allocation6], %s231
        %p233 = scmp.lt.s32.totalorder %s20, 1
        %s234 = scalar_select %p233, %s20, 1
        %s235 = smul.addr %s234, 32
        %s236 = smul.addr %s235, 4
        %s237 = scalar_lea.vmem %s0, %s236
        %v239 = vld [vmem:[%s237] sm:$0xf]
        %v240 = vld [vmem:[%s237 + $0x4] sm:$0xf]
        %v241 = vld [vmem:[%s237 + $0x8] sm:$0xf]
        %v242 = vld [vmem:[%s237 + $0xc] sm:$0xf]
        %v243 = vld [vmem:[%s237 + $0x10] sm:$0xf]
        %v244 = vld [vmem:[%s237 + $0x14] sm:$0xf]
        %v245 = vld [vmem:[%s237 + $0x18] sm:$0xf]
        %v246 = vld [vmem:[%s237 + $0x1c] sm:$0xf]
        %v247 = vld [vmem:[%s237 + $0x20] sm:$0xf]
        %v248 = vld [vmem:[%s237 + $0x24] sm:$0xf]
        %v249 = vld [vmem:[%s237 + $0x28] sm:$0xf]
        %v250 = vld [vmem:[%s237 + $0x2c] sm:$0xf]
        %v251 = vld [vmem:[%s237 + $0x30] sm:$0xf]
        %v252 = vld [vmem:[%s237 + $0x34] sm:$0xf]
        %v253 = vld [vmem:[%s237 + $0x38] sm:$0xf]
        %v254 = vld [vmem:[%s237 + $0x3c] sm:$0xf]
        %v255 = vld [vmem:[%s237 + $0x40] sm:$0xf]
        %v256 = vld [vmem:[%s237 + $0x44] sm:$0xf]
        %v257 = vld [vmem:[%s237 + $0x48] sm:$0xf]
        %v258 = vld [vmem:[%s237 + $0x4c] sm:$0xf]
        %v259 = vld [vmem:[%s237 + $0x50] sm:$0xf]
        %v260 = vld [vmem:[%s237 + $0x54] sm:$0xf]
        %v261 = vld [vmem:[%s237 + $0x58] sm:$0xf]
        %v262 = vld [vmem:[%s237 + $0x5c] sm:$0xf]
        %v263 = vld [vmem:[%s237 + $0x60] sm:$0xf]
        %v264 = vld [vmem:[%s237 + $0x64] sm:$0xf]
        %v265 = vld [vmem:[%s237 + $0x68] sm:$0xf]
        %v266 = vld [vmem:[%s237 + $0x6c] sm:$0xf]
        %v267 = vld [vmem:[%s237 + $0x70] sm:$0xf]
        %v268 = vld [vmem:[%s237 + $0x74] sm:$0xf]
        %v269 = vld [vmem:[%s237 + $0x78] sm:$0xf]
        %v270 = vld [vmem:[%s237 + $0x7c] sm:$0xf]
        %271 = vst [vmem:[#allocation2] sm:$0xf] 0
        %272 = vst [vmem:[#allocation2 + $0x4] sm:$0xf] 0
        %273 = vst [vmem:[#allocation2 + $0x8] sm:$0x1] 0
        %274 = vst [vmem:[#allocation2 + $0xc] sm:$0xf] 0
        %275 = vst [vmem:[#allocation2 + $0x10] sm:$0xf] 0
        %276 = vst [vmem:[#allocation2 + $0x14] sm:$0x1] 0
        %277 = vst [vmem:[#allocation2 + $0x18] sm:$0xf] 0
        %278 = vst [vmem:[#allocation2 + $0x1c] sm:$0xf] 0
        %279 = vst [vmem:[#allocation2 + $0x20] sm:$0x1] 0
        %280 = vst [vmem:[#allocation2 + $0x24] sm:$0xf] 0
        %281 = vst [vmem:[#allocation2 + $0x28] sm:$0xf] 0
        %282 = vst [vmem:[#allocation2 + $0x2c] sm:$0x1] 0
        %283 = vst [vmem:[#allocation2 + $0x30] sm:$0xf] 0
        %284 = vst [vmem:[#allocation2 + $0x34] sm:$0xf] 0
        %285 = vst [vmem:[#allocation2 + $0x38] sm:$0x1] 0
        %286 = vst [vmem:[#allocation2 + $0x3c] sm:$0xf] 0
        %287 = vst [vmem:[#allocation2 + $0x40] sm:$0xf] 0
        %288 = vst [vmem:[#allocation2 + $0x44] sm:$0x1] 0
        %289 = vst [vmem:[#allocation2 + $0x48] sm:$0xf] 0
        %290 = vst [vmem:[#allocation2 + $0x4c] sm:$0xf] 0
        %291 = vst [vmem:[#allocation2 + $0x50] sm:$0x1] 0
        %292 = vst [vmem:[#allocation2 + $0x54] sm:$0xf] 0
        %293 = vst [vmem:[#allocation2 + $0x58] sm:$0xf] 0
        %294 = vst [vmem:[#allocation2 + $0x5c] sm:$0x1] 0
        %295 = vst [vmem:[#allocation2 + $0x60] sm:$0xf] 0
        %296 = vst [vmem:[#allocation2 + $0x64] sm:$0xf] 0
        %297 = vst [vmem:[#allocation2 + $0x68] sm:$0x1] 0
        %298 = vst [vmem:[#allocation2 + $0x6c] sm:$0xf] 0
        %299 = vst [vmem:[#allocation2 + $0x70] sm:$0xf] 0
        %300 = vst [vmem:[#allocation2 + $0x74] sm:$0x1] 0
        %301 = vst [vmem:[#allocation2 + $0x78] sm:$0xf] 0
        %302 = vst [vmem:[#allocation2 + $0x7c] sm:$0xf] 0
        %303 = vst [vmem:[#allocation2 + $0x80] sm:$0x1] 0
        %304 = vst [vmem:[#allocation2 + $0x84] sm:$0xf] 0
        %305 = vst [vmem:[#allocation2 + $0x88] sm:$0xf] 0
        %306 = vst [vmem:[#allocation2 + $0x8c] sm:$0x1] 0
        %307 = vst [vmem:[#allocation2 + $0x90] sm:$0xf] 0
        %308 = vst [vmem:[#allocation2 + $0x94] sm:$0xf] 0
        %309 = vst [vmem:[#allocation2 + $0x98] sm:$0x1] 0
        %310 = vst [vmem:[#allocation2 + $0x9c] sm:$0xf] 0
        %311 = vst [vmem:[#allocation2 + $0xa0] sm:$0xf] 0
        %312 = vst [vmem:[#allocation2 + $0xa4] sm:$0x1] 0
        %313 = vst [vmem:[#allocation2 + $0xa8] sm:$0xf] 0
        %314 = vst [vmem:[#allocation2 + $0xac] sm:$0xf] 0
        %315 = vst [vmem:[#allocation2 + $0xb0] sm:$0x1] 0
        %316 = vst [vmem:[#allocation2 + $0xb4] sm:$0xf] 0
        %317 = vst [vmem:[#allocation2 + $0xb8] sm:$0xf] 0
        %318 = vst [vmem:[#allocation2 + $0xbc] sm:$0x1] 0
        %319 = vst [vmem:[#allocation2 + $0xc0] sm:$0xf] 0
        %320 = vst [vmem:[#allocation2 + $0xc4] sm:$0xf] 0
        %321 = vst [vmem:[#allocation2 + $0xc8] sm:$0x1] 0
        %322 = vst [vmem:[#allocation2 + $0xcc] sm:$0xf] 0
        %323 = vst [vmem:[#allocation2 + $0xd0] sm:$0xf] 0
        %324 = vst [vmem:[#allocation2 + $0xd4] sm:$0x1] 0
        %vm325 = vsmask.f32 256
        %vm326 = vsmask.f32 4368
        %vm327 = vmor %vm325, %vm326
        %v329 = vshrl.u32 %v239, 16
        %v331 = vrot.slane %v329, 7
        %v332 = vshll.u32 %v239, 16
        %v334 = vor.u32 %v331, %v332
        %v335 = vrot.slane %v331, 4
        %v337 = vshrl.u32 %v240, 16
        %v339 = vrot.slane %v337, 7
        %v340 = vshll.u32 %v240, 16
        %v342 = vor.u32 %v339, %v340
        %v343 = vsel %vm327, %v335, %v342
        %v344 = vrot.slane %v339, 4
        %v346 = vshrl.u32 %v241, 16
        %v348 = vrot.slane %v346, 7
        %v349 = vshll.u32 %v241, 16
        %v351 = vor.u32 %v348, %v349
        %v352 = vrot.slane %v348, 4
        %v354 = vshrl.u32 %v242, 16
        %v356 = vrot.slane %v354, 7
        %v357 = vshll.u32 %v242, 16
        %v359 = vor.u32 %v356, %v357
        %v360 = vsel %vm327, %v352, %v359
        %v361 = vrot.slane %v356, 4
        %v363 = vshrl.u32 %v243, 16
        %v365 = vrot.slane %v363, 7
        %v366 = vshll.u32 %v243, 16
        %v368 = vor.u32 %v365, %v366
        %v369 = vrot.slane %v365, 4
        %v371 = vshrl.u32 %v244, 16
        %v373 = vrot.slane %v371, 7
        %v374 = vshll.u32 %v244, 16
        %v376 = vor.u32 %v373, %v374
        %v377 = vsel %vm327, %v369, %v376
        %v378 = vrot.slane %v373, 4
        %v380 = vshrl.u32 %v245, 16
        %v382 = vrot.slane %v380, 7
        %v383 = vshll.u32 %v245, 16
        %v385 = vor.u32 %v382, %v383
        %v386 = vrot.slane %v382, 4
        %v388 = vshrl.u32 %v246, 16
        %v390 = vrot.slane %v388, 7
        %v391 = vshll.u32 %v246, 16
        %v393 = vor.u32 %v390, %v391
        %v394 = vsel %vm327, %v386, %v393
        %v395 = vrot.slane %v390, 4
        %v397 = vshrl.u32 %v247, 16
        %v399 = vrot.slane %v397, 7
        %v400 = vshll.u32 %v247, 16
        %v402 = vor.u32 %v399, %v400
        %v403 = vrot.slane %v399, 4
        %v405 = vshrl.u32 %v248, 16
        %v407 = vrot.slane %v405, 7
        %v408 = vshll.u32 %v248, 16
        %v410 = vor.u32 %v407, %v408
        %v411 = vsel %vm327, %v403, %v410
        %v412 = vrot.slane %v407, 4
        %v414 = vshrl.u32 %v249, 16
        %v416 = vrot.slane %v414, 7
        %v417 = vshll.u32 %v249, 16
        %v419 = vor.u32 %v416, %v417
        %v420 = vrot.slane %v416, 4
        %v422 = vshrl.u32 %v250, 16
        %v424 = vrot.slane %v422, 7
        %v425 = vshll.u32 %v250, 16
        %v427 = vor.u32 %v424, %v425
        %v428 = vsel %vm327, %v420, %v427
        %v429 = vrot.slane %v424, 4
        %v431 = vshrl.u32 %v251, 16
        %v433 = vrot.slane %v431, 7
        %v434 = vshll.u32 %v251, 16
        %v436 = vor.u32 %v433, %v434
        %v437 = vrot.slane %v433, 4
        %v439 = vshrl.u32 %v252, 16
        %v441 = vrot.slane %v439, 7
        %v442 = vshll.u32 %v252, 16
        %v444 = vor.u32 %v441, %v442
        %v445 = vsel %vm327, %v437, %v444
        %v446 = vrot.slane %v441, 4
        %v448 = vshrl.u32 %v253, 16
        %v450 = vrot.slane %v448, 7
        %v451 = vshll.u32 %v253, 16
        %v453 = vor.u32 %v450, %v451
        %v454 = vrot.slane %v450, 4
        %v456 = vshrl.u32 %v254, 16
        %v458 = vrot.slane %v456, 7
        %v459 = vshll.u32 %v254, 16
        %v461 = vor.u32 %v458, %v459
        %v462 = vsel %vm327, %v454, %v461
        %v463 = vrot.slane %v458, 4
        %v465 = vshrl.u32 %v255, 16
        %v467 = vrot.slane %v465, 7
        %v468 = vshll.u32 %v255, 16
        %v470 = vor.u32 %v467, %v468
        %v471 = vrot.slane %v467, 4
        %v473 = vshrl.u32 %v256, 16
        %v475 = vrot.slane %v473, 7
        %v476 = vshll.u32 %v256, 16
        %v478 = vor.u32 %v475, %v476
        %v479 = vsel %vm327, %v471, %v478
        %v480 = vrot.slane %v475, 4
        %v482 = vshrl.u32 %v257, 16
        %v484 = vrot.slane %v482, 7
        %v485 = vshll.u32 %v257, 16
        %v487 = vor.u32 %v484, %v485
        %v488 = vrot.slane %v484, 4
        %v490 = vshrl.u32 %v258, 16
        %v492 = vrot.slane %v490, 7
        %v493 = vshll.u32 %v258, 16
        %v495 = vor.u32 %v492, %v493
        %v496 = vsel %vm327, %v488, %v495
        %v497 = vrot.slane %v492, 4
        %v499 = vshrl.u32 %v259, 16
        %v501 = vrot.slane %v499, 7
        %v502 = vshll.u32 %v259, 16
        %v504 = vor.u32 %v501, %v502
        %v505 = vrot.slane %v501, 4
        %v507 = vshrl.u32 %v260, 16
        %v509 = vrot.slane %v507, 7
        %v510 = vshll.u32 %v260, 16
        %v512 = vor.u32 %v509, %v510
        %v513 = vsel %vm327, %v505, %v512
        %v514 = vrot.slane %v509, 4
        %v516 = vshrl.u32 %v261, 16
        %v518 = vrot.slane %v516, 7
        %v519 = vshll.u32 %v261, 16
        %v521 = vor.u32 %v518, %v519
        %v522 = vrot.slane %v518, 4
        %v524 = vshrl.u32 %v262, 16
        %v526 = vrot.slane %v524, 7
        %v527 = vshll.u32 %v262, 16
        %v529 = vor.u32 %v526, %v527
        %v530 = vsel %vm327, %v522, %v529
        %v531 = vrot.slane %v526, 4
        %v533 = vshrl.u32 %v263, 16
        %v535 = vrot.slane %v533, 7
        %v536 = vshll.u32 %v263, 16
        %v538 = vor.u32 %v535, %v536
        %v539 = vrot.slane %v535, 4
        %v541 = vshrl.u32 %v264, 16
        %v543 = vrot.slane %v541, 7
        %v544 = vshll.u32 %v264, 16
        %v546 = vor.u32 %v543, %v544
        %v547 = vsel %vm327, %v539, %v546
        %v548 = vrot.slane %v543, 4
        %v550 = vshrl.u32 %v265, 16
        %v552 = vrot.slane %v550, 7
        %v553 = vshll.u32 %v265, 16
        %v555 = vor.u32 %v552, %v553
        %v556 = vrot.slane %v552, 4
        %v558 = vshrl.u32 %v266, 16
        %v560 = vrot.slane %v558, 7
        %v561 = vshll.u32 %v266, 16
        %v563 = vor.u32 %v560, %v561
        %v564 = vsel %vm327, %v556, %v563
        %v565 = vrot.slane %v560, 4
        %v567 = vshrl.u32 %v267, 16
        %v569 = vrot.slane %v567, 7
        %v570 = vshll.u32 %v267, 16
        %v572 = vor.u32 %v569, %v570
        %v573 = vrot.slane %v569, 4
        %v575 = vshrl.u32 %v268, 16
        %v577 = vrot.slane %v575, 7
        %v578 = vshll.u32 %v268, 16
        %v580 = vor.u32 %v577, %v578
        %v581 = vsel %vm327, %v573, %v580
        %v582 = vrot.slane %v577, 4
        %v584 = vshrl.u32 %v269, 16
        %v586 = vrot.slane %v584, 7
        %v587 = vshll.u32 %v269, 16
        %v589 = vor.u32 %v586, %v587
        %v590 = vrot.slane %v586, 4
        %v592 = vshrl.u32 %v270, 16
        %v594 = vrot.slane %v592, 7
        %v595 = vshll.u32 %v270, 16
        %v597 = vor.u32 %v594, %v595
        %v598 = vsel %vm327, %v590, %v597
        %v599 = vrot.slane %v594, 4
        %s648 = scalar_lea.vmem [#allocation2], 12
        %vm649 = vcmask 60416
        %vm650 = vsmask.f32 7938
        %vm651 = vmand %vm649, %vm650
        %v652 = vld [vmem:[%s648] sm:$0xf]
        %v653 = vsel %vm651, %v334, %v652
        %654 = vst [vmem:[%s648] sm:$0xf] %v653
        %vm655 = vcmask 60416
        %656 = vst.msk [vmem:[%s648 + $0x4] sm:$0xf] %vm655, %v343
        %vm657 = vcmask 57344
        %vm658 = vmand %vm657, %vm325
        %v659 = vld [vmem:[%s648 + $0x8] sm:$0x1]
        %v660 = vsel %vm658, %v344, %v659
        %661 = vst [vmem:[%s648 + $0x8] sm:$0x1] %v660
        %v662 = vld [vmem:[%s648 + $0xc] sm:$0xf]
        %v663 = vsel %vm651, %v351, %v662
        %664 = vst [vmem:[%s648 + $0xc] sm:$0xf] %v663
        %665 = vst.msk [vmem:[%s648 + $0x10] sm:$0xf] %vm655, %v360
        %v666 = vld [vmem:[%s648 + $0x14] sm:$0x1]
        %v667 = vsel %vm658, %v361, %v666
        %668 = vst [vmem:[%s648 + $0x14] sm:$0x1] %v667
        %v669 = vld [vmem:[%s648 + $0x18] sm:$0xf]
        %v670 = vsel %vm651, %v368, %v669
        %671 = vst [vmem:[%s648 + $0x18] sm:$0xf] %v670
        %672 = vst.msk [vmem:[%s648 + $0x1c] sm:$0xf] %vm655, %v377
        %v673 = vld [vmem:[%s648 + $0x20] sm:$0x1]
        %v674 = vsel %vm658, %v378, %v673
        %675 = vst [vmem:[%s648 + $0x20] sm:$0x1] %v674
        %v676 = vld [vmem:[%s648 + $0x24] sm:$0xf]
        %v677 = vsel %vm651, %v385, %v676
        %678 = vst [vmem:[%s648 + $0x24] sm:$0xf] %v677
        %679 = vst.msk [vmem:[%s648 + $0x28] sm:$0xf] %vm655, %v394
        %v680 = vld [vmem:[%s648 + $0x2c] sm:$0x1]
        %v681 = vsel %vm658, %v395, %v680
        %682 = vst [vmem:[%s648 + $0x2c] sm:$0x1] %v681
        %v683 = vld [vmem:[%s648 + $0x30] sm:$0xf]
        %v684 = vsel %vm651, %v402, %v683
        %685 = vst [vmem:[%s648 + $0x30] sm:$0xf] %v684
        %686 = vst.msk [vmem:[%s648 + $0x34] sm:$0xf] %vm655, %v411
        %v687 = vld [vmem:[%s648 + $0x38] sm:$0x1]
        %v688 = vsel %vm658, %v412, %v687
        %689 = vst [vmem:[%s648 + $0x38] sm:$0x1] %v688
        %v690 = vld [vmem:[%s648 + $0x3c] sm:$0xf]
        %v691 = vsel %vm651, %v419, %v690
        %692 = vst [vmem:[%s648 + $0x3c] sm:$0xf] %v691
        %693 = vst.msk [vmem:[%s648 + $0x40] sm:$0xf] %vm655, %v428
        %v694 = vld [vmem:[%s648 + $0x44] sm:$0x1]
        %v695 = vsel %vm658, %v429, %v694
        %696 = vst [vmem:[%s648 + $0x44] sm:$0x1] %v695
        %v697 = vld [vmem:[%s648 + $0x48] sm:$0xf]
        %v698 = vsel %vm651, %v436, %v697
        %699 = vst [vmem:[%s648 + $0x48] sm:$0xf] %v698
        %700 = vst.msk [vmem:[%s648 + $0x4c] sm:$0xf] %vm655, %v445
        %v701 = vld [vmem:[%s648 + $0x50] sm:$0x1]
        %v702 = vsel %vm658, %v446, %v701
        %703 = vst [vmem:[%s648 + $0x50] sm:$0x1] %v702
        %v704 = vld [vmem:[%s648 + $0x54] sm:$0xf]
        %v705 = vsel %vm651, %v453, %v704
        %706 = vst [vmem:[%s648 + $0x54] sm:$0xf] %v705
        %707 = vst.msk [vmem:[%s648 + $0x58] sm:$0xf] %vm655, %v462
        %v708 = vld [vmem:[%s648 + $0x5c] sm:$0x1]
        %v709 = vsel %vm658, %v463, %v708
        %710 = vst [vmem:[%s648 + $0x5c] sm:$0x1] %v709
        %v711 = vld [vmem:[%s648 + $0x60] sm:$0xf]
        %v712 = vsel %vm651, %v470, %v711
        %713 = vst [vmem:[%s648 + $0x60] sm:$0xf] %v712
        %714 = vst.msk [vmem:[%s648 + $0x64] sm:$0xf] %vm655, %v479
        %v715 = vld [vmem:[%s648 + $0x68] sm:$0x1]
        %v716 = vsel %vm658, %v480, %v715
        %717 = vst [vmem:[%s648 + $0x68] sm:$0x1] %v716
        %v718 = vld [vmem:[%s648 + $0x6c] sm:$0xf]
        %v719 = vsel %vm651, %v487, %v718
        %720 = vst [vmem:[%s648 + $0x6c] sm:$0xf] %v719
        %721 = vst.msk [vmem:[%s648 + $0x70] sm:$0xf] %vm655, %v496
        %v722 = vld [vmem:[%s648 + $0x74] sm:$0x1]
        %v723 = vsel %vm658, %v497, %v722
        %724 = vst [vmem:[%s648 + $0x74] sm:$0x1] %v723
        %v725 = vld [vmem:[%s648 + $0x78] sm:$0xf]
        %v726 = vsel %vm651, %v504, %v725
        %727 = vst [vmem:[%s648 + $0x78] sm:$0xf] %v726
        %728 = vst.msk [vmem:[%s648 + $0x7c] sm:$0xf] %vm655, %v513
        %v729 = vld [vmem:[%s648 + $0x80] sm:$0x1]
        %v730 = vsel %vm658, %v514, %v729
        %731 = vst [vmem:[%s648 + $0x80] sm:$0x1] %v730
        %v732 = vld [vmem:[%s648 + $0x84] sm:$0xf]
        %v733 = vsel %vm651, %v521, %v732
        %734 = vst [vmem:[%s648 + $0x84] sm:$0xf] %v733
        %735 = vst.msk [vmem:[%s648 + $0x88] sm:$0xf] %vm655, %v530
        %v736 = vld [vmem:[%s648 + $0x8c] sm:$0x1]
        %v737 = vsel %vm658, %v531, %v736
        %738 = vst [vmem:[%s648 + $0x8c] sm:$0x1] %v737
        %v739 = vld [vmem:[%s648 + $0x90] sm:$0xf]
        %v740 = vsel %vm651, %v538, %v739
        %741 = vst [vmem:[%s648 + $0x90] sm:$0xf] %v740
        %742 = vst.msk [vmem:[%s648 + $0x94] sm:$0xf] %vm655, %v547
        %v743 = vld [vmem:[%s648 + $0x98] sm:$0x1]
        %v744 = vsel %vm658, %v548, %v743
        %745 = vst [vmem:[%s648 + $0x98] sm:$0x1] %v744
        %v746 = vld [vmem:[%s648 + $0x9c] sm:$0xf]
        %v747 = vsel %vm651, %v555, %v746
        %748 = vst [vmem:[%s648 + $0x9c] sm:$0xf] %v747
        %749 = vst.msk [vmem:[%s648 + $0xa0] sm:$0xf] %vm655, %v564
        %v750 = vld [vmem:[%s648 + $0xa4] sm:$0x1]
        %v751 = vsel %vm658, %v565, %v750
        %752 = vst [vmem:[%s648 + $0xa4] sm:$0x1] %v751
        %v753 = vld [vmem:[%s648 + $0xa8] sm:$0xf]
        %v754 = vsel %vm651, %v572, %v753
        %755 = vst [vmem:[%s648 + $0xa8] sm:$0xf] %v754
        %756 = vst.msk [vmem:[%s648 + $0xac] sm:$0xf] %vm655, %v581
        %v757 = vld [vmem:[%s648 + $0xb0] sm:$0x1]
        %v758 = vsel %vm658, %v582, %v757
        %759 = vst [vmem:[%s648 + $0xb0] sm:$0x1] %v758
        %v760 = vld [vmem:[%s648 + $0xb4] sm:$0xf]
        %v761 = vsel %vm651, %v589, %v760
        %762 = vst [vmem:[%s648 + $0xb4] sm:$0xf] %v761
        %763 = vst.msk [vmem:[%s648 + $0xb8] sm:$0xf] %vm655, %v598
        %v764 = vld [vmem:[%s648 + $0xbc] sm:$0x1]
        %v765 = vsel %vm658, %v599, %v764
        %766 = vst [vmem:[%s648 + $0xbc] sm:$0x1] %v765
        %v767 = vld [vmem:[#allocation2] sm:$0xf]
        %v768 = vld [vmem:[#allocation2 + $0x4] sm:$0xf]
        %v769 = vld [vmem:[#allocation2 + $0xc] sm:$0xf]
        %v770 = vld [vmem:[#allocation2 + $0x10] sm:$0xf]
        %v771 = vld [vmem:[#allocation2 + $0x18] sm:$0xf]
        %v772 = vld [vmem:[#allocation2 + $0x1c] sm:$0xf]
        %v773 = vld [vmem:[#allocation2 + $0x24] sm:$0xf]
        %v774 = vld [vmem:[#allocation2 + $0x28] sm:$0xf]
        %v775 = vld [vmem:[#allocation2 + $0x30] sm:$0xf]
        %v776 = vld [vmem:[#allocation2 + $0x34] sm:$0xf]
        %v777 = vld [vmem:[#allocation2 + $0x3c] sm:$0xf]
        %v778 = vld [vmem:[#allocation2 + $0x40] sm:$0xf]
        %v779 = vld [vmem:[#allocation2 + $0x48] sm:$0xf]
        %v780 = vld [vmem:[#allocation2 + $0x4c] sm:$0xf]
        %v781 = vld [vmem:[#allocation2 + $0x54] sm:$0xf]
        %v782 = vld [vmem:[#allocation2 + $0x58] sm:$0xf]
        %v783 = vld [vmem:[#allocation2 + $0x60] sm:$0xf]
        %v784 = vld [vmem:[#allocation2 + $0x64] sm:$0xf]
        %v785 = vld [vmem:[#allocation2 + $0x6c] sm:$0xf]
        %v786 = vld [vmem:[#allocation2 + $0x70] sm:$0xf]
        %v787 = vld [vmem:[#allocation2 + $0x78] sm:$0xf]
        %v788 = vld [vmem:[#allocation2 + $0x7c] sm:$0xf]
        %v789 = vld [vmem:[#allocation2 + $0x84] sm:$0xf]
        %v790 = vld [vmem:[#allocation2 + $0x88] sm:$0xf]
        %v791 = vld [vmem:[#allocation2 + $0x90] sm:$0xf]
        %v792 = vld [vmem:[#allocation2 + $0x94] sm:$0xf]
        %v793 = vld [vmem:[#allocation2 + $0x9c] sm:$0xf]
        %v794 = vld [vmem:[#allocation2 + $0xa0] sm:$0xf]
        %v795 = vld [vmem:[#allocation2 + $0xa8] sm:$0xf]
        %v796 = vld [vmem:[#allocation2 + $0xac] sm:$0xf]
        %v797 = vld [vmem:[#allocation2 + $0xb4] sm:$0xf]
        %v798 = vld [vmem:[#allocation2 + $0xb8] sm:$0xf]
        %v799 = vld [vmem:[#allocation2 + $0x8] sm:$0x1]
        %v800 = vld [vmem:[#allocation2 + $0x14] sm:$0x1]
        %v801 = vld [vmem:[#allocation2 + $0x20] sm:$0x1]
        %v802 = vld [vmem:[#allocation2 + $0x2c] sm:$0x1]
        %v803 = vld [vmem:[#allocation2 + $0x38] sm:$0x1]
        %v804 = vld [vmem:[#allocation2 + $0x44] sm:$0x1]
        %v805 = vld [vmem:[#allocation2 + $0x50] sm:$0x1]
        %v806 = vld [vmem:[#allocation2 + $0x5c] sm:$0x1]
        %v807 = vld [vmem:[#allocation2 + $0x68] sm:$0x1]
        %v808 = vld [vmem:[#allocation2 + $0x74] sm:$0x1]
        %v809 = vld [vmem:[#allocation2 + $0x80] sm:$0x1]
        %v810 = vld [vmem:[#allocation2 + $0x8c] sm:$0x1]
        %v811 = vld [vmem:[#allocation2 + $0x98] sm:$0x1]
        %v812 = vld [vmem:[#allocation2 + $0xa4] sm:$0x1]
        %v813 = vld [vmem:[#allocation2 + $0xb0] sm:$0x1]
        %v814 = vld [vmem:[#allocation2 + $0xbc] sm:$0x1]
        %v815 = vld [vmem:[#allocation2] sm:$0xe]
        %v816 = vld [vmem:[#allocation2 + $0xc] sm:$0xe]
        %v817 = vld [vmem:[#allocation2 + $0x18] sm:$0xe]
        %v818 = vld [vmem:[#allocation2 + $0x24] sm:$0xe]
        %v819 = vld [vmem:[#allocation2 + $0x30] sm:$0xe]
        %v820 = vld [vmem:[#allocation2 + $0x3c] sm:$0xe]
        %v821 = vld [vmem:[#allocation2 + $0x48] sm:$0xe]
        %v822 = vld [vmem:[#allocation2 + $0x54] sm:$0xe]
        %v823 = vld [vmem:[#allocation2 + $0x60] sm:$0xe]
        %v824 = vld [vmem:[#allocation2 + $0x6c] sm:$0xe]
        %v825 = vld [vmem:[#allocation2 + $0x78] sm:$0xe]
        %v826 = vld [vmem:[#allocation2 + $0x84] sm:$0xe]
        %v827 = vld [vmem:[#allocation2 + $0x90] sm:$0xe]
        %v828 = vld [vmem:[#allocation2 + $0x9c] sm:$0xe]
        %v829 = vld [vmem:[#allocation2 + $0xa8] sm:$0xe]
        %v830 = vld [vmem:[#allocation2 + $0xb4] sm:$0xe]
        %v831 = vld [vmem:[%s648] sm:$0xf]
        %v832 = vld [vmem:[%s648 + $0x4] sm:$0xf]
        %v833 = vld [vmem:[%s648 + $0xc] sm:$0xf]
        %v834 = vld [vmem:[%s648 + $0x10] sm:$0xf]
        %v835 = vld [vmem:[%s648 + $0x18] sm:$0xf]
        %v836 = vld [vmem:[%s648 + $0x1c] sm:$0xf]
        %v837 = vld [vmem:[%s648 + $0x24] sm:$0xf]
        %v838 = vld [vmem:[%s648 + $0x28] sm:$0xf]
        %v839 = vld [vmem:[%s648 + $0x30] sm:$0xf]
        %v840 = vld [vmem:[%s648 + $0x34] sm:$0xf]
        %v841 = vld [vmem:[%s648 + $0x3c] sm:$0xf]
        %v842 = vld [vmem:[%s648 + $0x40] sm:$0xf]
        %v843 = vld [vmem:[%s648 + $0x48] sm:$0xf]
        %v844 = vld [vmem:[%s648 + $0x4c] sm:$0xf]
        %v845 = vld [vmem:[%s648 + $0x54] sm:$0xf]
        %v846 = vld [vmem:[%s648 + $0x58] sm:$0xf]
        %v847 = vld [vmem:[%s648 + $0x60] sm:$0xf]
        %v848 = vld [vmem:[%s648 + $0x64] sm:$0xf]
        %v849 = vld [vmem:[%s648 + $0x6c] sm:$0xf]
        %v850 = vld [vmem:[%s648 + $0x70] sm:$0xf]
        %v851 = vld [vmem:[%s648 + $0x78] sm:$0xf]
        %v852 = vld [vmem:[%s648 + $0x7c] sm:$0xf]
        %v853 = vld [vmem:[%s648 + $0x84] sm:$0xf]
        %v854 = vld [vmem:[%s648 + $0x88] sm:$0xf]
        %v855 = vld [vmem:[%s648 + $0x90] sm:$0xf]
        %v856 = vld [vmem:[%s648 + $0x94] sm:$0xf]
        %v857 = vld [vmem:[%s648 + $0x9c] sm:$0xf]
        %v858 = vld [vmem:[%s648 + $0xa0] sm:$0xf]
        %v859 = vld [vmem:[%s648 + $0xa8] sm:$0xf]
        %v860 = vld [vmem:[%s648 + $0xac] sm:$0xf]
        %v861 = vld [vmem:[%s648 + $0xb4] sm:$0xf]
        %v862 = vld [vmem:[%s648 + $0xb8] sm:$0xf]
        %v863 = vld [vmem:[%s648 + $0x8] sm:$0x1]
        %v864 = vld [vmem:[%s648 + $0x14] sm:$0x1]
        %v865 = vld [vmem:[%s648 + $0x20] sm:$0x1]
        %v866 = vld [vmem:[%s648 + $0x2c] sm:$0x1]
        %v867 = vld [vmem:[%s648 + $0x38] sm:$0x1]
        %v868 = vld [vmem:[%s648 + $0x44] sm:$0x1]
        %v869 = vld [vmem:[%s648 + $0x50] sm:$0x1]
        %v870 = vld [vmem:[%s648 + $0x5c] sm:$0x1]
        %v871 = vld [vmem:[%s648 + $0x68] sm:$0x1]
        %v872 = vld [vmem:[%s648 + $0x74] sm:$0x1]
        %v873 = vld [vmem:[%s648 + $0x80] sm:$0x1]
        %v874 = vld [vmem:[%s648 + $0x8c] sm:$0x1]
        %v875 = vld [vmem:[%s648 + $0x98] sm:$0x1]
        %v876 = vld [vmem:[%s648 + $0xa4] sm:$0x1]
        %v877 = vld [vmem:[%s648 + $0xb0] sm:$0x1]
        %v878 = vld [vmem:[%s648 + $0xbc] sm:$0x1]
        %v879 = vld [vmem:[%s648] sm:$0xe]
        %v880 = vld [vmem:[%s648 + $0xc] sm:$0xe]
        %v881 = vld [vmem:[%s648 + $0x18] sm:$0xe]
        %v882 = vld [vmem:[%s648 + $0x24] sm:$0xe]
        %v883 = vld [vmem:[%s648 + $0x30] sm:$0xe]
        %v884 = vld [vmem:[%s648 + $0x3c] sm:$0xe]
        %v885 = vld [vmem:[%s648 + $0x48] sm:$0xe]
        %v886 = vld [vmem:[%s648 + $0x54] sm:$0xe]
        %v887 = vld [vmem:[%s648 + $0x60] sm:$0xe]
        %v888 = vld [vmem:[%s648 + $0x6c] sm:$0xe]
        %v889 = vld [vmem:[%s648 + $0x78] sm:$0xe]
        %v890 = vld [vmem:[%s648 + $0x84] sm:$0xe]
        %v891 = vld [vmem:[%s648 + $0x90] sm:$0xe]
        %v892 = vld [vmem:[%s648 + $0x9c] sm:$0xe]
        %v893 = vld [vmem:[%s648 + $0xa8] sm:$0xe]
        %v894 = vld [vmem:[%s648 + $0xb4] sm:$0xe]
        %s895 = scalar_lea.vmem [#allocation2], 24
        %v896 = vld [vmem:[%s895] sm:$0xf]
        %v897 = vld [vmem:[%s895 + $0x4] sm:$0xf]
        %v898 = vld [vmem:[%s895 + $0xc] sm:$0xf]
        %v899 = vld [vmem:[%s895 + $0x10] sm:$0xf]
        %v900 = vld [vmem:[%s895 + $0x18] sm:$0xf]
        %v901 = vld [vmem:[%s895 + $0x1c] sm:$0xf]
        %v902 = vld [vmem:[%s895 + $0x24] sm:$0xf]
        %v903 = vld [vmem:[%s895 + $0x28] sm:$0xf]
        %v904 = vld [vmem:[%s895 + $0x30] sm:$0xf]
        %v905 = vld [vmem:[%s895 + $0x34] sm:$0xf]
        %v906 = vld [vmem:[%s895 + $0x3c] sm:$0xf]
        %v907 = vld [vmem:[%s895 + $0x40] sm:$0xf]
        %v908 = vld [vmem:[%s895 + $0x48] sm:$0xf]
        %v909 = vld [vmem:[%s895 + $0x4c] sm:$0xf]
        %v910 = vld [vmem:[%s895 + $0x54] sm:$0xf]
        %v911 = vld [vmem:[%s895 + $0x58] sm:$0xf]
        %v912 = vld [vmem:[%s895 + $0x60] sm:$0xf]
        %v913 = vld [vmem:[%s895 + $0x64] sm:$0xf]
        %v914 = vld [vmem:[%s895 + $0x6c] sm:$0xf]
        %v915 = vld [vmem:[%s895 + $0x70] sm:$0xf]
        %v916 = vld [vmem:[%s895 + $0x78] sm:$0xf]
        %v917 = vld [vmem:[%s895 + $0x7c] sm:$0xf]
        %v918 = vld [vmem:[%s895 + $0x84] sm:$0xf]
        %v919 = vld [vmem:[%s895 + $0x88] sm:$0xf]
        %v920 = vld [vmem:[%s895 + $0x90] sm:$0xf]
        %v921 = vld [vmem:[%s895 + $0x94] sm:$0xf]
        %v922 = vld [vmem:[%s895 + $0x9c] sm:$0xf]
        %v923 = vld [vmem:[%s895 + $0xa0] sm:$0xf]
        %v924 = vld [vmem:[%s895 + $0xa8] sm:$0xf]
        %v925 = vld [vmem:[%s895 + $0xac] sm:$0xf]
        %v926 = vld [vmem:[%s895 + $0xb4] sm:$0xf]
        %v927 = vld [vmem:[%s895 + $0xb8] sm:$0xf]
        %v928 = vld [vmem:[%s895 + $0x8] sm:$0x1]
        %v929 = vld [vmem:[%s895 + $0x14] sm:$0x1]
        %v930 = vld [vmem:[%s895 + $0x20] sm:$0x1]
        %v931 = vld [vmem:[%s895 + $0x2c] sm:$0x1]
        %v932 = vld [vmem:[%s895 + $0x38] sm:$0x1]
        %v933 = vld [vmem:[%s895 + $0x44] sm:$0x1]
        %v934 = vld [vmem:[%s895 + $0x50] sm:$0x1]
        %v935 = vld [vmem:[%s895 + $0x5c] sm:$0x1]
        %v936 = vld [vmem:[%s895 + $0x68] sm:$0x1]
        %v937 = vld [vmem:[%s895 + $0x74] sm:$0x1]
        %v938 = vld [vmem:[%s895 + $0x80] sm:$0x1]
        %v939 = vld [vmem:[%s895 + $0x8c] sm:$0x1]
        %v940 = vld [vmem:[%s895 + $0x98] sm:$0x1]
        %v941 = vld [vmem:[%s895 + $0xa4] sm:$0x1]
        %v942 = vld [vmem:[%s895 + $0xb0] sm:$0x1]
        %v943 = vld [vmem:[%s895 + $0xbc] sm:$0x1]
        %v944 = vld [vmem:[%s895] sm:$0xe]
        %v945 = vld [vmem:[%s895 + $0xc] sm:$0xe]
        %v946 = vld [vmem:[%s895 + $0x18] sm:$0xe]
        %v947 = vld [vmem:[%s895 + $0x24] sm:$0xe]
        %v948 = vld [vmem:[%s895 + $0x30] sm:$0xe]
        %v949 = vld [vmem:[%s895 + $0x3c] sm:$0xe]
        %v950 = vld [vmem:[%s895 + $0x48] sm:$0xe]
        %v951 = vld [vmem:[%s895 + $0x54] sm:$0xe]
        %v952 = vld [vmem:[%s895 + $0x60] sm:$0xe]
        %v953 = vld [vmem:[%s895 + $0x6c] sm:$0xe]
        %v954 = vld [vmem:[%s895 + $0x78] sm:$0xe]
        %v955 = vld [vmem:[%s895 + $0x84] sm:$0xe]
        %v956 = vld [vmem:[%s895 + $0x90] sm:$0xe]
        %v957 = vld [vmem:[%s895 + $0x9c] sm:$0xe]
        %v958 = vld [vmem:[%s895 + $0xa8] sm:$0xe]
        %v959 = vld [vmem:[%s895 + $0xb4] sm:$0xe]
        %v992 = vunpack.c.l.b16 %v767
        %v993 = vunpack.c.l.b16 %v768
        %v994 = vunpack.c.l.b16 %v769
        %v995 = vunpack.c.l.b16 %v770
        %v996 = vunpack.c.l.b16 %v771
        %v997 = vunpack.c.l.b16 %v772
        %v998 = vunpack.c.l.b16 %v773
        %v999 = vunpack.c.l.b16 %v774
        %v1000 = vunpack.c.l.b16 %v775
        %v1001 = vunpack.c.l.b16 %v776
        %v1002 = vunpack.c.l.b16 %v777
        %v1003 = vunpack.c.l.b16 %v778
        %v1004 = vunpack.c.l.b16 %v779
        %v1005 = vunpack.c.l.b16 %v780
        %v1006 = vunpack.c.l.b16 %v781
        %v1007 = vunpack.c.l.b16 %v782
        %v1008 = vunpack.c.l.b16 %v783
        %v1009 = vunpack.c.l.b16 %v784
        %v1010 = vunpack.c.l.b16 %v785
        %v1011 = vunpack.c.l.b16 %v786
        %v1012 = vunpack.c.l.b16 %v787
        %v1013 = vunpack.c.l.b16 %v788
        %v1014 = vunpack.c.l.b16 %v789
        %v1015 = vunpack.c.l.b16 %v790
        %v1016 = vunpack.c.l.b16 %v791
        %v1017 = vunpack.c.l.b16 %v792
        %v1018 = vunpack.c.l.b16 %v793
        %v1019 = vunpack.c.l.b16 %v794
        %v1020 = vunpack.c.l.b16 %v795
        %v1021 = vunpack.c.l.b16 %v796
        %v1022 = vunpack.c.l.b16 %v797
        %v1023 = vunpack.c.l.b16 %v798
        %v1024 = vpack.c.b16 %v993, %v992
        %v1025 = vpack.c.b16 %v995, %v994
        %v1026 = vpack.c.b16 %v997, %v996
        %v1027 = vpack.c.b16 %v999, %v998
        %v1028 = vpack.c.b16 %v1001, %v1000
        %v1029 = vpack.c.b16 %v1003, %v1002
        %v1030 = vpack.c.b16 %v1005, %v1004
        %v1031 = vpack.c.b16 %v1007, %v1006
        %v1032 = vpack.c.b16 %v1009, %v1008
        %v1033 = vpack.c.b16 %v1011, %v1010
        %v1034 = vpack.c.b16 %v1013, %v1012
        %v1035 = vpack.c.b16 %v1015, %v1014
        %v1036 = vpack.c.b16 %v1017, %v1016
        %v1037 = vpack.c.b16 %v1019, %v1018
        %v1038 = vpack.c.b16 %v1021, %v1020
        %v1039 = vpack.c.b16 %v1023, %v1022
        %v1056 = vunpack.c.l.b16 %v799
        %v1057 = vunpack.c.l.b16 %v800
        %v1058 = vunpack.c.l.b16 %v801
        %v1059 = vunpack.c.l.b16 %v802
        %v1060 = vunpack.c.l.b16 %v803
        %v1061 = vunpack.c.l.b16 %v804
        %v1062 = vunpack.c.l.b16 %v805
        %v1063 = vunpack.c.l.b16 %v806
        %v1064 = vunpack.c.l.b16 %v807
        %v1065 = vunpack.c.l.b16 %v808
        %v1066 = vunpack.c.l.b16 %v809
        %v1067 = vunpack.c.l.b16 %v810
        %v1068 = vunpack.c.l.b16 %v811
        %v1069 = vunpack.c.l.b16 %v812
        %v1070 = vunpack.c.l.b16 %v813
        %v1071 = vunpack.c.l.b16 %v814
        %v1072 = vpack.c.b16 %v1056, %v1056
        %v1073 = vpack.c.b16 %v1057, %v1057
        %v1074 = vpack.c.b16 %v1058, %v1058
        %v1075 = vpack.c.b16 %v1059, %v1059
        %v1076 = vpack.c.b16 %v1060, %v1060
        %v1077 = vpack.c.b16 %v1061, %v1061
        %v1078 = vpack.c.b16 %v1062, %v1062
        %v1079 = vpack.c.b16 %v1063, %v1063
        %v1080 = vpack.c.b16 %v1064, %v1064
        %v1081 = vpack.c.b16 %v1065, %v1065
        %v1082 = vpack.c.b16 %v1066, %v1066
        %v1083 = vpack.c.b16 %v1067, %v1067
        %v1084 = vpack.c.b16 %v1068, %v1068
        %v1085 = vpack.c.b16 %v1069, %v1069
        %v1086 = vpack.c.b16 %v1070, %v1070
        %v1087 = vpack.c.b16 %v1071, %v1071
        %vm1088 = vsmask.f32 7424
        %v1090 = vshrl.u32 %v1024, 16
        %v1092 = vshll.u32 %v1024, 16
        %v1094 = vrot.slane %v1092, 1
        %v1095 = vor.u32 %v1090, %v1094
        %v1097 = vshll.u32 %v1072, 16
        %v1099 = vrot.slane %v1097, 1
        %v1100 = vsel %vm1088, %v1095, %v1099
        %v1102 = vshrl.u32 %v1025, 16
        %v1104 = vshll.u32 %v1025, 16
        %v1106 = vrot.slane %v1104, 1
        %v1107 = vor.u32 %v1102, %v1106
        %v1109 = vshll.u32 %v1073, 16
        %v1111 = vrot.slane %v1109, 1
        %v1112 = vsel %vm1088, %v1107, %v1111
        %v1114 = vshrl.u32 %v1026, 16
        %v1116 = vshll.u32 %v1026, 16
        %v1118 = vrot.slane %v1116, 1
        %v1119 = vor.u32 %v1114, %v1118
        %v1121 = vshll.u32 %v1074, 16
        %v1123 = vrot.slane %v1121, 1
        %v1124 = vsel %vm1088, %v1119, %v1123
        %v1126 = vshrl.u32 %v1027, 16
        %v1128 = vshll.u32 %v1027, 16
        %v1130 = vrot.slane %v1128, 1
        %v1131 = vor.u32 %v1126, %v1130
        %v1133 = vshll.u32 %v1075, 16
        %v1135 = vrot.slane %v1133, 1
        %v1136 = vsel %vm1088, %v1131, %v1135
        %v1138 = vshrl.u32 %v1028, 16
        %v1140 = vshll.u32 %v1028, 16
        %v1142 = vrot.slane %v1140, 1
        %v1143 = vor.u32 %v1138, %v1142
        %v1145 = vshll.u32 %v1076, 16
        %v1147 = vrot.slane %v1145, 1
        %v1148 = vsel %vm1088, %v1143, %v1147
        %v1150 = vshrl.u32 %v1029, 16
        %v1152 = vshll.u32 %v1029, 16
        %v1154 = vrot.slane %v1152, 1
        %v1155 = vor.u32 %v1150, %v1154
        %v1157 = vshll.u32 %v1077, 16
        %v1159 = vrot.slane %v1157, 1
        %v1160 = vsel %vm1088, %v1155, %v1159
        %v1162 = vshrl.u32 %v1030, 16
        %v1164 = vshll.u32 %v1030, 16
        %v1166 = vrot.slane %v1164, 1
        %v1167 = vor.u32 %v1162, %v1166
        %v1169 = vshll.u32 %v1078, 16
        %v1171 = vrot.slane %v1169, 1
        %v1172 = vsel %vm1088, %v1167, %v1171
        %v1174 = vshrl.u32 %v1031, 16
        %v1176 = vshll.u32 %v1031, 16
        %v1178 = vrot.slane %v1176, 1
        %v1179 = vor.u32 %v1174, %v1178
        %v1181 = vshll.u32 %v1079, 16
        %v1183 = vrot.slane %v1181, 1
        %v1184 = vsel %vm1088, %v1179, %v1183
        %v1186 = vshrl.u32 %v1032, 16
        %v1188 = vshll.u32 %v1032, 16
        %v1190 = vrot.slane %v1188, 1
        %v1191 = vor.u32 %v1186, %v1190
        %v1193 = vshll.u32 %v1080, 16
        %v1195 = vrot.slane %v1193, 1
        %v1196 = vsel %vm1088, %v1191, %v1195
        %v1198 = vshrl.u32 %v1033, 16
        %v1200 = vshll.u32 %v1033, 16
        %v1202 = vrot.slane %v1200, 1
        %v1203 = vor.u32 %v1198, %v1202
        %v1205 = vshll.u32 %v1081, 16
        %v1207 = vrot.slane %v1205, 1
        %v1208 = vsel %vm1088, %v1203, %v1207
        %v1210 = vshrl.u32 %v1034, 16
        %v1212 = vshll.u32 %v1034, 16
        %v1214 = vrot.slane %v1212, 1
        %v1215 = vor.u32 %v1210, %v1214
        %v1217 = vshll.u32 %v1082, 16
        %v1219 = vrot.slane %v1217, 1
        %v1220 = vsel %vm1088, %v1215, %v1219
        %v1222 = vshrl.u32 %v1035, 16
        %v1224 = vshll.u32 %v1035, 16
        %v1226 = vrot.slane %v1224, 1
        %v1227 = vor.u32 %v1222, %v1226
        %v1229 = vshll.u32 %v1083, 16
        %v1231 = vrot.slane %v1229, 1
        %v1232 = vsel %vm1088, %v1227, %v1231
        %v1234 = vshrl.u32 %v1036, 16
        %v1236 = vshll.u32 %v1036, 16
        %v1238 = vrot.slane %v1236, 1
        %v1239 = vor.u32 %v1234, %v1238
        %v1241 = vshll.u32 %v1084, 16
        %v1243 = vrot.slane %v1241, 1
        %v1244 = vsel %vm1088, %v1239, %v1243
        %v1246 = vshrl.u32 %v1037, 16
        %v1248 = vshll.u32 %v1037, 16
        %v1250 = vrot.slane %v1248, 1
        %v1251 = vor.u32 %v1246, %v1250
        %v1253 = vshll.u32 %v1085, 16
        %v1255 = vrot.slane %v1253, 1
        %v1256 = vsel %vm1088, %v1251, %v1255
        %v1258 = vshrl.u32 %v1038, 16
        %v1260 = vshll.u32 %v1038, 16
        %v1262 = vrot.slane %v1260, 1
        %v1263 = vor.u32 %v1258, %v1262
        %v1265 = vshll.u32 %v1086, 16
        %v1267 = vrot.slane %v1265, 1
        %v1268 = vsel %vm1088, %v1263, %v1267
        %v1270 = vshrl.u32 %v1039, 16
        %v1272 = vshll.u32 %v1039, 16
        %v1274 = vrot.slane %v1272, 1
        %v1275 = vor.u32 %v1270, %v1274
        %v1277 = vshll.u32 %v1087, 16
        %v1279 = vrot.slane %v1277, 1
        %v1280 = vsel %vm1088, %v1275, %v1279
        %1281 = vrot.lane.b32.xlu0 %v1100, 8
        %v1282 = vpop.permute.xlu0 %1281
        %1283 = vrot.lane.b32.xlu0 %v1112, 8
        %v1284 = vpop.permute.xlu0 %1283
        %1285 = vrot.lane.b32.xlu0 %v1124, 8
        %v1286 = vpop.permute.xlu0 %1285
        %1287 = vrot.lane.b32.xlu0 %v1136, 8
        %v1288 = vpop.permute.xlu0 %1287
        %1289 = vrot.lane.b32.xlu0 %v1148, 8
        %v1290 = vpop.permute.xlu0 %1289
        %1291 = vrot.lane.b32.xlu0 %v1160, 8
        %v1292 = vpop.permute.xlu0 %1291
        %1293 = vrot.lane.b32.xlu0 %v1172, 8
        %v1294 = vpop.permute.xlu0 %1293
        %1295 = vrot.lane.b32.xlu0 %v1184, 8
        %v1296 = vpop.permute.xlu0 %1295
        %1297 = vrot.lane.b32.xlu0 %v1196, 8
        %v1298 = vpop.permute.xlu0 %1297
        %1299 = vrot.lane.b32.xlu0 %v1208, 8
        %v1300 = vpop.permute.xlu0 %1299
        %1301 = vrot.lane.b32.xlu0 %v1220, 8
        %v1302 = vpop.permute.xlu0 %1301
        %1303 = vrot.lane.b32.xlu0 %v1232, 8
        %v1304 = vpop.permute.xlu0 %1303
        %1305 = vrot.lane.b32.xlu0 %v1244, 8
        %v1306 = vpop.permute.xlu0 %1305
        %1307 = vrot.lane.b32.xlu0 %v1256, 8
        %v1308 = vpop.permute.xlu0 %1307
        %1309 = vrot.lane.b32.xlu0 %v1268, 8
        %v1310 = vpop.permute.xlu0 %1309
        %1311 = vrot.lane.b32.xlu0 %v1280, 8
        %v1312 = vpop.permute.xlu0 %1311
        %v1329 = vunpack.c.l.b16 %v815
        %v1330 = vunpack.c.l.b16 %v816
        %v1331 = vunpack.c.l.b16 %v817
        %v1332 = vunpack.c.l.b16 %v818
        %v1333 = vunpack.c.l.b16 %v819
        %v1334 = vunpack.c.l.b16 %v820
        %v1335 = vunpack.c.l.b16 %v821
        %v1336 = vunpack.c.l.b16 %v822
        %v1337 = vunpack.c.l.b16 %v823
        %v1338 = vunpack.c.l.b16 %v824
        %v1339 = vunpack.c.l.b16 %v825
        %v1340 = vunpack.c.l.b16 %v826
        %v1341 = vunpack.c.l.b16 %v827
        %v1342 = vunpack.c.l.b16 %v828
        %v1343 = vunpack.c.l.b16 %v829
        %v1344 = vunpack.c.l.b16 %v830
        %v1345 = vpack.c.b16 %v993, %v1329
        %v1346 = vpack.c.b16 %v995, %v1330
        %v1347 = vpack.c.b16 %v997, %v1331
        %v1348 = vpack.c.b16 %v999, %v1332
        %v1349 = vpack.c.b16 %v1001, %v1333
        %v1350 = vpack.c.b16 %v1003, %v1334
        %v1351 = vpack.c.b16 %v1005, %v1335
        %v1352 = vpack.c.b16 %v1007, %v1336
        %v1353 = vpack.c.b16 %v1009, %v1337
        %v1354 = vpack.c.b16 %v1011, %v1338
        %v1355 = vpack.c.b16 %v1013, %v1339
        %v1356 = vpack.c.b16 %v1015, %v1340
        %v1357 = vpack.c.b16 %v1017, %v1341
        %v1358 = vpack.c.b16 %v1019, %v1342
        %v1359 = vpack.c.b16 %v1021, %v1343
        %v1360 = vpack.c.b16 %v1023, %v1344
        %vm1361 = vcmask 1046528
        %v1362 = vrot.slane %v1345, 1
        %v1363 = vrot.slane %v1072, 1
        %v1364 = vsel %vm1361, %v1362, %v1363
        %v1365 = vrot.slane %v1346, 1
        %v1366 = vrot.slane %v1073, 1
        %v1367 = vsel %vm1361, %v1365, %v1366
        %v1368 = vrot.slane %v1347, 1
        %v1369 = vrot.slane %v1074, 1
        %v1370 = vsel %vm1361, %v1368, %v1369
        %v1371 = vrot.slane %v1348, 1
        %v1372 = vrot.slane %v1075, 1
        %v1373 = vsel %vm1361, %v1371, %v1372
        %v1374 = vrot.slane %v1349, 1
        %v1375 = vrot.slane %v1076, 1
        %v1376 = vsel %vm1361, %v1374, %v1375
        %v1377 = vrot.slane %v1350, 1
        %v1378 = vrot.slane %v1077, 1
        %v1379 = vsel %vm1361, %v1377, %v1378
        %v1380 = vrot.slane %v1351, 1
        %v1381 = vrot.slane %v1078, 1
        %v1382 = vsel %vm1361, %v1380, %v1381
        %v1383 = vrot.slane %v1352, 1
        %v1384 = vrot.slane %v1079, 1
        %v1385 = vsel %vm1361, %v1383, %v1384
        %v1386 = vrot.slane %v1353, 1
        %v1387 = vrot.slane %v1080, 1
        %v1388 = vsel %vm1361, %v1386, %v1387
        %v1389 = vrot.slane %v1354, 1
        %v1390 = vrot.slane %v1081, 1
        %v1391 = vsel %vm1361, %v1389, %v1390
        %v1392 = vrot.slane %v1355, 1
        %v1393 = vrot.slane %v1082, 1
        %v1394 = vsel %vm1361, %v1392, %v1393
        %v1395 = vrot.slane %v1356, 1
        %v1396 = vrot.slane %v1083, 1
        %v1397 = vsel %vm1361, %v1395, %v1396
        %v1398 = vrot.slane %v1357, 1
        %v1399 = vrot.slane %v1084, 1
        %v1400 = vsel %vm1361, %v1398, %v1399
        %v1401 = vrot.slane %v1358, 1
        %v1402 = vrot.slane %v1085, 1
        %v1403 = vsel %vm1361, %v1401, %v1402
        %v1404 = vrot.slane %v1359, 1
        %v1405 = vrot.slane %v1086, 1
        %v1406 = vsel %vm1361, %v1404, %v1405
        %v1407 = vrot.slane %v1360, 1
        %v1408 = vrot.slane %v1087, 1
        %v1409 = vsel %vm1361, %v1407, %v1408
        %1410 = vrot.lane.b32.xlu0 %v1364, 16
        %v1411 = vpop.permute.xlu0 %1410
        %1412 = vrot.lane.b32.xlu0 %v1367, 16
        %v1413 = vpop.permute.xlu0 %1412
        %1414 = vrot.lane.b32.xlu0 %v1370, 16
        %v1415 = vpop.permute.xlu0 %1414
        %1416 = vrot.lane.b32.xlu0 %v1373, 16
        %v1417 = vpop.permute.xlu0 %1416
        %1418 = vrot.lane.b32.xlu0 %v1376, 16
        %v1419 = vpop.permute.xlu0 %1418
        %1420 = vrot.lane.b32.xlu0 %v1379, 16
        %v1421 = vpop.permute.xlu0 %1420
        %1422 = vrot.lane.b32.xlu0 %v1382, 16
        %v1423 = vpop.permute.xlu0 %1422
        %1424 = vrot.lane.b32.xlu0 %v1385, 16
        %v1425 = vpop.permute.xlu0 %1424
        %1426 = vrot.lane.b32.xlu0 %v1388, 16
        %v1427 = vpop.permute.xlu0 %1426
        %1428 = vrot.lane.b32.xlu0 %v1391, 16
        %v1429 = vpop.permute.xlu0 %1428
        %1430 = vrot.lane.b32.xlu0 %v1394, 16
        %v1431 = vpop.permute.xlu0 %1430
        %1432 = vrot.lane.b32.xlu0 %v1397, 16
        %v1433 = vpop.permute.xlu0 %1432
        %1434 = vrot.lane.b32.xlu0 %v1400, 16
        %v1435 = vpop.permute.xlu0 %1434
        %1436 = vrot.lane.b32.xlu0 %v1403, 16
        %v1437 = vpop.permute.xlu0 %1436
        %1438 = vrot.lane.b32.xlu0 %v1406, 16
        %v1439 = vpop.permute.xlu0 %1438
        %1440 = vrot.lane.b32.xlu0 %v1409, 16
        %v1441 = vpop.permute.xlu0 %1440
        %v1474 = vunpack.c.l.b16 %v831
        %v1475 = vunpack.c.l.b16 %v832
        %v1476 = vunpack.c.l.b16 %v833
        %v1477 = vunpack.c.l.b16 %v834
        %v1478 = vunpack.c.l.b16 %v835
        %v1479 = vunpack.c.l.b16 %v836
        %v1480 = vunpack.c.l.b16 %v837
        %v1481 = vunpack.c.l.b16 %v838
        %v1482 = vunpack.c.l.b16 %v839
        %v1483 = vunpack.c.l.b16 %v840
        %v1484 = vunpack.c.l.b16 %v841
        %v1485 = vunpack.c.l.b16 %v842
        %v1486 = vunpack.c.l.b16 %v843
        %v1487 = vunpack.c.l.b16 %v844
        %v1488 = vunpack.c.l.b16 %v845
        %v1489 = vunpack.c.l.b16 %v846
        %v1490 = vunpack.c.l.b16 %v847
        %v1491 = vunpack.c.l.b16 %v848
        %v1492 = vunpack.c.l.b16 %v849
        %v1493 = vunpack.c.l.b16 %v850
        %v1494 = vunpack.c.l.b16 %v851
        %v1495 = vunpack.c.l.b16 %v852
        %v1496 = vunpack.c.l.b16 %v853
        %v1497 = vunpack.c.l.b16 %v854
        %v1498 = vunpack.c.l.b16 %v855
        %v1499 = vunpack.c.l.b16 %v856
        %v1500 = vunpack.c.l.b16 %v857
        %v1501 = vunpack.c.l.b16 %v858
        %v1502 = vunpack.c.l.b16 %v859
        %v1503 = vunpack.c.l.b16 %v860
        %v1504 = vunpack.c.l.b16 %v861
        %v1505 = vunpack.c.l.b16 %v862
        %v1506 = vpack.c.b16 %v1475, %v1474
        %v1507 = vpack.c.b16 %v1477, %v1476
        %v1508 = vpack.c.b16 %v1479, %v1478
        %v1509 = vpack.c.b16 %v1481, %v1480
        %v1510 = vpack.c.b16 %v1483, %v1482
        %v1511 = vpack.c.b16 %v1485, %v1484
        %v1512 = vpack.c.b16 %v1487, %v1486
        %v1513 = vpack.c.b16 %v1489, %v1488
        %v1514 = vpack.c.b16 %v1491, %v1490
        %v1515 = vpack.c.b16 %v1493, %v1492
        %v1516 = vpack.c.b16 %v1495, %v1494
        %v1517 = vpack.c.b16 %v1497, %v1496
        %v1518 = vpack.c.b16 %v1499, %v1498
        %v1519 = vpack.c.b16 %v1501, %v1500
        %v1520 = vpack.c.b16 %v1503, %v1502
        %v1521 = vpack.c.b16 %v1505, %v1504
        %1522 = vrot.lane.b32.xlu0 %v1506, 24
        %v1523 = vpop.permute.xlu0 %1522
        %1524 = vrot.lane.b32.xlu0 %v1507, 24
        %v1525 = vpop.permute.xlu0 %1524
        %1526 = vrot.lane.b32.xlu0 %v1508, 24
        %v1527 = vpop.permute.xlu0 %1526
        %1528 = vrot.lane.b32.xlu0 %v1509, 24
        %v1529 = vpop.permute.xlu0 %1528
        %1530 = vrot.lane.b32.xlu0 %v1510, 24
        %v1531 = vpop.permute.xlu0 %1530
        %1532 = vrot.lane.b32.xlu0 %v1511, 24
        %v1533 = vpop.permute.xlu0 %1532
        %1534 = vrot.lane.b32.xlu0 %v1512, 24
        %v1535 = vpop.permute.xlu0 %1534
        %1536 = vrot.lane.b32.xlu0 %v1513, 24
        %v1537 = vpop.permute.xlu0 %1536
        %1538 = vrot.lane.b32.xlu0 %v1514, 24
        %v1539 = vpop.permute.xlu0 %1538
        %1540 = vrot.lane.b32.xlu0 %v1515, 24
        %v1541 = vpop.permute.xlu0 %1540
        %1542 = vrot.lane.b32.xlu0 %v1516, 24
        %v1543 = vpop.permute.xlu0 %1542
        %1544 = vrot.lane.b32.xlu0 %v1517, 24
        %v1545 = vpop.permute.xlu0 %1544
        %1546 = vrot.lane.b32.xlu0 %v1518, 24
        %v1547 = vpop.permute.xlu0 %1546
        %1548 = vrot.lane.b32.xlu0 %v1519, 24
        %v1549 = vpop.permute.xlu0 %1548
        %1550 = vrot.lane.b32.xlu0 %v1520, 24
        %v1551 = vpop.permute.xlu0 %1550
        %1552 = vrot.lane.b32.xlu0 %v1521, 24
        %v1553 = vpop.permute.xlu0 %1552
        %v1570 = vunpack.c.l.b16 %v863
        %v1571 = vunpack.c.l.b16 %v864
        %v1572 = vunpack.c.l.b16 %v865
        %v1573 = vunpack.c.l.b16 %v866
        %v1574 = vunpack.c.l.b16 %v867
        %v1575 = vunpack.c.l.b16 %v868
        %v1576 = vunpack.c.l.b16 %v869
        %v1577 = vunpack.c.l.b16 %v870
        %v1578 = vunpack.c.l.b16 %v871
        %v1579 = vunpack.c.l.b16 %v872
        %v1580 = vunpack.c.l.b16 %v873
        %v1581 = vunpack.c.l.b16 %v874
        %v1582 = vunpack.c.l.b16 %v875
        %v1583 = vunpack.c.l.b16 %v876
        %v1584 = vunpack.c.l.b16 %v877
        %v1585 = vunpack.c.l.b16 %v878
        %v1586 = vpack.c.b16 %v1570, %v1570
        %v1587 = vpack.c.b16 %v1571, %v1571
        %v1588 = vpack.c.b16 %v1572, %v1572
        %v1589 = vpack.c.b16 %v1573, %v1573
        %v1590 = vpack.c.b16 %v1574, %v1574
        %v1591 = vpack.c.b16 %v1575, %v1575
        %v1592 = vpack.c.b16 %v1576, %v1576
        %v1593 = vpack.c.b16 %v1577, %v1577
        %v1594 = vpack.c.b16 %v1578, %v1578
        %v1595 = vpack.c.b16 %v1579, %v1579
        %v1596 = vpack.c.b16 %v1580, %v1580
        %v1597 = vpack.c.b16 %v1581, %v1581
        %v1598 = vpack.c.b16 %v1582, %v1582
        %v1599 = vpack.c.b16 %v1583, %v1583
        %v1600 = vpack.c.b16 %v1584, %v1584
        %v1601 = vpack.c.b16 %v1585, %v1585
        %v1603 = vshrl.u32 %v1506, 16
        %v1605 = vshll.u32 %v1506, 16
        %v1607 = vrot.slane %v1605, 1
        %v1608 = vor.u32 %v1603, %v1607
        %v1610 = vshll.u32 %v1586, 16
        %v1612 = vrot.slane %v1610, 1
        %v1613 = vsel %vm1088, %v1608, %v1612
        %v1615 = vshrl.u32 %v1507, 16
        %v1617 = vshll.u32 %v1507, 16
        %v1619 = vrot.slane %v1617, 1
        %v1620 = vor.u32 %v1615, %v1619
        %v1622 = vshll.u32 %v1587, 16
        %v1624 = vrot.slane %v1622, 1
        %v1625 = vsel %vm1088, %v1620, %v1624
        %v1627 = vshrl.u32 %v1508, 16
        %v1629 = vshll.u32 %v1508, 16
        %v1631 = vrot.slane %v1629, 1
        %v1632 = vor.u32 %v1627, %v1631
        %v1634 = vshll.u32 %v1588, 16
        %v1636 = vrot.slane %v1634, 1
        %v1637 = vsel %vm1088, %v1632, %v1636
        %v1639 = vshrl.u32 %v1509, 16
        %v1641 = vshll.u32 %v1509, 16
        %v1643 = vrot.slane %v1641, 1
        %v1644 = vor.u32 %v1639, %v1643
        %v1646 = vshll.u32 %v1589, 16
        %v1648 = vrot.slane %v1646, 1
        %v1649 = vsel %vm1088, %v1644, %v1648
        %v1651 = vshrl.u32 %v1510, 16
        %v1653 = vshll.u32 %v1510, 16
        %v1655 = vrot.slane %v1653, 1
        %v1656 = vor.u32 %v1651, %v1655
        %v1658 = vshll.u32 %v1590, 16
        %v1660 = vrot.slane %v1658, 1
        %v1661 = vsel %vm1088, %v1656, %v1660
        %v1663 = vshrl.u32 %v1511, 16
        %v1665 = vshll.u32 %v1511, 16
        %v1667 = vrot.slane %v1665, 1
        %v1668 = vor.u32 %v1663, %v1667
        %v1670 = vshll.u32 %v1591, 16
        %v1672 = vrot.slane %v1670, 1
        %v1673 = vsel %vm1088, %v1668, %v1672
        %v1675 = vshrl.u32 %v1512, 16
        %v1677 = vshll.u32 %v1512, 16
        %v1679 = vrot.slane %v1677, 1
        %v1680 = vor.u32 %v1675, %v1679
        %v1682 = vshll.u32 %v1592, 16
        %v1684 = vrot.slane %v1682, 1
        %v1685 = vsel %vm1088, %v1680, %v1684
        %v1687 = vshrl.u32 %v1513, 16
        %v1689 = vshll.u32 %v1513, 16
        %v1691 = vrot.slane %v1689, 1
        %v1692 = vor.u32 %v1687, %v1691
        %v1694 = vshll.u32 %v1593, 16
        %v1696 = vrot.slane %v1694, 1
        %v1697 = vsel %vm1088, %v1692, %v1696
        %v1699 = vshrl.u32 %v1514, 16
        %v1701 = vshll.u32 %v1514, 16
        %v1703 = vrot.slane %v1701, 1
        %v1704 = vor.u32 %v1699, %v1703
        %v1706 = vshll.u32 %v1594, 16
        %v1708 = vrot.slane %v1706, 1
        %v1709 = vsel %vm1088, %v1704, %v1708
        %v1711 = vshrl.u32 %v1515, 16
        %v1713 = vshll.u32 %v1515, 16
        %v1715 = vrot.slane %v1713, 1
        %v1716 = vor.u32 %v1711, %v1715
        %v1718 = vshll.u32 %v1595, 16
        %v1720 = vrot.slane %v1718, 1
        %v1721 = vsel %vm1088, %v1716, %v1720
        %v1723 = vshrl.u32 %v1516, 16
        %v1725 = vshll.u32 %v1516, 16
        %v1727 = vrot.slane %v1725, 1
        %v1728 = vor.u32 %v1723, %v1727
        %v1730 = vshll.u32 %v1596, 16
        %v1732 = vrot.slane %v1730, 1
        %v1733 = vsel %vm1088, %v1728, %v1732
        %v1735 = vshrl.u32 %v1517, 16
        %v1737 = vshll.u32 %v1517, 16
        %v1739 = vrot.slane %v1737, 1
        %v1740 = vor.u32 %v1735, %v1739
        %v1742 = vshll.u32 %v1597, 16
        %v1744 = vrot.slane %v1742, 1
        %v1745 = vsel %vm1088, %v1740, %v1744
        %v1747 = vshrl.u32 %v1518, 16
        %v1749 = vshll.u32 %v1518, 16
        %v1751 = vrot.slane %v1749, 1
        %v1752 = vor.u32 %v1747, %v1751
        %v1754 = vshll.u32 %v1598, 16
        %v1756 = vrot.slane %v1754, 1
        %v1757 = vsel %vm1088, %v1752, %v1756
        %v1759 = vshrl.u32 %v1519, 16
        %v1761 = vshll.u32 %v1519, 16
        %v1763 = vrot.slane %v1761, 1
        %v1764 = vor.u32 %v1759, %v1763
        %v1766 = vshll.u32 %v1599, 16
        %v1768 = vrot.slane %v1766, 1
        %v1769 = vsel %vm1088, %v1764, %v1768
        %v1771 = vshrl.u32 %v1520, 16
        %v1773 = vshll.u32 %v1520, 16
        %v1775 = vrot.slane %v1773, 1
        %v1776 = vor.u32 %v1771, %v1775
        %v1778 = vshll.u32 %v1600, 16
        %v1780 = vrot.slane %v1778, 1
        %v1781 = vsel %vm1088, %v1776, %v1780
        %v1783 = vshrl.u32 %v1521, 16
        %v1785 = vshll.u32 %v1521, 16
        %v1787 = vrot.slane %v1785, 1
        %v1788 = vor.u32 %v1783, %v1787
        %v1790 = vshll.u32 %v1601, 16
        %v1792 = vrot.slane %v1790, 1
        %v1793 = vsel %vm1088, %v1788, %v1792
        %1794 = vrot.lane.b32.xlu0 %v1613, 32
        %v1795 = vpop.permute.xlu0 %1794
        %1796 = vrot.lane.b32.xlu0 %v1625, 32
        %v1797 = vpop.permute.xlu0 %1796
        %1798 = vrot.lane.b32.xlu0 %v1637, 32
        %v1799 = vpop.permute.xlu0 %1798
        %1800 = vrot.lane.b32.xlu0 %v1649, 32
        %v1801 = vpop.permute.xlu0 %1800
        %1802 = vrot.lane.b32.xlu0 %v1661, 32
        %v1803 = vpop.permute.xlu0 %1802
        %1804 = vrot.lane.b32.xlu0 %v1673, 32
        %v1805 = vpop.permute.xlu0 %1804
        %1806 = vrot.lane.b32.xlu0 %v1685, 32
        %v1807 = vpop.permute.xlu0 %1806
        %1808 = vrot.lane.b32.xlu0 %v1697, 32
        %v1809 = vpop.permute.xlu0 %1808
        %1810 = vrot.lane.b32.xlu0 %v1709, 32
        %v1811 = vpop.permute.xlu0 %1810
        %1812 = vrot.lane.b32.xlu0 %v1721, 32
        %v1813 = vpop.permute.xlu0 %1812
        %1814 = vrot.lane.b32.xlu0 %v1733, 32
        %v1815 = vpop.permute.xlu0 %1814
        %1816 = vrot.lane.b32.xlu0 %v1745, 32
        %v1817 = vpop.permute.xlu0 %1816
        %1818 = vrot.lane.b32.xlu0 %v1757, 32
        %v1819 = vpop.permute.xlu0 %1818
        %1820 = vrot.lane.b32.xlu0 %v1769, 32
        %v1821 = vpop.permute.xlu0 %1820
        %1822 = vrot.lane.b32.xlu0 %v1781, 32
        %v1823 = vpop.permute.xlu0 %1822
        %1824 = vrot.lane.b32.xlu0 %v1793, 32
        %v1825 = vpop.permute.xlu0 %1824
        %v1842 = vunpack.c.l.b16 %v879
        %v1843 = vunpack.c.l.b16 %v880
        %v1844 = vunpack.c.l.b16 %v881
        %v1845 = vunpack.c.l.b16 %v882
        %v1846 = vunpack.c.l.b16 %v883
        %v1847 = vunpack.c.l.b16 %v884
        %v1848 = vunpack.c.l.b16 %v885
        %v1849 = vunpack.c.l.b16 %v886
        %v1850 = vunpack.c.l.b16 %v887
        %v1851 = vunpack.c.l.b16 %v888
        %v1852 = vunpack.c.l.b16 %v889
        %v1853 = vunpack.c.l.b16 %v890
        %v1854 = vunpack.c.l.b16 %v891
        %v1855 = vunpack.c.l.b16 %v892
        %v1856 = vunpack.c.l.b16 %v893
        %v1857 = vunpack.c.l.b16 %v894
        %v1858 = vpack.c.b16 %v1475, %v1842
        %v1859 = vpack.c.b16 %v1477, %v1843
        %v1860 = vpack.c.b16 %v1479, %v1844
        %v1861 = vpack.c.b16 %v1481, %v1845
        %v1862 = vpack.c.b16 %v1483, %v1846
        %v1863 = vpack.c.b16 %v1485, %v1847
        %v1864 = vpack.c.b16 %v1487, %v1848
        %v1865 = vpack.c.b16 %v1489, %v1849
        %v1866 = vpack.c.b16 %v1491, %v1850
        %v1867 = vpack.c.b16 %v1493, %v1851
        %v1868 = vpack.c.b16 %v1495, %v1852
        %v1869 = vpack.c.b16 %v1497, %v1853
        %v1870 = vpack.c.b16 %v1499, %v1854
        %v1871 = vpack.c.b16 %v1501, %v1855
        %v1872 = vpack.c.b16 %v1503, %v1856
        %v1873 = vpack.c.b16 %v1505, %v1857
        %v1874 = vrot.slane %v1858, 1
        %v1875 = vrot.slane %v1586, 1
        %v1876 = vsel %vm1361, %v1874, %v1875
        %v1877 = vrot.slane %v1859, 1
        %v1878 = vrot.slane %v1587, 1
        %v1879 = vsel %vm1361, %v1877, %v1878
        %v1880 = vrot.slane %v1860, 1
        %v1881 = vrot.slane %v1588, 1
        %v1882 = vsel %vm1361, %v1880, %v1881
        %v1883 = vrot.slane %v1861, 1
        %v1884 = vrot.slane %v1589, 1
        %v1885 = vsel %vm1361, %v1883, %v1884
        %v1886 = vrot.slane %v1862, 1
        %v1887 = vrot.slane %v1590, 1
        %v1888 = vsel %vm1361, %v1886, %v1887
        %v1889 = vrot.slane %v1863, 1
        %v1890 = vrot.slane %v1591, 1
        %v1891 = vsel %vm1361, %v1889, %v1890
        %v1892 = vrot.slane %v1864, 1
        %v1893 = vrot.slane %v1592, 1
        %v1894 = vsel %vm1361, %v1892, %v1893
        %v1895 = vrot.slane %v1865, 1
        %v1896 = vrot.slane %v1593, 1
        %v1897 = vsel %vm1361, %v1895, %v1896
        %v1898 = vrot.slane %v1866, 1
        %v1899 = vrot.slane %v1594, 1
        %v1900 = vsel %vm1361, %v1898, %v1899
        %v1901 = vrot.slane %v1867, 1
        %v1902 = vrot.slane %v1595, 1
        %v1903 = vsel %vm1361, %v1901, %v1902
        %v1904 = vrot.slane %v1868, 1
        %v1905 = vrot.slane %v1596, 1
        %v1906 = vsel %vm1361, %v1904, %v1905
        %v1907 = vrot.slane %v1869, 1
        %v1908 = vrot.slane %v1597, 1
        %v1909 = vsel %vm1361, %v1907, %v1908
        %v1910 = vrot.slane %v1870, 1
        %v1911 = vrot.slane %v1598, 1
        %v1912 = vsel %vm1361, %v1910, %v1911
        %v1913 = vrot.slane %v1871, 1
        %v1914 = vrot.slane %v1599, 1
        %v1915 = vsel %vm1361, %v1913, %v1914
        %v1916 = vrot.slane %v1872, 1
        %v1917 = vrot.slane %v1600, 1
        %v1918 = vsel %vm1361, %v1916, %v1917
        %v1919 = vrot.slane %v1873, 1
        %v1920 = vrot.slane %v1601, 1
        %v1921 = vsel %vm1361, %v1919, %v1920
        %1922 = vrot.lane.b32.xlu0 %v1876, 40
        %v1923 = vpop.permute.xlu0 %1922
        %1924 = vrot.lane.b32.xlu0 %v1879, 40
        %v1925 = vpop.permute.xlu0 %1924
        %1926 = vrot.lane.b32.xlu0 %v1882, 40
        %v1927 = vpop.permute.xlu0 %1926
        %1928 = vrot.lane.b32.xlu0 %v1885, 40
        %v1929 = vpop.permute.xlu0 %1928
        %1930 = vrot.lane.b32.xlu0 %v1888, 40
        %v1931 = vpop.permute.xlu0 %1930
        %1932 = vrot.lane.b32.xlu0 %v1891, 40
        %v1933 = vpop.permute.xlu0 %1932
        %1934 = vrot.lane.b32.xlu0 %v1894, 40
        %v1935 = vpop.permute.xlu0 %1934
        %1936 = vrot.lane.b32.xlu0 %v1897, 40
        %v1937 = vpop.permute.xlu0 %1936
        %1938 = vrot.lane.b32.xlu0 %v1900, 40
        %v1939 = vpop.permute.xlu0 %1938
        %1940 = vrot.lane.b32.xlu0 %v1903, 40
        %v1941 = vpop.permute.xlu0 %1940
        %1942 = vrot.lane.b32.xlu0 %v1906, 40
        %v1943 = vpop.permute.xlu0 %1942
        %1944 = vrot.lane.b32.xlu0 %v1909, 40
        %v1945 = vpop.permute.xlu0 %1944
        %1946 = vrot.lane.b32.xlu0 %v1912, 40
        %v1947 = vpop.permute.xlu0 %1946
        %1948 = vrot.lane.b32.xlu0 %v1915, 40
        %v1949 = vpop.permute.xlu0 %1948
        %1950 = vrot.lane.b32.xlu0 %v1918, 40
        %v1951 = vpop.permute.xlu0 %1950
        %1952 = vrot.lane.b32.xlu0 %v1921, 40
        %v1953 = vpop.permute.xlu0 %1952
        %v1986 = vunpack.c.l.b16 %v896
        %v1987 = vunpack.c.l.b16 %v897
        %v1988 = vunpack.c.l.b16 %v898
        %v1989 = vunpack.c.l.b16 %v899
        %v1990 = vunpack.c.l.b16 %v900
        %v1991 = vunpack.c.l.b16 %v901
        %v1992 = vunpack.c.l.b16 %v902
        %v1993 = vunpack.c.l.b16 %v903
        %v1994 = vunpack.c.l.b16 %v904
        %v1995 = vunpack.c.l.b16 %v905
        %v1996 = vunpack.c.l.b16 %v906
        %v1997 = vunpack.c.l.b16 %v907
        %v1998 = vunpack.c.l.b16 %v908
        %v1999 = vunpack.c.l.b16 %v909
        %v2000 = vunpack.c.l.b16 %v910
        %v2001 = vunpack.c.l.b16 %v911
        %v2002 = vunpack.c.l.b16 %v912
        %v2003 = vunpack.c.l.b16 %v913
        %v2004 = vunpack.c.l.b16 %v914
        %v2005 = vunpack.c.l.b16 %v915
        %v2006 = vunpack.c.l.b16 %v916
        %v2007 = vunpack.c.l.b16 %v917
        %v2008 = vunpack.c.l.b16 %v918
        %v2009 = vunpack.c.l.b16 %v919
        %v2010 = vunpack.c.l.b16 %v920
        %v2011 = vunpack.c.l.b16 %v921
        %v2012 = vunpack.c.l.b16 %v922
        %v2013 = vunpack.c.l.b16 %v923
        %v2014 = vunpack.c.l.b16 %v924
        %v2015 = vunpack.c.l.b16 %v925
        %v2016 = vunpack.c.l.b16 %v926
        %v2017 = vunpack.c.l.b16 %v927
        %v2018 = vpack.c.b16 %v1987, %v1986
        %v2019 = vpack.c.b16 %v1989, %v1988
        %v2020 = vpack.c.b16 %v1991, %v1990
        %v2021 = vpack.c.b16 %v1993, %v1992
        %v2022 = vpack.c.b16 %v1995, %v1994
        %v2023 = vpack.c.b16 %v1997, %v1996
        %v2024 = vpack.c.b16 %v1999, %v1998
        %v2025 = vpack.c.b16 %v2001, %v2000
        %v2026 = vpack.c.b16 %v2003, %v2002
        %v2027 = vpack.c.b16 %v2005, %v2004
        %v2028 = vpack.c.b16 %v2007, %v2006
        %v2029 = vpack.c.b16 %v2009, %v2008
        %v2030 = vpack.c.b16 %v2011, %v2010
        %v2031 = vpack.c.b16 %v2013, %v2012
        %v2032 = vpack.c.b16 %v2015, %v2014
        %v2033 = vpack.c.b16 %v2017, %v2016
        %2034 = vrot.lane.b32.xlu0 %v2018, 48
        %v2035 = vpop.permute.xlu0 %2034
        %2036 = vrot.lane.b32.xlu0 %v2019, 48
        %v2037 = vpop.permute.xlu0 %2036
        %2038 = vrot.lane.b32.xlu0 %v2020, 48
        %v2039 = vpop.permute.xlu0 %2038
        %2040 = vrot.lane.b32.xlu0 %v2021, 48
        %v2041 = vpop.permute.xlu0 %2040
        %2042 = vrot.lane.b32.xlu0 %v2022, 48
        %v2043 = vpop.permute.xlu0 %2042
        %2044 = vrot.lane.b32.xlu0 %v2023, 48
        %v2045 = vpop.permute.xlu0 %2044
        %2046 = vrot.lane.b32.xlu0 %v2024, 48
        %v2047 = vpop.permute.xlu0 %2046
        %2048 = vrot.lane.b32.xlu0 %v2025, 48
        %v2049 = vpop.permute.xlu0 %2048
        %2050 = vrot.lane.b32.xlu0 %v2026, 48
        %v2051 = vpop.permute.xlu0 %2050
        %2052 = vrot.lane.b32.xlu0 %v2027, 48
        %v2053 = vpop.permute.xlu0 %2052
        %2054 = vrot.lane.b32.xlu0 %v2028, 48
        %v2055 = vpop.permute.xlu0 %2054
        %2056 = vrot.lane.b32.xlu0 %v2029, 48
        %v2057 = vpop.permute.xlu0 %2056
        %2058 = vrot.lane.b32.xlu0 %v2030, 48
        %v2059 = vpop.permute.xlu0 %2058
        %2060 = vrot.lane.b32.xlu0 %v2031, 48
        %v2061 = vpop.permute.xlu0 %2060
        %2062 = vrot.lane.b32.xlu0 %v2032, 48
        %v2063 = vpop.permute.xlu0 %2062
        %2064 = vrot.lane.b32.xlu0 %v2033, 48
        %v2065 = vpop.permute.xlu0 %2064
        %v2082 = vunpack.c.l.b16 %v928
        %v2083 = vunpack.c.l.b16 %v929
        %v2084 = vunpack.c.l.b16 %v930
        %v2085 = vunpack.c.l.b16 %v931
        %v2086 = vunpack.c.l.b16 %v932
        %v2087 = vunpack.c.l.b16 %v933
        %v2088 = vunpack.c.l.b16 %v934
        %v2089 = vunpack.c.l.b16 %v935
        %v2090 = vunpack.c.l.b16 %v936
        %v2091 = vunpack.c.l.b16 %v937
        %v2092 = vunpack.c.l.b16 %v938
        %v2093 = vunpack.c.l.b16 %v939
        %v2094 = vunpack.c.l.b16 %v940
        %v2095 = vunpack.c.l.b16 %v941
        %v2096 = vunpack.c.l.b16 %v942
        %v2097 = vunpack.c.l.b16 %v943
        %v2098 = vpack.c.b16 %v2082, %v2082
        %v2099 = vpack.c.b16 %v2083, %v2083
        %v2100 = vpack.c.b16 %v2084, %v2084
        %v2101 = vpack.c.b16 %v2085, %v2085
        %v2102 = vpack.c.b16 %v2086, %v2086
        %v2103 = vpack.c.b16 %v2087, %v2087
        %v2104 = vpack.c.b16 %v2088, %v2088
        %v2105 = vpack.c.b16 %v2089, %v2089
        %v2106 = vpack.c.b16 %v2090, %v2090
        %v2107 = vpack.c.b16 %v2091, %v2091
        %v2108 = vpack.c.b16 %v2092, %v2092
        %v2109 = vpack.c.b16 %v2093, %v2093
        %v2110 = vpack.c.b16 %v2094, %v2094
        %v2111 = vpack.c.b16 %v2095, %v2095
        %v2112 = vpack.c.b16 %v2096, %v2096
        %v2113 = vpack.c.b16 %v2097, %v2097
        %v2115 = vshrl.u32 %v2018, 16
        %v2117 = vshll.u32 %v2018, 16
        %v2119 = vrot.slane %v2117, 1
        %v2120 = vor.u32 %v2115, %v2119
        %v2122 = vshll.u32 %v2098, 16
        %v2124 = vrot.slane %v2122, 1
        %v2125 = vsel %vm1088, %v2120, %v2124
        %v2127 = vshrl.u32 %v2019, 16
        %v2129 = vshll.u32 %v2019, 16
        %v2131 = vrot.slane %v2129, 1
        %v2132 = vor.u32 %v2127, %v2131
        %v2134 = vshll.u32 %v2099, 16
        %v2136 = vrot.slane %v2134, 1
        %v2137 = vsel %vm1088, %v2132, %v2136
        %v2139 = vshrl.u32 %v2020, 16
        %v2141 = vshll.u32 %v2020, 16
        %v2143 = vrot.slane %v2141, 1
        %v2144 = vor.u32 %v2139, %v2143
        %v2146 = vshll.u32 %v2100, 16
        %v2148 = vrot.slane %v2146, 1
        %v2149 = vsel %vm1088, %v2144, %v2148
        %v2151 = vshrl.u32 %v2021, 16
        %v2153 = vshll.u32 %v2021, 16
        %v2155 = vrot.slane %v2153, 1
        %v2156 = vor.u32 %v2151, %v2155
        %v2158 = vshll.u32 %v2101, 16
        %v2160 = vrot.slane %v2158, 1
        %v2161 = vsel %vm1088, %v2156, %v2160
        %v2163 = vshrl.u32 %v2022, 16
        %v2165 = vshll.u32 %v2022, 16
        %v2167 = vrot.slane %v2165, 1
        %v2168 = vor.u32 %v2163, %v2167
        %v2170 = vshll.u32 %v2102, 16
        %v2172 = vrot.slane %v2170, 1
        %v2173 = vsel %vm1088, %v2168, %v2172
        %v2175 = vshrl.u32 %v2023, 16
        %v2177 = vshll.u32 %v2023, 16
        %v2179 = vrot.slane %v2177, 1
        %v2180 = vor.u32 %v2175, %v2179
        %v2182 = vshll.u32 %v2103, 16
        %v2184 = vrot.slane %v2182, 1
        %v2185 = vsel %vm1088, %v2180, %v2184
        %v2187 = vshrl.u32 %v2024, 16
        %v2189 = vshll.u32 %v2024, 16
        %v2191 = vrot.slane %v2189, 1
        %v2192 = vor.u32 %v2187, %v2191
        %v2194 = vshll.u32 %v2104, 16
        %v2196 = vrot.slane %v2194, 1
        %v2197 = vsel %vm1088, %v2192, %v2196
        %v2199 = vshrl.u32 %v2025, 16
        %v2201 = vshll.u32 %v2025, 16
        %v2203 = vrot.slane %v2201, 1
        %v2204 = vor.u32 %v2199, %v2203
        %v2206 = vshll.u32 %v2105, 16
        %v2208 = vrot.slane %v2206, 1
        %v2209 = vsel %vm1088, %v2204, %v2208
        %v2211 = vshrl.u32 %v2026, 16
        %v2213 = vshll.u32 %v2026, 16
        %v2215 = vrot.slane %v2213, 1
        %v2216 = vor.u32 %v2211, %v2215
        %v2218 = vshll.u32 %v2106, 16
        %v2220 = vrot.slane %v2218, 1
        %v2221 = vsel %vm1088, %v2216, %v2220
        %v2223 = vshrl.u32 %v2027, 16
        %v2225 = vshll.u32 %v2027, 16
        %v2227 = vrot.slane %v2225, 1
        %v2228 = vor.u32 %v2223, %v2227
        %v2230 = vshll.u32 %v2107, 16
        %v2232 = vrot.slane %v2230, 1
        %v2233 = vsel %vm1088, %v2228, %v2232
        %v2235 = vshrl.u32 %v2028, 16
        %v2237 = vshll.u32 %v2028, 16
        %v2239 = vrot.slane %v2237, 1
        %v2240 = vor.u32 %v2235, %v2239
        %v2242 = vshll.u32 %v2108, 16
        %v2244 = vrot.slane %v2242, 1
        %v2245 = vsel %vm1088, %v2240, %v2244
        %v2247 = vshrl.u32 %v2029, 16
        %v2249 = vshll.u32 %v2029, 16
        %v2251 = vrot.slane %v2249, 1
        %v2252 = vor.u32 %v2247, %v2251
        %v2254 = vshll.u32 %v2109, 16
        %v2256 = vrot.slane %v2254, 1
        %v2257 = vsel %vm1088, %v2252, %v2256
        %v2259 = vshrl.u32 %v2030, 16
        %v2261 = vshll.u32 %v2030, 16
        %v2263 = vrot.slane %v2261, 1
        %v2264 = vor.u32 %v2259, %v2263
        %v2266 = vshll.u32 %v2110, 16
        %v2268 = vrot.slane %v2266, 1
        %v2269 = vsel %vm1088, %v2264, %v2268
        %v2271 = vshrl.u32 %v2031, 16
        %v2273 = vshll.u32 %v2031, 16
        %v2275 = vrot.slane %v2273, 1
        %v2276 = vor.u32 %v2271, %v2275
        %v2278 = vshll.u32 %v2111, 16
        %v2280 = vrot.slane %v2278, 1
        %v2281 = vsel %vm1088, %v2276, %v2280
        %v2283 = vshrl.u32 %v2032, 16
        %v2285 = vshll.u32 %v2032, 16
        %v2287 = vrot.slane %v2285, 1
        %v2288 = vor.u32 %v2283, %v2287
        %v2290 = vshll.u32 %v2112, 16
        %v2292 = vrot.slane %v2290, 1
        %v2293 = vsel %vm1088, %v2288, %v2292
        %v2295 = vshrl.u32 %v2033, 16
        %v2297 = vshll.u32 %v2033, 16
        %v2299 = vrot.slane %v2297, 1
        %v2300 = vor.u32 %v2295, %v2299
        %v2302 = vshll.u32 %v2113, 16
        %v2304 = vrot.slane %v2302, 1
        %v2305 = vsel %vm1088, %v2300, %v2304
        %2306 = vrot.lane.b32.xlu0 %v2125, 56
        %v2307 = vpop.permute.xlu0 %2306
        %2308 = vrot.lane.b32.xlu0 %v2137, 56
        %v2309 = vpop.permute.xlu0 %2308
        %2310 = vrot.lane.b32.xlu0 %v2149, 56
        %v2311 = vpop.permute.xlu0 %2310
        %2312 = vrot.lane.b32.xlu0 %v2161, 56
        %v2313 = vpop.permute.xlu0 %2312
        %2314 = vrot.lane.b32.xlu0 %v2173, 56
        %v2315 = vpop.permute.xlu0 %2314
        %2316 = vrot.lane.b32.xlu0 %v2185, 56
        %v2317 = vpop.permute.xlu0 %2316
        %2318 = vrot.lane.b32.xlu0 %v2197, 56
        %v2319 = vpop.permute.xlu0 %2318
        %2320 = vrot.lane.b32.xlu0 %v2209, 56
        %v2321 = vpop.permute.xlu0 %2320
        %2322 = vrot.lane.b32.xlu0 %v2221, 56
        %v2323 = vpop.permute.xlu0 %2322
        %2324 = vrot.lane.b32.xlu0 %v2233, 56
        %v2325 = vpop.permute.xlu0 %2324
        %2326 = vrot.lane.b32.xlu0 %v2245, 56
        %v2327 = vpop.permute.xlu0 %2326
        %2328 = vrot.lane.b32.xlu0 %v2257, 56
        %v2329 = vpop.permute.xlu0 %2328
        %2330 = vrot.lane.b32.xlu0 %v2269, 56
        %v2331 = vpop.permute.xlu0 %2330
        %2332 = vrot.lane.b32.xlu0 %v2281, 56
        %v2333 = vpop.permute.xlu0 %2332
        %2334 = vrot.lane.b32.xlu0 %v2293, 56
        %v2335 = vpop.permute.xlu0 %2334
        %2336 = vrot.lane.b32.xlu0 %v2305, 56
        %v2337 = vpop.permute.xlu0 %2336
        %v2354 = vunpack.c.l.b16 %v944
        %v2355 = vunpack.c.l.b16 %v945
        %v2356 = vunpack.c.l.b16 %v946
        %v2357 = vunpack.c.l.b16 %v947
        %v2358 = vunpack.c.l.b16 %v948
        %v2359 = vunpack.c.l.b16 %v949
        %v2360 = vunpack.c.l.b16 %v950
        %v2361 = vunpack.c.l.b16 %v951
        %v2362 = vunpack.c.l.b16 %v952
        %v2363 = vunpack.c.l.b16 %v953
        %v2364 = vunpack.c.l.b16 %v954
        %v2365 = vunpack.c.l.b16 %v955
        %v2366 = vunpack.c.l.b16 %v956
        %v2367 = vunpack.c.l.b16 %v957
        %v2368 = vunpack.c.l.b16 %v958
        %v2369 = vunpack.c.l.b16 %v959
        %v2370 = vpack.c.b16 %v1987, %v2354
        %v2371 = vpack.c.b16 %v1989, %v2355
        %v2372 = vpack.c.b16 %v1991, %v2356
        %v2373 = vpack.c.b16 %v1993, %v2357
        %v2374 = vpack.c.b16 %v1995, %v2358
        %v2375 = vpack.c.b16 %v1997, %v2359
        %v2376 = vpack.c.b16 %v1999, %v2360
        %v2377 = vpack.c.b16 %v2001, %v2361
        %v2378 = vpack.c.b16 %v2003, %v2362
        %v2379 = vpack.c.b16 %v2005, %v2363
        %v2380 = vpack.c.b16 %v2007, %v2364
        %v2381 = vpack.c.b16 %v2009, %v2365
        %v2382 = vpack.c.b16 %v2011, %v2366
        %v2383 = vpack.c.b16 %v2013, %v2367
        %v2384 = vpack.c.b16 %v2015, %v2368
        %v2385 = vpack.c.b16 %v2017, %v2369
        %v2386 = vrot.slane %v2370, 1
        %v2387 = vrot.slane %v2098, 1
        %v2388 = vsel %vm1361, %v2386, %v2387
        %v2389 = vrot.slane %v2371, 1
        %v2390 = vrot.slane %v2099, 1
        %v2391 = vsel %vm1361, %v2389, %v2390
        %v2392 = vrot.slane %v2372, 1
        %v2393 = vrot.slane %v2100, 1
        %v2394 = vsel %vm1361, %v2392, %v2393
        %v2395 = vrot.slane %v2373, 1
        %v2396 = vrot.slane %v2101, 1
        %v2397 = vsel %vm1361, %v2395, %v2396
        %v2398 = vrot.slane %v2374, 1
        %v2399 = vrot.slane %v2102, 1
        %v2400 = vsel %vm1361, %v2398, %v2399
        %v2401 = vrot.slane %v2375, 1
        %v2402 = vrot.slane %v2103, 1
        %v2403 = vsel %vm1361, %v2401, %v2402
        %v2404 = vrot.slane %v2376, 1
        %v2405 = vrot.slane %v2104, 1
        %v2406 = vsel %vm1361, %v2404, %v2405
        %v2407 = vrot.slane %v2377, 1
        %v2408 = vrot.slane %v2105, 1
        %v2409 = vsel %vm1361, %v2407, %v2408
        %v2410 = vrot.slane %v2378, 1
        %v2411 = vrot.slane %v2106, 1
        %v2412 = vsel %vm1361, %v2410, %v2411
        %v2413 = vrot.slane %v2379, 1
        %v2414 = vrot.slane %v2107, 1
        %v2415 = vsel %vm1361, %v2413, %v2414
        %v2416 = vrot.slane %v2380, 1
        %v2417 = vrot.slane %v2108, 1
        %v2418 = vsel %vm1361, %v2416, %v2417
        %v2419 = vrot.slane %v2381, 1
        %v2420 = vrot.slane %v2109, 1
        %v2421 = vsel %vm1361, %v2419, %v2420
        %v2422 = vrot.slane %v2382, 1
        %v2423 = vrot.slane %v2110, 1
        %v2424 = vsel %vm1361, %v2422, %v2423
        %v2425 = vrot.slane %v2383, 1
        %v2426 = vrot.slane %v2111, 1
        %v2427 = vsel %vm1361, %v2425, %v2426
        %v2428 = vrot.slane %v2384, 1
        %v2429 = vrot.slane %v2112, 1
        %v2430 = vsel %vm1361, %v2428, %v2429
        %v2431 = vrot.slane %v2385, 1
        %v2432 = vrot.slane %v2113, 1
        %v2433 = vsel %vm1361, %v2431, %v2432
        %2434 = vrot.lane.b32.xlu0 %v2388, 64
        %v2435 = vpop.permute.xlu0 %2434
        %2436 = vrot.lane.b32.xlu0 %v2391, 64
        %v2437 = vpop.permute.xlu0 %2436
        %2438 = vrot.lane.b32.xlu0 %v2394, 64
        %v2439 = vpop.permute.xlu0 %2438
        %2440 = vrot.lane.b32.xlu0 %v2397, 64
        %v2441 = vpop.permute.xlu0 %2440
        %2442 = vrot.lane.b32.xlu0 %v2400, 64
        %v2443 = vpop.permute.xlu0 %2442
        %2444 = vrot.lane.b32.xlu0 %v2403, 64
        %v2445 = vpop.permute.xlu0 %2444
        %2446 = vrot.lane.b32.xlu0 %v2406, 64
        %v2447 = vpop.permute.xlu0 %2446
        %2448 = vrot.lane.b32.xlu0 %v2409, 64
        %v2449 = vpop.permute.xlu0 %2448
        %2450 = vrot.lane.b32.xlu0 %v2412, 64
        %v2451 = vpop.permute.xlu0 %2450
        %2452 = vrot.lane.b32.xlu0 %v2415, 64
        %v2453 = vpop.permute.xlu0 %2452
        %2454 = vrot.lane.b32.xlu0 %v2418, 64
        %v2455 = vpop.permute.xlu0 %2454
        %2456 = vrot.lane.b32.xlu0 %v2421, 64
        %v2457 = vpop.permute.xlu0 %2456
        %2458 = vrot.lane.b32.xlu0 %v2424, 64
        %v2459 = vpop.permute.xlu0 %2458
        %2460 = vrot.lane.b32.xlu0 %v2427, 64
        %v2461 = vpop.permute.xlu0 %2460
        %2462 = vrot.lane.b32.xlu0 %v2430, 64
        %v2463 = vpop.permute.xlu0 %2462
        %2464 = vrot.lane.b32.xlu0 %v2433, 64
        %v2465 = vpop.permute.xlu0 %2464
        %vm2466 = vcmask 64512
        %v2468 = vsel %vm2466, %v1024, %v1282
        %v2470 = vsel %vm2466, %v1025, %v1284
        %v2472 = vsel %vm2466, %v1026, %v1286
        %v2474 = vsel %vm2466, %v1027, %v1288
        %v2476 = vsel %vm2466, %v1028, %v1290
        %v2478 = vsel %vm2466, %v1029, %v1292
        %v2480 = vsel %vm2466, %v1030, %v1294
        %v2482 = vsel %vm2466, %v1031, %v1296
        %v2484 = vsel %vm2466, %v1032, %v1298
        %v2486 = vsel %vm2466, %v1033, %v1300
        %v2488 = vsel %vm2466, %v1034, %v1302
        %v2490 = vsel %vm2466, %v1035, %v1304
        %v2492 = vsel %vm2466, %v1036, %v1306
        %v2494 = vsel %vm2466, %v1037, %v1308
        %v2496 = vsel %vm2466, %v1038, %v1310
        %v2498 = vsel %vm2466, %v1039, %v1312
        %vm2499 = vcmask 130048
        %v2501 = vsel %vm2499, %v2468, %v1411
        %v2503 = vsel %vm2499, %v2470, %v1413
        %v2505 = vsel %vm2499, %v2472, %v1415
        %v2507 = vsel %vm2499, %v2474, %v1417
        %v2509 = vsel %vm2499, %v2476, %v1419
        %v2511 = vsel %vm2499, %v2478, %v1421
        %v2513 = vsel %vm2499, %v2480, %v1423
        %v2515 = vsel %vm2499, %v2482, %v1425
        %v2517 = vsel %vm2499, %v2484, %v1427
        %v2519 = vsel %vm2499, %v2486, %v1429
        %v2521 = vsel %vm2499, %v2488, %v1431
        %v2523 = vsel %vm2499, %v2490, %v1433
        %v2525 = vsel %vm2499, %v2492, %v1435
        %v2527 = vsel %vm2499, %v2494, %v1437
        %v2529 = vsel %vm2499, %v2496, %v1439
        %v2531 = vsel %vm2499, %v2498, %v1441
        %vm2532 = vcmask 195584
        %v2534 = vsel %vm2532, %v2501, %v1523
        %v2536 = vsel %vm2532, %v2503, %v1525
        %v2538 = vsel %vm2532, %v2505, %v1527
        %v2540 = vsel %vm2532, %v2507, %v1529
        %v2542 = vsel %vm2532, %v2509, %v1531
        %v2544 = vsel %vm2532, %v2511, %v1533
        %v2546 = vsel %vm2532, %v2513, %v1535
        %v2548 = vsel %vm2532, %v2515, %v1537
        %v2550 = vsel %vm2532, %v2517, %v1539
        %v2552 = vsel %vm2532, %v2519, %v1541
        %v2554 = vsel %vm2532, %v2521, %v1543
        %v2556 = vsel %vm2532, %v2523, %v1545
        %v2558 = vsel %vm2532, %v2525, %v1547
        %v2560 = vsel %vm2532, %v2527, %v1549
        %v2562 = vsel %vm2532, %v2529, %v1551
        %v2564 = vsel %vm2532, %v2531, %v1553
        %vm2565 = vcmask 261120
        %v2567 = vsel %vm2565, %v2534, %v1795
        %v2569 = vsel %vm2565, %v2536, %v1797
        %v2571 = vsel %vm2565, %v2538, %v1799
        %v2573 = vsel %vm2565, %v2540, %v1801
        %v2575 = vsel %vm2565, %v2542, %v1803
        %v2577 = vsel %vm2565, %v2544, %v1805
        %v2579 = vsel %vm2565, %v2546, %v1807
        %v2581 = vsel %vm2565, %v2548, %v1809
        %v2583 = vsel %vm2565, %v2550, %v1811
        %v2585 = vsel %vm2565, %v2552, %v1813
        %v2587 = vsel %vm2565, %v2554, %v1815
        %v2589 = vsel %vm2565, %v2556, %v1817
        %v2591 = vsel %vm2565, %v2558, %v1819
        %v2593 = vsel %vm2565, %v2560, %v1821
        %v2595 = vsel %vm2565, %v2562, %v1823
        %v2597 = vsel %vm2565, %v2564, %v1825
        %vm2598 = vcmask 326656
        %v2600 = vsel %vm2598, %v2567, %v1923
        %v2602 = vsel %vm2598, %v2569, %v1925
        %v2604 = vsel %vm2598, %v2571, %v1927
        %v2606 = vsel %vm2598, %v2573, %v1929
        %v2608 = vsel %vm2598, %v2575, %v1931
        %v2610 = vsel %vm2598, %v2577, %v1933
        %v2612 = vsel %vm2598, %v2579, %v1935
        %v2614 = vsel %vm2598, %v2581, %v1937
        %v2616 = vsel %vm2598, %v2583, %v1939
        %v2618 = vsel %vm2598, %v2585, %v1941
        %v2620 = vsel %vm2598, %v2587, %v1943
        %v2622 = vsel %vm2598, %v2589, %v1945
        %v2624 = vsel %vm2598, %v2591, %v1947
        %v2626 = vsel %vm2598, %v2593, %v1949
        %v2628 = vsel %vm2598, %v2595, %v1951
        %v2630 = vsel %vm2598, %v2597, %v1953
        %vm2631 = vcmask 392192
        %v2633 = vsel %vm2631, %v2600, %v2035
        %v2635 = vsel %vm2631, %v2602, %v2037
        %v2637 = vsel %vm2631, %v2604, %v2039
        %v2639 = vsel %vm2631, %v2606, %v2041
        %v2641 = vsel %vm2631, %v2608, %v2043
        %v2643 = vsel %vm2631, %v2610, %v2045
        %v2645 = vsel %vm2631, %v2612, %v2047
        %v2647 = vsel %vm2631, %v2614, %v2049
        %v2649 = vsel %vm2631, %v2616, %v2051
        %v2651 = vsel %vm2631, %v2618, %v2053
        %v2653 = vsel %vm2631, %v2620, %v2055
        %v2655 = vsel %vm2631, %v2622, %v2057
        %v2657 = vsel %vm2631, %v2624, %v2059
        %v2659 = vsel %vm2631, %v2626, %v2061
        %v2661 = vsel %vm2631, %v2628, %v2063
        %v2663 = vsel %vm2631, %v2630, %v2065
        %vm2664 = vcmask 457728
        %v2666 = vsel %vm2664, %v2633, %v2307
        %v2668 = vsel %vm2664, %v2635, %v2309
        %v2670 = vsel %vm2664, %v2637, %v2311
        %v2672 = vsel %vm2664, %v2639, %v2313
        %v2674 = vsel %vm2664, %v2641, %v2315
        %v2676 = vsel %vm2664, %v2643, %v2317
        %v2678 = vsel %vm2664, %v2645, %v2319
        %v2680 = vsel %vm2664, %v2647, %v2321
        %v2682 = vsel %vm2664, %v2649, %v2323
        %v2684 = vsel %vm2664, %v2651, %v2325
        %v2686 = vsel %vm2664, %v2653, %v2327
        %v2688 = vsel %vm2664, %v2655, %v2329
        %v2690 = vsel %vm2664, %v2657, %v2331
        %v2692 = vsel %vm2664, %v2659, %v2333
        %v2694 = vsel %vm2664, %v2661, %v2335
        %v2696 = vsel %vm2664, %v2663, %v2337
        %vm2697 = vcmask 523264
        %v2699 = vsel %vm2697, %v2666, %v2435
        %v2701 = vsel %vm2697, %v2668, %v2437
        %v2703 = vsel %vm2697, %v2670, %v2439
        %v2705 = vsel %vm2697, %v2672, %v2441
        %v2707 = vsel %vm2697, %v2674, %v2443
        %v2709 = vsel %vm2697, %v2676, %v2445
        %v2711 = vsel %vm2697, %v2678, %v2447
        %v2713 = vsel %vm2697, %v2680, %v2449
        %v2715 = vsel %vm2697, %v2682, %v2451
        %v2717 = vsel %vm2697, %v2684, %v2453
        %v2719 = vsel %vm2697, %v2686, %v2455
        %v2721 = vsel %vm2697, %v2688, %v2457
        %v2723 = vsel %vm2697, %v2690, %v2459
        %v2725 = vsel %vm2697, %v2692, %v2461
        %v2727 = vsel %vm2697, %v2694, %v2463
        %v2729 = vsel %vm2697, %v2696, %v2465
        %v2730 = vld [vmem:[%s1] sm:$0xf]
        %v2731 = vld [vmem:[%s1 + $0x4] sm:$0xf]
        %v2732 = vld [vmem:[%s1 + $0x8] sm:$0xf]
        %v2733 = vld [vmem:[%s1 + $0xc] sm:$0xf]
        %v2734 = vld [vmem:[%s1 + $0x10] sm:$0xf]
        %v2735 = vld [vmem:[%s1 + $0x14] sm:$0xf]
        %v2736 = vld [vmem:[%s1 + $0x18] sm:$0xf]
        %v2737 = vld [vmem:[%s1 + $0x1c] sm:$0xf]
        %v2738 = vld [vmem:[%s1 + $0x20] sm:$0xf]
        %v2739 = vld [vmem:[%s2] sm:$0x1]
        %v2741 = vlaneseq
        %v2742 = vshrl.u32 %v2741, 7
        %v2743 = vsub.s32 0, %v2742
        %v2744 = vrot.slane %v2739, %v2743
        %v2755 = vunpack.c.l.b16 %v2730
        %v2756 = vunpack.c.l.b16 %v2731
        %v2757 = vunpack.c.l.b16 %v2732
        %v2758 = vunpack.c.l.b16 %v2733
        %v2759 = vunpack.c.l.b16 %v2734
        %v2760 = vunpack.c.l.b16 %v2735
        %v2761 = vunpack.c.l.b16 %v2736
        %v2762 = vunpack.c.l.b16 %v2737
        %v2763 = vunpack.c.l.b16 %v2738
        %v2764 = vpack.c.b16 %v2756, %v2755
        %v2765 = vpack.c.b16 %v2758, %v2757
        %v2766 = vpack.c.b16 %v2760, %v2759
        %v2767 = vpack.c.b16 %v2762, %v2761
        %v2768 = vpack.c.b16 %v2763, %v2763
        %vm2773 = vcmask 588800
        %v2774 = vsel %vm2773, %v2699, 0
        %v2776 = vsel %vm2773, %v2701, 0
        %v2778 = vsel %vm2773, %v2703, 0
        %v2780 = vsel %vm2773, %v2705, 0
        %v2782 = vsel %vm2773, %v2707, 0
        %v2784 = vsel %vm2773, %v2709, 0
        %v2786 = vsel %vm2773, %v2711, 0
        %v2788 = vsel %vm2773, %v2713, 0
        %v2790 = vsel %vm2773, %v2715, 0
        %v2792 = vsel %vm2773, %v2717, 0
        %v2794 = vsel %vm2773, %v2719, 0
        %v2796 = vsel %vm2773, %v2721, 0
        %v2798 = vsel %vm2773, %v2723, 0
        %v2800 = vsel %vm2773, %v2725, 0
        %v2802 = vsel %vm2773, %v2727, 0
        %v2804 = vsel %vm2773, %v2729, 0
        %vm2806 = vcmask 1043456
        %v2808 = vsel %vm2806, %v2768, 0
        %2810 = vmatprep.subr.bf16.mxu0 0
        %2811 = vmatpush1.bf16.msra.mxu0 %v2764
        %2812 = vmatprep.subr.bf16.mxu0 0
        %2813 = vmatpush1.bf16.msra.mxu0 %v2765
        %2814 = vmatprep.subr.bf16.mxu0 0
        %2815 = vmatpush1.bf16.msra.mxu0 %v2766
        %2816 = vmatprep.subr.bf16.mxu0 0
        %2817 = vmatpush1.bf16.msra.mxu0 %v2767
        %2818 = vmatprep.subr.bf16.mxu0 0
        %2819 = vmatpush1.bf16.msra.mxu0 %v2808
        %2820 = vmatprep.subr.bf16.mxu0 0
        %2821 = vmatpush1.bf16.msra.mxu0 0
        %2822 = vmatprep.subr.bf16.mxu0 0
        %2823 = vmatpush1.bf16.msra.mxu0 0
        %2824 = vmatprep.subr.bf16.mxu0 0
        %2825 = vmatpush1.bf16.msra.mxu0 0
        %2826 = vmatprep.subr.bf16.mxu0 0
        %2827 = vmatpush1.bf16.msra.mxu0 0
        %2828 = vmatprep.subr.bf16.mxu0 0
        %2829 = vmatpush1.bf16.msra.mxu0 0
        %2830 = vmatprep.subr.bf16.mxu0 0
        %2831 = vmatpush1.bf16.msra.mxu0 0
        %2832 = vmatprep.subr.bf16.mxu0 0
        %2833 = vmatpush1.bf16.msra.mxu0 0
        %2834 = vmatprep.subr.bf16.mxu0 0
        %2835 = vmatpush1.bf16.msra.mxu0 0
        %2836 = vmatprep.subr.bf16.mxu0 0
        %2837 = vmatpush1.bf16.msra.mxu0 0
        %2838 = vmatprep.subr.bf16.mxu0 0
        %2839 = vmatpush1.bf16.msra.mxu0 0
        %2840 = vmatprep.subr.bf16.mxu0 0
        %2841 = vmatpush1.bf16.msra.mxu0 0
        %2842 = vmatprep.mubr.bf16.mxu0 0
        %2843 = vmatmul.mubr.bf16.gmra.mrb[0].mxu0 %v2774
        %v2844 = vpop.f32.mrb[0].mxu0
        %v2845 = vadd.f32 %v2744, %v2844
        %v2846 = vpop.f32.mrb[0].mxu0
        %v2847 = vpop.f32.mrb[0].mxu0
        %v2848 = vadd.f32 %v2744, %v2847
        %v2849 = vpop.f32.mrb[0].mxu0
        %2850 = vmatprep.mubr.bf16.mxu0 0
        %2851 = vmatmul.mubr.bf16.gmra.mrb[0].mxu0 %v2776
        %v2852 = vpop.f32.mrb[0].mxu0
        %v2853 = vadd.f32 %v2744, %v2852
        %v2854 = vpop.f32.mrb[0].mxu0
        %v2855 = vpop.f32.mrb[0].mxu0
        %v2856 = vadd.f32 %v2744, %v2855
        %v2857 = vpop.f32.mrb[0].mxu0
        %2858 = vmatprep.mubr.bf16.mxu0 0
        %2859 = vmatmul.mubr.bf16.gmra.mrb[0].mxu0 %v2778
        %v2860 = vpop.f32.mrb[0].mxu0
        %v2861 = vadd.f32 %v2744, %v2860
        %v2862 = vpop.f32.mrb[0].mxu0
        %v2863 = vpop.f32.mrb[0].mxu0
        %v2864 = vadd.f32 %v2744, %v2863
        %v2865 = vpop.f32.mrb[0].mxu0
        %2866 = vmatprep.mubr.bf16.mxu0 0
        %2867 = vmatmul.mubr.bf16.gmra.mrb[0].mxu0 %v2780
        %v2868 = vpop.f32.mrb[0].mxu0
        %v2869 = vadd.f32 %v2744, %v2868
        %v2870 = vpop.f32.mrb[0].mxu0
        %v2871 = vpop.f32.mrb[0].mxu0
        %v2872 = vadd.f32 %v2744, %v2871
        %v2873 = vpop.f32.mrb[0].mxu0
        %2874 = vmatprep.mubr.bf16.mxu0 0
        %2875 = vmatmul.mubr.bf16.gmra.mrb[0].mxu0 %v2782
        %v2876 = vpop.f32.mrb[0].mxu0
        %v2877 = vadd.f32 %v2744, %v2876
        %v2878 = vpop.f32.mrb[0].mxu0
        %v2879 = vpop.f32.mrb[0].mxu0
        %v2880 = vadd.f32 %v2744, %v2879
        %v2881 = vpop.f32.mrb[0].mxu0
        %2882 = vmatprep.mubr.bf16.mxu0 0
        %2883 = vmatmul.mubr.bf16.gmra.mrb[0].mxu0 %v2784
        %v2884 = vpop.f32.mrb[0].mxu0
        %v2885 = vadd.f32 %v2744, %v2884
        %v2886 = vpop.f32.mrb[0].mxu0
        %v2887 = vpop.f32.mrb[0].mxu0
        %v2888 = vadd.f32 %v2744, %v2887
        %v2889 = vpop.f32.mrb[0].mxu0
        %2890 = vmatprep.mubr.bf16.mxu0 0
        %2891 = vmatmul.mubr.bf16.gmra.mrb[0].mxu0 %v2786
        %v2892 = vpop.f32.mrb[0].mxu0
        %v2893 = vadd.f32 %v2744, %v2892
        %v2894 = vpop.f32.mrb[0].mxu0
        %v2895 = vpop.f32.mrb[0].mxu0
        %v2896 = vadd.f32 %v2744, %v2895
        %v2897 = vpop.f32.mrb[0].mxu0
        %2898 = vmatprep.mubr.bf16.mxu0 0
        %2899 = vmatmul.mubr.bf16.gmra.mrb[0].mxu0 %v2788
        %v2900 = vpop.f32.mrb[0].mxu0
        %v2901 = vadd.f32 %v2744, %v2900
        %v2902 = vpop.f32.mrb[0].mxu0
        %v2903 = vpop.f32.mrb[0].mxu0
        %v2904 = vadd.f32 %v2744, %v2903
        %v2905 = vpop.f32.mrb[0].mxu0
        %2906 = vmatprep.mubr.bf16.mxu0 0
        %2907 = vmatmul.mubr.bf16.gmra.mrb[0].mxu0 %v2790
        %v2908 = vpop.f32.mrb[0].mxu0
        %v2909 = vadd.f32 %v2744, %v2908
        %v2910 = vpop.f32.mrb[0].mxu0
        %v2911 = vpop.f32.mrb[0].mxu0
        %v2912 = vadd.f32 %v2744, %v2911
        %v2913 = vpop.f32.mrb[0].mxu0
        %2914 = vmatprep.mubr.bf16.mxu0 0
        %2915 = vmatmul.mubr.bf16.gmra.mrb[0].mxu0 %v2792
        %v2916 = vpop.f32.mrb[0].mxu0
        %v2917 = vadd.f32 %v2744, %v2916
        %v2918 = vpop.f32.mrb[0].mxu0
        %v2919 = vpop.f32.mrb[0].mxu0
        %v2920 = vadd.f32 %v2744, %v2919
        %v2921 = vpop.f32.mrb[0].mxu0
        %2922 = vmatprep.mubr.bf16.mxu0 0
        %2923 = vmatmul.mubr.bf16.gmra.mrb[0].mxu0 %v2794
        %v2924 = vpop.f32.mrb[0].mxu0
        %v2925 = vadd.f32 %v2744, %v2924
        %v2926 = vpop.f32.mrb[0].mxu0
        %v2927 = vpop.f32.mrb[0].mxu0
        %v2928 = vadd.f32 %v2744, %v2927
        %v2929 = vpop.f32.mrb[0].mxu0
        %2930 = vmatprep.mubr.bf16.mxu0 0
        %2931 = vmatmul.mubr.bf16.gmra.mrb[0].mxu0 %v2796
        %v2932 = vpop.f32.mrb[0].mxu0
        %v2933 = vadd.f32 %v2744, %v2932
        %v2934 = vpop.f32.mrb[0].mxu0
        %v2935 = vpop.f32.mrb[0].mxu0
        %v2936 = vadd.f32 %v2744, %v2935
        %v2937 = vpop.f32.mrb[0].mxu0
        %2938 = vmatprep.mubr.bf16.mxu0 0
        %2939 = vmatmul.mubr.bf16.gmra.mrb[0].mxu0 %v2798
        %v2940 = vpop.f32.mrb[0].mxu0
        %v2941 = vadd.f32 %v2744, %v2940
        %v2942 = vpop.f32.mrb[0].mxu0
        %v2943 = vpop.f32.mrb[0].mxu0
        %v2944 = vadd.f32 %v2744, %v2943
        %v2945 = vpop.f32.mrb[0].mxu0
        %2946 = vmatprep.mubr.bf16.mxu0 0
        %2947 = vmatmul.mubr.bf16.gmra.mrb[0].mxu0 %v2800
        %v2948 = vpop.f32.mrb[0].mxu0
        %v2949 = vadd.f32 %v2744, %v2948
        %v2950 = vpop.f32.mrb[0].mxu0
        %v2951 = vpop.f32.mrb[0].mxu0
        %v2952 = vadd.f32 %v2744, %v2951
        %v2953 = vpop.f32.mrb[0].mxu0
        %2954 = vmatprep.mubr.bf16.mxu0 0
        %2955 = vmatmul.mubr.bf16.gmra.mrb[0].mxu0 %v2802
        %v2956 = vpop.f32.mrb[0].mxu0
        %v2957 = vadd.f32 %v2744, %v2956
        %v2958 = vpop.f32.mrb[0].mxu0
        %v2959 = vpop.f32.mrb[0].mxu0
        %v2960 = vadd.f32 %v2744, %v2959
        %v2961 = vpop.f32.mrb[0].mxu0
        %2962 = vmatprep.mubr.bf16.mxu0 0
        %2963 = vmatmul.mubr.bf16.gmra.mrb[0].mxu0 %v2804
        %v2964 = vpop.f32.mrb[0].mxu0
        %v2965 = vadd.f32 %v2744, %v2964
        %v2966 = vpop.f32.mrb[0].mxu0
        %v2967 = vpop.f32.mrb[0].mxu0
        %v2968 = vadd.f32 %v2744, %v2967
        %v2969 = vpop.f32.mrb[0].mxu0
        %2970 = vdwg.mxu0
        %v2971 = vmax.f32 %v2845, 0.0
        %v2972 = vmax.f32 %v2848, 0.0
        %v2973 = vmax.f32 %v2853, 0.0
        %v2974 = vmax.f32 %v2856, 0.0
        %v2975 = vmax.f32 %v2861, 0.0
        %v2976 = vmax.f32 %v2864, 0.0
        %v2977 = vmax.f32 %v2869, 0.0
        %v2978 = vmax.f32 %v2872, 0.0
        %v2979 = vmax.f32 %v2877, 0.0
        %v2980 = vmax.f32 %v2880, 0.0
        %v2981 = vmax.f32 %v2885, 0.0
        %v2982 = vmax.f32 %v2888, 0.0
        %v2983 = vmax.f32 %v2893, 0.0
        %v2984 = vmax.f32 %v2896, 0.0
        %v2985 = vmax.f32 %v2901, 0.0
        %v2986 = vmax.f32 %v2904, 0.0
        %v2987 = vmax.f32 %v2909, 0.0
        %v2988 = vmax.f32 %v2912, 0.0
        %v2989 = vmax.f32 %v2917, 0.0
        %v2990 = vmax.f32 %v2920, 0.0
        %v2991 = vmax.f32 %v2925, 0.0
        %v2992 = vmax.f32 %v2928, 0.0
        %v2993 = vmax.f32 %v2933, 0.0
        %v2994 = vmax.f32 %v2936, 0.0
        %v2995 = vmax.f32 %v2941, 0.0
        %v2996 = vmax.f32 %v2944, 0.0
        %v2997 = vmax.f32 %v2949, 0.0
        %v2998 = vmax.f32 %v2952, 0.0
        %v2999 = vmax.f32 %v2957, 0.0
        %v3000 = vmax.f32 %v2960, 0.0
        %v3001 = vmax.f32 %v2965, 0.0
        %v3002 = vmax.f32 %v2968, 0.0
        %v3003 = vpack.c.bf16 %v2972, %v2971
        %v3004 = vpack.c.bf16 %v2974, %v2973
        %v3005 = vpack.c.bf16 %v2976, %v2975
        %v3006 = vpack.c.bf16 %v2978, %v2977
        %v3007 = vpack.c.bf16 %v2980, %v2979
        %v3008 = vpack.c.bf16 %v2982, %v2981
        %v3009 = vpack.c.bf16 %v2984, %v2983
        %v3010 = vpack.c.bf16 %v2986, %v2985
        %v3011 = vpack.c.bf16 %v2988, %v2987
        %v3012 = vpack.c.bf16 %v2990, %v2989
        %v3013 = vpack.c.bf16 %v2992, %v2991
        %v3014 = vpack.c.bf16 %v2994, %v2993
        %v3015 = vpack.c.bf16 %v2996, %v2995
        %v3016 = vpack.c.bf16 %v2998, %v2997
        %v3017 = vpack.c.bf16 %v3000, %v2999
        %v3018 = vpack.c.bf16 %v3002, %v3001
        %v3035 = vunpack.c.l.b16 %v3003
        %v3036 = vunpack.c.h.b16 %v3003
        %v3037 = vunpack.c.l.b16 %v3004
        %v3038 = vunpack.c.h.b16 %v3004
        %v3039 = vunpack.c.l.b16 %v3005
        %v3040 = vunpack.c.h.b16 %v3005
        %v3041 = vunpack.c.l.b16 %v3006
        %v3042 = vunpack.c.h.b16 %v3006
        %v3043 = vunpack.c.l.b16 %v3007
        %v3044 = vunpack.c.h.b16 %v3007
        %v3045 = vunpack.c.l.b16 %v3008
        %v3046 = vunpack.c.h.b16 %v3008
        %v3047 = vunpack.c.l.b16 %v3009
        %v3048 = vunpack.c.h.b16 %v3009
        %v3049 = vunpack.c.l.b16 %v3010
        %v3050 = vunpack.c.h.b16 %v3010
        %v3051 = vunpack.c.l.b16 %v3011
        %v3052 = vunpack.c.h.b16 %v3011
        %v3053 = vunpack.c.l.b16 %v3012
        %v3054 = vunpack.c.h.b16 %v3012
        %v3055 = vunpack.c.l.b16 %v3013
        %v3056 = vunpack.c.h.b16 %v3013
        %v3057 = vunpack.c.l.b16 %v3014
        %v3058 = vunpack.c.h.b16 %v3014
        %v3059 = vunpack.c.l.b16 %v3015
        %v3060 = vunpack.c.h.b16 %v3015
        %v3061 = vunpack.c.l.b16 %v3016
        %v3062 = vunpack.c.h.b16 %v3016
        %v3063 = vunpack.c.l.b16 %v3017
        %v3064 = vunpack.c.h.b16 %v3017
        %v3065 = vunpack.c.l.b16 %v3018
        %v3066 = vunpack.c.h.b16 %v3018
        %v3067 = vpack.c.b16 %v3035, %v3035
        %v3068 = vpack.c.b16 %v3036, %v3036
        %v3069 = vpack.c.b16 %v3037, %v3037
        %v3070 = vpack.c.b16 %v3038, %v3038
        %v3071 = vpack.c.b16 %v3039, %v3039
        %v3072 = vpack.c.b16 %v3040, %v3040
        %v3073 = vpack.c.b16 %v3041, %v3041
        %v3074 = vpack.c.b16 %v3042, %v3042
        %v3075 = vpack.c.b16 %v3043, %v3043
        %v3076 = vpack.c.b16 %v3044, %v3044
        %v3077 = vpack.c.b16 %v3045, %v3045
        %v3078 = vpack.c.b16 %v3046, %v3046
        %v3079 = vpack.c.b16 %v3047, %v3047
        %v3080 = vpack.c.b16 %v3048, %v3048
        %v3081 = vpack.c.b16 %v3049, %v3049
        %v3082 = vpack.c.b16 %v3050, %v3050
        %v3083 = vpack.c.b16 %v3051, %v3051
        %v3084 = vpack.c.b16 %v3052, %v3052
        %v3085 = vpack.c.b16 %v3053, %v3053
        %v3086 = vpack.c.b16 %v3054, %v3054
        %v3087 = vpack.c.b16 %v3055, %v3055
        %v3088 = vpack.c.b16 %v3056, %v3056
        %v3089 = vpack.c.b16 %v3057, %v3057
        %v3090 = vpack.c.b16 %v3058, %v3058
        %v3091 = vpack.c.b16 %v3059, %v3059
        %v3092 = vpack.c.b16 %v3060, %v3060
        %v3093 = vpack.c.b16 %v3061, %v3061
        %v3094 = vpack.c.b16 %v3062, %v3062
        %v3095 = vpack.c.b16 %v3063, %v3063
        %v3096 = vpack.c.b16 %v3064, %v3064
        %v3097 = vpack.c.b16 %v3065, %v3065
        %v3098 = vpack.c.b16 %v3066, %v3066
        %v3100 = vshrl.u32 %v3067, 16
        %v3102 = vrot.slane %v3100, 7
        %v3103 = vshll.u32 %v3067, 16
        %v3105 = vor.u32 %v3102, %v3103
        %v3106 = vrot.slane %v3102, 4
        %v3108 = vshrl.u32 %v3068, 16
        %v3110 = vrot.slane %v3108, 7
        %v3111 = vshll.u32 %v3068, 16
        %v3113 = vor.u32 %v3110, %v3111
        %v3114 = vsel %vm327, %v3106, %v3113
        %v3115 = vrot.slane %v3110, 4
        %v3117 = vshrl.u32 %v3069, 16
        %v3119 = vrot.slane %v3117, 7
        %v3120 = vshll.u32 %v3069, 16
        %v3122 = vor.u32 %v3119, %v3120
        %v3123 = vrot.slane %v3119, 4
        %v3125 = vshrl.u32 %v3070, 16
        %v3127 = vrot.slane %v3125, 7
        %v3128 = vshll.u32 %v3070, 16
        %v3130 = vor.u32 %v3127, %v3128
        %v3131 = vsel %vm327, %v3123, %v3130
        %v3132 = vrot.slane %v3127, 4
        %v3134 = vshrl.u32 %v3071, 16
        %v3136 = vrot.slane %v3134, 7
        %v3137 = vshll.u32 %v3071, 16
        %v3139 = vor.u32 %v3136, %v3137
        %v3140 = vrot.slane %v3136, 4
        %v3142 = vshrl.u32 %v3072, 16
        %v3144 = vrot.slane %v3142, 7
        %v3145 = vshll.u32 %v3072, 16
        %v3147 = vor.u32 %v3144, %v3145
        %v3148 = vsel %vm327, %v3140, %v3147
        %v3149 = vrot.slane %v3144, 4
        %v3151 = vshrl.u32 %v3073, 16
        %v3153 = vrot.slane %v3151, 7
        %v3154 = vshll.u32 %v3073, 16
        %v3156 = vor.u32 %v3153, %v3154
        %v3157 = vrot.slane %v3153, 4
        %v3159 = vshrl.u32 %v3074, 16
        %v3161 = vrot.slane %v3159, 7
        %v3162 = vshll.u32 %v3074, 16
        %v3164 = vor.u32 %v3161, %v3162
        %v3165 = vsel %vm327, %v3157, %v3164
        %v3166 = vrot.slane %v3161, 4
        %v3168 = vshrl.u32 %v3075, 16
        %v3170 = vrot.slane %v3168, 7
        %v3171 = vshll.u32 %v3075, 16
        %v3173 = vor.u32 %v3170, %v3171
        %v3174 = vrot.slane %v3170, 4
        %v3176 = vshrl.u32 %v3076, 16
        %v3178 = vrot.slane %v3176, 7
        %v3179 = vshll.u32 %v3076, 16
        %v3181 = vor.u32 %v3178, %v3179
        %v3182 = vsel %vm327, %v3174, %v3181
        %v3183 = vrot.slane %v3178, 4
        %v3185 = vshrl.u32 %v3077, 16
        %v3187 = vrot.slane %v3185, 7
        %v3188 = vshll.u32 %v3077, 16
        %v3190 = vor.u32 %v3187, %v3188
        %v3191 = vrot.slane %v3187, 4
        %v3193 = vshrl.u32 %v3078, 16
        %v3195 = vrot.slane %v3193, 7
        %v3196 = vshll.u32 %v3078, 16
        %v3198 = vor.u32 %v3195, %v3196
        %v3199 = vsel %vm327, %v3191, %v3198
        %v3200 = vrot.slane %v3195, 4
        %v3202 = vshrl.u32 %v3079, 16
        %v3204 = vrot.slane %v3202, 7
        %v3205 = vshll.u32 %v3079, 16
        %v3207 = vor.u32 %v3204, %v3205
        %v3208 = vrot.slane %v3204, 4
        %v3210 = vshrl.u32 %v3080, 16
        %v3212 = vrot.slane %v3210, 7
        %v3213 = vshll.u32 %v3080, 16
        %v3215 = vor.u32 %v3212, %v3213
        %v3216 = vsel %vm327, %v3208, %v3215
        %v3217 = vrot.slane %v3212, 4
        %v3219 = vshrl.u32 %v3081, 16
        %v3221 = vrot.slane %v3219, 7
        %v3222 = vshll.u32 %v3081, 16
        %v3224 = vor.u32 %v3221, %v3222
        %v3225 = vrot.slane %v3221, 4
        %v3227 = vshrl.u32 %v3082, 16
        %v3229 = vrot.slane %v3227, 7
        %v3230 = vshll.u32 %v3082, 16
        %v3232 = vor.u32 %v3229, %v3230
        %v3233 = vsel %vm327, %v3225, %v3232
        %v3234 = vrot.slane %v3229, 4
        %v3236 = vshrl.u32 %v3083, 16
        %v3238 = vrot.slane %v3236, 7
        %v3239 = vshll.u32 %v3083, 16
        %v3241 = vor.u32 %v3238, %v3239
        %v3242 = vrot.slane %v3238, 4
        %v3244 = vshrl.u32 %v3084, 16
        %v3246 = vrot.slane %v3244, 7
        %v3247 = vshll.u32 %v3084, 16
        %v3249 = vor.u32 %v3246, %v3247
        %v3250 = vsel %vm327, %v3242, %v3249
        %v3251 = vrot.slane %v3246, 4
        %v3253 = vshrl.u32 %v3085, 16
        %v3255 = vrot.slane %v3253, 7
        %v3256 = vshll.u32 %v3085, 16
        %v3258 = vor.u32 %v3255, %v3256
        %v3259 = vrot.slane %v3255, 4
        %v3261 = vshrl.u32 %v3086, 16
        %v3263 = vrot.slane %v3261, 7
        %v3264 = vshll.u32 %v3086, 16
        %v3266 = vor.u32 %v3263, %v3264
        %v3267 = vsel %vm327, %v3259, %v3266
        %v3268 = vrot.slane %v3263, 4
        %v3270 = vshrl.u32 %v3087, 16
        %v3272 = vrot.slane %v3270, 7
        %v3273 = vshll.u32 %v3087, 16
        %v3275 = vor.u32 %v3272, %v3273
        %v3276 = vrot.slane %v3272, 4
        %v3278 = vshrl.u32 %v3088, 16
        %v3280 = vrot.slane %v3278, 7
        %v3281 = vshll.u32 %v3088, 16
        %v3283 = vor.u32 %v3280, %v3281
        %v3284 = vsel %vm327, %v3276, %v3283
        %v3285 = vrot.slane %v3280, 4
        %v3287 = vshrl.u32 %v3089, 16
        %v3289 = vrot.slane %v3287, 7
        %v3290 = vshll.u32 %v3089, 16
        %v3292 = vor.u32 %v3289, %v3290
        %v3293 = vrot.slane %v3289, 4
        %v3295 = vshrl.u32 %v3090, 16
        %v3297 = vrot.slane %v3295, 7
        %v3298 = vshll.u32 %v3090, 16
        %v3300 = vor.u32 %v3297, %v3298
        %v3301 = vsel %vm327, %v3293, %v3300
        %v3302 = vrot.slane %v3297, 4
        %v3304 = vshrl.u32 %v3091, 16
        %v3306 = vrot.slane %v3304, 7
        %v3307 = vshll.u32 %v3091, 16
        %v3309 = vor.u32 %v3306, %v3307
        %v3310 = vrot.slane %v3306, 4
        %v3312 = vshrl.u32 %v3092, 16
        %v3314 = vrot.slane %v3312, 7
        %v3315 = vshll.u32 %v3092, 16
        %v3317 = vor.u32 %v3314, %v3315
        %v3318 = vsel %vm327, %v3310, %v3317
        %v3319 = vrot.slane %v3314, 4
        %v3321 = vshrl.u32 %v3093, 16
        %v3323 = vrot.slane %v3321, 7
        %v3324 = vshll.u32 %v3093, 16
        %v3326 = vor.u32 %v3323, %v3324
        %v3327 = vrot.slane %v3323, 4
        %v3329 = vshrl.u32 %v3094, 16
        %v3331 = vrot.slane %v3329, 7
        %v3332 = vshll.u32 %v3094, 16
        %v3334 = vor.u32 %v3331, %v3332
        %v3335 = vsel %vm327, %v3327, %v3334
        %v3336 = vrot.slane %v3331, 4
        %v3338 = vshrl.u32 %v3095, 16
        %v3340 = vrot.slane %v3338, 7
        %v3341 = vshll.u32 %v3095, 16
        %v3343 = vor.u32 %v3340, %v3341
        %v3344 = vrot.slane %v3340, 4
        %v3346 = vshrl.u32 %v3096, 16
        %v3348 = vrot.slane %v3346, 7
        %v3349 = vshll.u32 %v3096, 16
        %v3351 = vor.u32 %v3348, %v3349
        %v3352 = vsel %vm327, %v3344, %v3351
        %v3353 = vrot.slane %v3348, 4
        %v3355 = vshrl.u32 %v3097, 16
        %v3357 = vrot.slane %v3355, 7
        %v3358 = vshll.u32 %v3097, 16
        %v3360 = vor.u32 %v3357, %v3358
        %v3361 = vrot.slane %v3357, 4
        %v3363 = vshrl.u32 %v3098, 16
        %v3365 = vrot.slane %v3363, 7
        %v3366 = vshll.u32 %v3098, 16
        %v3368 = vor.u32 %v3365, %v3366
        %v3369 = vsel %vm327, %v3361, %v3368
        %v3370 = vrot.slane %v3365, 4
        %vm3419 = vcmask 1043456
        %vm3420 = vmand %vm3419, %vm650
        %v3421 = vsel %vm3420, %v3105, %v831
        %3422 = vst [vmem:[%s648] sm:$0xf] %v3421
        %3423 = vst [vmem:[%s648 + $0x4] sm:$0xf] %v3114
        %vm3424 = vcmask 1040384
        %vm3425 = vmand %vm3424, %vm325
        %v3426 = vld [vmem:[%s648 + $0x8] sm:$0x1]
        %v3427 = vsel %vm3425, %v3115, %v3426
        %3428 = vst [vmem:[%s648 + $0x8] sm:$0x1] %v3427
        %v3429 = vld [vmem:[%s648 + $0xc] sm:$0xf]
        %v3430 = vsel %vm3420, %v3122, %v3429
        %3431 = vst [vmem:[%s648 + $0xc] sm:$0xf] %v3430
        %3432 = vst [vmem:[%s648 + $0x10] sm:$0xf] %v3131
        %v3433 = vld [vmem:[%s648 + $0x14] sm:$0x1]
        %v3434 = vsel %vm3425, %v3132, %v3433
        %3435 = vst [vmem:[%s648 + $0x14] sm:$0x1] %v3434
        %v3436 = vld [vmem:[%s648 + $0x18] sm:$0xf]
        %v3437 = vsel %vm3420, %v3139, %v3436
        %3438 = vst [vmem:[%s648 + $0x18] sm:$0xf] %v3437
        %3439 = vst [vmem:[%s648 + $0x1c] sm:$0xf] %v3148
        %v3440 = vld [vmem:[%s648 + $0x20] sm:$0x1]
        %v3441 = vsel %vm3425, %v3149, %v3440
        %3442 = vst [vmem:[%s648 + $0x20] sm:$0x1] %v3441
        %v3443 = vld [vmem:[%s648 + $0x24] sm:$0xf]
        %v3444 = vsel %vm3420, %v3156, %v3443
        %3445 = vst [vmem:[%s648 + $0x24] sm:$0xf] %v3444
        %3446 = vst [vmem:[%s648 + $0x28] sm:$0xf] %v3165
        %v3447 = vld [vmem:[%s648 + $0x2c] sm:$0x1]
        %v3448 = vsel %vm3425, %v3166, %v3447
        %3449 = vst [vmem:[%s648 + $0x2c] sm:$0x1] %v3448
        %v3450 = vld [vmem:[%s648 + $0x30] sm:$0xf]
        %v3451 = vsel %vm3420, %v3173, %v3450
        %3452 = vst [vmem:[%s648 + $0x30] sm:$0xf] %v3451
        %3453 = vst [vmem:[%s648 + $0x34] sm:$0xf] %v3182
        %v3454 = vld [vmem:[%s648 + $0x38] sm:$0x1]
        %v3455 = vsel %vm3425, %v3183, %v3454
        %3456 = vst [vmem:[%s648 + $0x38] sm:$0x1] %v3455
        %v3457 = vld [vmem:[%s648 + $0x3c] sm:$0xf]
        %v3458 = vsel %vm3420, %v3190, %v3457
        %3459 = vst [vmem:[%s648 + $0x3c] sm:$0xf] %v3458
        %3460 = vst [vmem:[%s648 + $0x40] sm:$0xf] %v3199
        %v3461 = vld [vmem:[%s648 + $0x44] sm:$0x1]
        %v3462 = vsel %vm3425, %v3200, %v3461
        %3463 = vst [vmem:[%s648 + $0x44] sm:$0x1] %v3462
        %v3464 = vld [vmem:[%s648 + $0x48] sm:$0xf]
        %v3465 = vsel %vm3420, %v3207, %v3464
        %3466 = vst [vmem:[%s648 + $0x48] sm:$0xf] %v3465
        %3467 = vst [vmem:[%s648 + $0x4c] sm:$0xf] %v3216
        %v3468 = vld [vmem:[%s648 + $0x50] sm:$0x1]
        %v3469 = vsel %vm3425, %v3217, %v3468
        %3470 = vst [vmem:[%s648 + $0x50] sm:$0x1] %v3469
        %v3471 = vld [vmem:[%s648 + $0x54] sm:$0xf]
        %v3472 = vsel %vm3420, %v3224, %v3471
        %3473 = vst [vmem:[%s648 + $0x54] sm:$0xf] %v3472
        %3474 = vst [vmem:[%s648 + $0x58] sm:$0xf] %v3233
        %v3475 = vld [vmem:[%s648 + $0x5c] sm:$0x1]
        %v3476 = vsel %vm3425, %v3234, %v3475
        %3477 = vst [vmem:[%s648 + $0x5c] sm:$0x1] %v3476
        %v3478 = vld [vmem:[%s648 + $0x60] sm:$0xf]
        %v3479 = vsel %vm3420, %v3241, %v3478
        %3480 = vst [vmem:[%s648 + $0x60] sm:$0xf] %v3479
        %3481 = vst [vmem:[%s648 + $0x64] sm:$0xf] %v3250
        %v3482 = vld [vmem:[%s648 + $0x68] sm:$0x1]
        %v3483 = vsel %vm3425, %v3251, %v3482
        %3484 = vst [vmem:[%s648 + $0x68] sm:$0x1] %v3483
        %v3485 = vld [vmem:[%s648 + $0x6c] sm:$0xf]
        %v3486 = vsel %vm3420, %v3258, %v3485
        %3487 = vst [vmem:[%s648 + $0x6c] sm:$0xf] %v3486
        %3488 = vst [vmem:[%s648 + $0x70] sm:$0xf] %v3267
        %v3489 = vld [vmem:[%s648 + $0x74] sm:$0x1]
        %v3490 = vsel %vm3425, %v3268, %v3489
        %3491 = vst [vmem:[%s648 + $0x74] sm:$0x1] %v3490
        %v3492 = vld [vmem:[%s648 + $0x78] sm:$0xf]
        %v3493 = vsel %vm3420, %v3275, %v3492
        %3494 = vst [vmem:[%s648 + $0x78] sm:$0xf] %v3493
        %3495 = vst [vmem:[%s648 + $0x7c] sm:$0xf] %v3284
        %v3496 = vld [vmem:[%s648 + $0x80] sm:$0x1]
        %v3497 = vsel %vm3425, %v3285, %v3496
        %3498 = vst [vmem:[%s648 + $0x80] sm:$0x1] %v3497
        %v3499 = vld [vmem:[%s648 + $0x84] sm:$0xf]
        %v3500 = vsel %vm3420, %v3292, %v3499
        %3501 = vst [vmem:[%s648 + $0x84] sm:$0xf] %v3500
        %3502 = vst [vmem:[%s648 + $0x88] sm:$0xf] %v3301
        %v3503 = vld [vmem:[%s648 + $0x8c] sm:$0x1]
        %v3504 = vsel %vm3425, %v3302, %v3503
        %3505 = vst [vmem:[%s648 + $0x8c] sm:$0x1] %v3504
        %v3506 = vld [vmem:[%s648 + $0x90] sm:$0xf]
        %v3507 = vsel %vm3420, %v3309, %v3506
        %3508 = vst [vmem:[%s648 + $0x90] sm:$0xf] %v3507
        %3509 = vst [vmem:[%s648 + $0x94] sm:$0xf] %v3318
        %v3510 = vld [vmem:[%s648 + $0x98] sm:$0x1]
        %v3511 = vsel %vm3425, %v3319, %v3510
        %3512 = vst [vmem:[%s648 + $0x98] sm:$0x1] %v3511
        %v3513 = vld [vmem:[%s648 + $0x9c] sm:$0xf]
        %v3514 = vsel %vm3420, %v3326, %v3513
        %3515 = vst [vmem:[%s648 + $0x9c] sm:$0xf] %v3514
        %3516 = vst [vmem:[%s648 + $0xa0] sm:$0xf] %v3335
        %v3517 = vld [vmem:[%s648 + $0xa4] sm:$0x1]
        %v3518 = vsel %vm3425, %v3336, %v3517
        %3519 = vst [vmem:[%s648 + $0xa4] sm:$0x1] %v3518
        %v3520 = vld [vmem:[%s648 + $0xa8] sm:$0xf]
        %v3521 = vsel %vm3420, %v3343, %v3520
        %3522 = vst [vmem:[%s648 + $0xa8] sm:$0xf] %v3521
        %3523 = vst [vmem:[%s648 + $0xac] sm:$0xf] %v3352
        %v3524 = vld [vmem:[%s648 + $0xb0] sm:$0x1]
        %v3525 = vsel %vm3425, %v3353, %v3524
        %3526 = vst [vmem:[%s648 + $0xb0] sm:$0x1] %v3525
        %v3527 = vld [vmem:[%s648 + $0xb4] sm:$0xf]
        %v3528 = vsel %vm3420, %v3360, %v3527
        %3529 = vst [vmem:[%s648 + $0xb4] sm:$0xf] %v3528
        %3530 = vst [vmem:[%s648 + $0xb8] sm:$0xf] %v3369
        %v3531 = vld [vmem:[%s648 + $0xbc] sm:$0x1]
        %v3532 = vsel %vm3425, %v3370, %v3531
        %3533 = vst [vmem:[%s648 + $0xbc] sm:$0x1] %v3532
        %v3534 = vld [vmem:[#allocation2] sm:$0xf]
        %v3535 = vld [vmem:[#allocation2 + $0x4] sm:$0xf]
        %v3536 = vld [vmem:[#allocation2 + $0xc] sm:$0xf]
        %v3537 = vld [vmem:[#allocation2 + $0x10] sm:$0xf]
        %v3538 = vld [vmem:[#allocation2 + $0x18] sm:$0xf]
        %v3539 = vld [vmem:[#allocation2 + $0x1c] sm:$0xf]
        %v3540 = vld [vmem:[#allocation2 + $0x24] sm:$0xf]
        %v3541 = vld [vmem:[#allocation2 + $0x28] sm:$0xf]
        %v3542 = vld [vmem:[#allocation2 + $0x30] sm:$0xf]
        %v3543 = vld [vmem:[#allocation2 + $0x34] sm:$0xf]
        %v3544 = vld [vmem:[#allocation2 + $0x3c] sm:$0xf]
        %v3545 = vld [vmem:[#allocation2 + $0x40] sm:$0xf]
        %v3546 = vld [vmem:[#allocation2 + $0x48] sm:$0xf]
        %v3547 = vld [vmem:[#allocation2 + $0x4c] sm:$0xf]
        %v3548 = vld [vmem:[#allocation2 + $0x54] sm:$0xf]
        %v3549 = vld [vmem:[#allocation2 + $0x58] sm:$0xf]
        %v3550 = vld [vmem:[#allocation2 + $0x60] sm:$0xf]
        %v3551 = vld [vmem:[#allocation2 + $0x64] sm:$0xf]
        %v3552 = vld [vmem:[#allocation2 + $0x6c] sm:$0xf]
        %v3553 = vld [vmem:[#allocation2 + $0x70] sm:$0xf]
        %v3554 = vld [vmem:[#allocation2 + $0x78] sm:$0xf]
        %v3555 = vld [vmem:[#allocation2 + $0x7c] sm:$0xf]
        %v3556 = vld [vmem:[#allocation2 + $0x84] sm:$0xf]
        %v3557 = vld [vmem:[#allocation2 + $0x88] sm:$0xf]
        %v3558 = vld [vmem:[#allocation2 + $0x90] sm:$0xf]
        %v3559 = vld [vmem:[#allocation2 + $0x94] sm:$0xf]
        %v3560 = vld [vmem:[#allocation2 + $0x9c] sm:$0xf]
        %v3561 = vld [vmem:[#allocation2 + $0xa0] sm:$0xf]
        %v3562 = vld [vmem:[#allocation2 + $0xa8] sm:$0xf]
        %v3563 = vld [vmem:[#allocation2 + $0xac] sm:$0xf]
        %v3564 = vld [vmem:[#allocation2 + $0xb4] sm:$0xf]
        %v3565 = vld [vmem:[#allocation2 + $0xb8] sm:$0xf]
        %v3566 = vld [vmem:[#allocation2 + $0x8] sm:$0x1]
        %v3567 = vld [vmem:[#allocation2 + $0x14] sm:$0x1]
        %v3568 = vld [vmem:[#allocation2 + $0x20] sm:$0x1]
        %v3569 = vld [vmem:[#allocation2 + $0x2c] sm:$0x1]
        %v3570 = vld [vmem:[#allocation2 + $0x38] sm:$0x1]
        %v3571 = vld [vmem:[#allocation2 + $0x44] sm:$0x1]
        %v3572 = vld [vmem:[#allocation2 + $0x50] sm:$0x1]
        %v3573 = vld [vmem:[#allocation2 + $0x5c] sm:$0x1]
        %v3574 = vld [vmem:[#allocation2 + $0x68] sm:$0x1]
        %v3575 = vld [vmem:[#allocation2 + $0x74] sm:$0x1]
        %v3576 = vld [vmem:[#allocation2 + $0x80] sm:$0x1]
        %v3577 = vld [vmem:[#allocation2 + $0x8c] sm:$0x1]
        %v3578 = vld [vmem:[#allocation2 + $0x98] sm:$0x1]
        %v3579 = vld [vmem:[#allocation2 + $0xa4] sm:$0x1]
        %v3580 = vld [vmem:[#allocation2 + $0xb0] sm:$0x1]
        %v3581 = vld [vmem:[#allocation2 + $0xbc] sm:$0x1]
        %v3582 = vld [vmem:[#allocation2] sm:$0xe]
        %v3583 = vld [vmem:[#allocation2 + $0xc] sm:$0xe]
        %v3584 = vld [vmem:[#allocation2 + $0x18] sm:$0xe]
        %v3585 = vld [vmem:[#allocation2 + $0x24] sm:$0xe]
        %v3586 = vld [vmem:[#allocation2 + $0x30] sm:$0xe]
        %v3587 = vld [vmem:[#allocation2 + $0x3c] sm:$0xe]
        %v3588 = vld [vmem:[#allocation2 + $0x48] sm:$0xe]
        %v3589 = vld [vmem:[#allocation2 + $0x54] sm:$0xe]
        %v3590 = vld [vmem:[#allocation2 + $0x60] sm:$0xe]
        %v3591 = vld [vmem:[#allocation2 + $0x6c] sm:$0xe]
        %v3592 = vld [vmem:[#allocation2 + $0x78] sm:$0xe]
        %v3593 = vld [vmem:[#allocation2 + $0x84] sm:$0xe]
        %v3594 = vld [vmem:[#allocation2 + $0x90] sm:$0xe]
        %v3595 = vld [vmem:[#allocation2 + $0x9c] sm:$0xe]
        %v3596 = vld [vmem:[#allocation2 + $0xa8] sm:$0xe]
        %v3597 = vld [vmem:[#allocation2 + $0xb4] sm:$0xe]
        %v3598 = vld [vmem:[%s648] sm:$0xf]
        %v3599 = vld [vmem:[%s648 + $0x4] sm:$0xf]
        %v3600 = vld [vmem:[%s648 + $0xc] sm:$0xf]
        %v3601 = vld [vmem:[%s648 + $0x10] sm:$0xf]
        %v3602 = vld [vmem:[%s648 + $0x18] sm:$0xf]
        %v3603 = vld [vmem:[%s648 + $0x1c] sm:$0xf]
        %v3604 = vld [vmem:[%s648 + $0x24] sm:$0xf]
        %v3605 = vld [vmem:[%s648 + $0x28] sm:$0xf]
        %v3606 = vld [vmem:[%s648 + $0x30] sm:$0xf]
        %v3607 = vld [vmem:[%s648 + $0x34] sm:$0xf]
        %v3608 = vld [vmem:[%s648 + $0x3c] sm:$0xf]
        %v3609 = vld [vmem:[%s648 + $0x40] sm:$0xf]
        %v3610 = vld [vmem:[%s648 + $0x48] sm:$0xf]
        %v3611 = vld [vmem:[%s648 + $0x4c] sm:$0xf]
        %v3612 = vld [vmem:[%s648 + $0x54] sm:$0xf]
        %v3613 = vld [vmem:[%s648 + $0x58] sm:$0xf]
        %v3614 = vld [vmem:[%s648 + $0x60] sm:$0xf]
        %v3615 = vld [vmem:[%s648 + $0x64] sm:$0xf]
        %v3616 = vld [vmem:[%s648 + $0x6c] sm:$0xf]
        %v3617 = vld [vmem:[%s648 + $0x70] sm:$0xf]
        %v3618 = vld [vmem:[%s648 + $0x78] sm:$0xf]
        %v3619 = vld [vmem:[%s648 + $0x7c] sm:$0xf]
        %v3620 = vld [vmem:[%s648 + $0x84] sm:$0xf]
        %v3621 = vld [vmem:[%s648 + $0x88] sm:$0xf]
        %v3622 = vld [vmem:[%s648 + $0x90] sm:$0xf]
        %v3623 = vld [vmem:[%s648 + $0x94] sm:$0xf]
        %v3624 = vld [vmem:[%s648 + $0x9c] sm:$0xf]
        %v3625 = vld [vmem:[%s648 + $0xa0] sm:$0xf]
        %v3626 = vld [vmem:[%s648 + $0xa8] sm:$0xf]
        %v3627 = vld [vmem:[%s648 + $0xac] sm:$0xf]
        %v3628 = vld [vmem:[%s648 + $0xb4] sm:$0xf]
        %v3629 = vld [vmem:[%s648 + $0xb8] sm:$0xf]
        %v3630 = vld [vmem:[%s648 + $0x8] sm:$0x1]
        %v3631 = vld [vmem:[%s648 + $0x14] sm:$0x1]
        %v3632 = vld [vmem:[%s648 + $0x20] sm:$0x1]
        %v3633 = vld [vmem:[%s648 + $0x2c] sm:$0x1]
        %v3634 = vld [vmem:[%s648 + $0x38] sm:$0x1]
        %v3635 = vld [vmem:[%s648 + $0x44] sm:$0x1]
        %v3636 = vld [vmem:[%s648 + $0x50] sm:$0x1]
        %v3637 = vld [vmem:[%s648 + $0x5c] sm:$0x1]
        %v3638 = vld [vmem:[%s648 + $0x68] sm:$0x1]
        %v3639 = vld [vmem:[%s648 + $0x74] sm:$0x1]
        %v3640 = vld [vmem:[%s648 + $0x80] sm:$0x1]
        %v3641 = vld [vmem:[%s648 + $0x8c] sm:$0x1]
        %v3642 = vld [vmem:[%s648 + $0x98] sm:$0x1]
        %v3643 = vld [vmem:[%s648 + $0xa4] sm:$0x1]
        %v3644 = vld [vmem:[%s648 + $0xb0] sm:$0x1]
        %v3645 = vld [vmem:[%s648 + $0xbc] sm:$0x1]
        %v3646 = vld [vmem:[%s648] sm:$0xe]
        %v3647 = vld [vmem:[%s648 + $0xc] sm:$0xe]
        %v3648 = vld [vmem:[%s648 + $0x18] sm:$0xe]
        %v3649 = vld [vmem:[%s648 + $0x24] sm:$0xe]
        %v3650 = vld [vmem:[%s648 + $0x30] sm:$0xe]
        %v3651 = vld [vmem:[%s648 + $0x3c] sm:$0xe]
        %v3652 = vld [vmem:[%s648 + $0x48] sm:$0xe]
        %v3653 = vld [vmem:[%s648 + $0x54] sm:$0xe]
        %v3654 = vld [vmem:[%s648 + $0x60] sm:$0xe]
        %v3655 = vld [vmem:[%s648 + $0x6c] sm:$0xe]
        %v3656 = vld [vmem:[%s648 + $0x78] sm:$0xe]
        %v3657 = vld [vmem:[%s648 + $0x84] sm:$0xe]
        %v3658 = vld [vmem:[%s648 + $0x90] sm:$0xe]
        %v3659 = vld [vmem:[%s648 + $0x9c] sm:$0xe]
        %v3660 = vld [vmem:[%s648 + $0xa8] sm:$0xe]
        %v3661 = vld [vmem:[%s648 + $0xb4] sm:$0xe]
        %v3662 = vld [vmem:[%s895] sm:$0xf]
        %v3663 = vld [vmem:[%s895 + $0x4] sm:$0xf]
        %v3664 = vld [vmem:[%s895 + $0xc] sm:$0xf]
        %v3665 = vld [vmem:[%s895 + $0x10] sm:$0xf]
        %v3666 = vld [vmem:[%s895 + $0x18] sm:$0xf]
        %v3667 = vld [vmem:[%s895 + $0x1c] sm:$0xf]
        %v3668 = vld [vmem:[%s895 + $0x24] sm:$0xf]
        %v3669 = vld [vmem:[%s895 + $0x28] sm:$0xf]
        %v3670 = vld [vmem:[%s895 + $0x30] sm:$0xf]
        %v3671 = vld [vmem:[%s895 + $0x34] sm:$0xf]
        %v3672 = vld [vmem:[%s895 + $0x3c] sm:$0xf]
        %v3673 = vld [vmem:[%s895 + $0x40] sm:$0xf]
        %v3674 = vld [vmem:[%s895 + $0x48] sm:$0xf]
        %v3675 = vld [vmem:[%s895 + $0x4c] sm:$0xf]
        %v3676 = vld [vmem:[%s895 + $0x54] sm:$0xf]
        %v3677 = vld [vmem:[%s895 + $0x58] sm:$0xf]
        %v3678 = vld [vmem:[%s895 + $0x60] sm:$0xf]
        %v3679 = vld [vmem:[%s895 + $0x64] sm:$0xf]
        %v3680 = vld [vmem:[%s895 + $0x6c] sm:$0xf]
        %v3681 = vld [vmem:[%s895 + $0x70] sm:$0xf]
        %v3682 = vld [vmem:[%s895 + $0x78] sm:$0xf]
        %v3683 = vld [vmem:[%s895 + $0x7c] sm:$0xf]
        %v3684 = vld [vmem:[%s895 + $0x84] sm:$0xf]
        %v3685 = vld [vmem:[%s895 + $0x88] sm:$0xf]
        %v3686 = vld [vmem:[%s895 + $0x90] sm:$0xf]
        %v3687 = vld [vmem:[%s895 + $0x94] sm:$0xf]
        %v3688 = vld [vmem:[%s895 + $0x9c] sm:$0xf]
        %v3689 = vld [vmem:[%s895 + $0xa0] sm:$0xf]
        %v3690 = vld [vmem:[%s895 + $0xa8] sm:$0xf]
        %v3691 = vld [vmem:[%s895 + $0xac] sm:$0xf]
        %v3692 = vld [vmem:[%s895 + $0xb4] sm:$0xf]
        %v3693 = vld [vmem:[%s895 + $0xb8] sm:$0xf]
        %v3694 = vld [vmem:[%s895 + $0x8] sm:$0x1]
        %v3695 = vld [vmem:[%s895 + $0x14] sm:$0x1]
        %v3696 = vld [vmem:[%s895 + $0x20] sm:$0x1]
        %v3697 = vld [vmem:[%s895 + $0x2c] sm:$0x1]
        %v3698 = vld [vmem:[%s895 + $0x38] sm:$0x1]
        %v3699 = vld [vmem:[%s895 + $0x44] sm:$0x1]
        %v3700 = vld [vmem:[%s895 + $0x50] sm:$0x1]
        %v3701 = vld [vmem:[%s895 + $0x5c] sm:$0x1]
        %v3702 = vld [vmem:[%s895 + $0x68] sm:$0x1]
        %v3703 = vld [vmem:[%s895 + $0x74] sm:$0x1]
        %v3704 = vld [vmem:[%s895 + $0x80] sm:$0x1]
        %v3705 = vld [vmem:[%s895 + $0x8c] sm:$0x1]
        %v3706 = vld [vmem:[%s895 + $0x98] sm:$0x1]
        %v3707 = vld [vmem:[%s895 + $0xa4] sm:$0x1]
        %v3708 = vld [vmem:[%s895 + $0xb0] sm:$0x1]
        %v3709 = vld [vmem:[%s895 + $0xbc] sm:$0x1]
        %v3710 = vld [vmem:[%s895] sm:$0xe]
        %v3711 = vld [vmem:[%s895 + $0xc] sm:$0xe]
        %v3712 = vld [vmem:[%s895 + $0x18] sm:$0xe]
        %v3713 = vld [vmem:[%s895 + $0x24] sm:$0xe]
        %v3714 = vld [vmem:[%s895 + $0x30] sm:$0xe]
        %v3715 = vld [vmem:[%s895 + $0x3c] sm:$0xe]
        %v3716 = vld [vmem:[%s895 + $0x48] sm:$0xe]
        %v3717 = vld [vmem:[%s895 + $0x54] sm:$0xe]
        %v3718 = vld [vmem:[%s895 + $0x60] sm:$0xe]
        %v3719 = vld [vmem:[%s895 + $0x6c] sm:$0xe]
        %v3720 = vld [vmem:[%s895 + $0x78] sm:$0xe]
        %v3721 = vld [vmem:[%s895 + $0x84] sm:$0xe]
        %v3722 = vld [vmem:[%s895 + $0x90] sm:$0xe]
        %v3723 = vld [vmem:[%s895 + $0x9c] sm:$0xe]
        %v3724 = vld [vmem:[%s895 + $0xa8] sm:$0xe]
        %v3725 = vld [vmem:[%s895 + $0xb4] sm:$0xe]
        %v3758 = vunpack.c.l.b16 %v3534
        %v3759 = vunpack.c.l.b16 %v3535
        %v3760 = vunpack.c.l.b16 %v3536
        %v3761 = vunpack.c.l.b16 %v3537
        %v3762 = vunpack.c.l.b16 %v3538
        %v3763 = vunpack.c.l.b16 %v3539
        %v3764 = vunpack.c.l.b16 %v3540
        %v3765 = vunpack.c.l.b16 %v3541
        %v3766 = vunpack.c.l.b16 %v3542
        %v3767 = vunpack.c.l.b16 %v3543
        %v3768 = vunpack.c.l.b16 %v3544
        %v3769 = vunpack.c.l.b16 %v3545
        %v3770 = vunpack.c.l.b16 %v3546
        %v3771 = vunpack.c.l.b16 %v3547
        %v3772 = vunpack.c.l.b16 %v3548
        %v3773 = vunpack.c.l.b16 %v3549
        %v3774 = vunpack.c.l.b16 %v3550
        %v3775 = vunpack.c.l.b16 %v3551
        %v3776 = vunpack.c.l.b16 %v3552
        %v3777 = vunpack.c.l.b16 %v3553
        %v3778 = vunpack.c.l.b16 %v3554
        %v3779 = vunpack.c.l.b16 %v3555
        %v3780 = vunpack.c.l.b16 %v3556
        %v3781 = vunpack.c.l.b16 %v3557
        %v3782 = vunpack.c.l.b16 %v3558
        %v3783 = vunpack.c.l.b16 %v3559
        %v3784 = vunpack.c.l.b16 %v3560
        %v3785 = vunpack.c.l.b16 %v3561
        %v3786 = vunpack.c.l.b16 %v3562
        %v3787 = vunpack.c.l.b16 %v3563
        %v3788 = vunpack.c.l.b16 %v3564
        %v3789 = vunpack.c.l.b16 %v3565
        %v3790 = vpack.c.b16 %v3759, %v3758
        %v3791 = vpack.c.b16 %v3761, %v3760
        %v3792 = vpack.c.b16 %v3763, %v3762
        %v3793 = vpack.c.b16 %v3765, %v3764
        %v3794 = vpack.c.b16 %v3767, %v3766
        %v3795 = vpack.c.b16 %v3769, %v3768
        %v3796 = vpack.c.b16 %v3771, %v3770
        %v3797 = vpack.c.b16 %v3773, %v3772
        %v3798 = vpack.c.b16 %v3775, %v3774
        %v3799 = vpack.c.b16 %v3777, %v3776
        %v3800 = vpack.c.b16 %v3779, %v3778
        %v3801 = vpack.c.b16 %v3781, %v3780
        %v3802 = vpack.c.b16 %v3783, %v3782
        %v3803 = vpack.c.b16 %v3785, %v3784
        %v3804 = vpack.c.b16 %v3787, %v3786
        %v3805 = vpack.c.b16 %v3789, %v3788
        %v3838 = vunpack.c.l.b16 %v3566
        %v3839 = vunpack.c.l.b16 %v3567
        %v3840 = vunpack.c.l.b16 %v3568
        %v3841 = vunpack.c.l.b16 %v3569
        %v3842 = vunpack.c.l.b16 %v3570
        %v3843 = vunpack.c.l.b16 %v3571
        %v3844 = vunpack.c.l.b16 %v3572
        %v3845 = vunpack.c.l.b16 %v3573
        %v3846 = vunpack.c.l.b16 %v3574
        %v3847 = vunpack.c.l.b16 %v3575
        %v3848 = vunpack.c.l.b16 %v3576
        %v3849 = vunpack.c.l.b16 %v3577
        %v3850 = vunpack.c.l.b16 %v3578
        %v3851 = vunpack.c.l.b16 %v3579
        %v3852 = vunpack.c.l.b16 %v3580
        %v3853 = vunpack.c.l.b16 %v3581
        %v3854 = vpack.c.b16 %v3838, %v3838
        %v3855 = vpack.c.b16 %v3839, %v3839
        %v3856 = vpack.c.b16 %v3840, %v3840
        %v3857 = vpack.c.b16 %v3841, %v3841
        %v3858 = vpack.c.b16 %v3842, %v3842
        %v3859 = vpack.c.b16 %v3843, %v3843
        %v3860 = vpack.c.b16 %v3844, %v3844
        %v3861 = vpack.c.b16 %v3845, %v3845
        %v3862 = vpack.c.b16 %v3846, %v3846
        %v3863 = vpack.c.b16 %v3847, %v3847
        %v3864 = vpack.c.b16 %v3848, %v3848
        %v3865 = vpack.c.b16 %v3849, %v3849
        %v3866 = vpack.c.b16 %v3850, %v3850
        %v3867 = vpack.c.b16 %v3851, %v3851
        %v3868 = vpack.c.b16 %v3852, %v3852
        %v3869 = vpack.c.b16 %v3853, %v3853
        %v3871 = vshrl.u32 %v3790, 16
        %v3873 = vshll.u32 %v3790, 16
        %v3875 = vrot.slane %v3873, 1
        %v3876 = vor.u32 %v3871, %v3875
        %v3878 = vshll.u32 %v3854, 16
        %v3880 = vrot.slane %v3878, 1
        %v3881 = vsel %vm1088, %v3876, %v3880
        %v3883 = vshrl.u32 %v3791, 16
        %v3885 = vshll.u32 %v3791, 16
        %v3887 = vrot.slane %v3885, 1
        %v3888 = vor.u32 %v3883, %v3887
        %v3890 = vshll.u32 %v3855, 16
        %v3892 = vrot.slane %v3890, 1
        %v3893 = vsel %vm1088, %v3888, %v3892
        %v3895 = vshrl.u32 %v3792, 16
        %v3897 = vshll.u32 %v3792, 16
        %v3899 = vrot.slane %v3897, 1
        %v3900 = vor.u32 %v3895, %v3899
        %v3902 = vshll.u32 %v3856, 16
        %v3904 = vrot.slane %v3902, 1
        %v3905 = vsel %vm1088, %v3900, %v3904
        %v3907 = vshrl.u32 %v3793, 16
        %v3909 = vshll.u32 %v3793, 16
        %v3911 = vrot.slane %v3909, 1
        %v3912 = vor.u32 %v3907, %v3911
        %v3914 = vshll.u32 %v3857, 16
        %v3916 = vrot.slane %v3914, 1
        %v3917 = vsel %vm1088, %v3912, %v3916
        %v3919 = vshrl.u32 %v3794, 16
        %v3921 = vshll.u32 %v3794, 16
        %v3923 = vrot.slane %v3921, 1
        %v3924 = vor.u32 %v3919, %v3923
        %v3926 = vshll.u32 %v3858, 16
        %v3928 = vrot.slane %v3926, 1
        %v3929 = vsel %vm1088, %v3924, %v3928
        %v3931 = vshrl.u32 %v3795, 16
        %v3933 = vshll.u32 %v3795, 16
        %v3935 = vrot.slane %v3933, 1
        %v3936 = vor.u32 %v3931, %v3935
        %v3938 = vshll.u32 %v3859, 16
        %v3940 = vrot.slane %v3938, 1
        %v3941 = vsel %vm1088, %v3936, %v3940
        %v3943 = vshrl.u32 %v3796, 16
        %v3945 = vshll.u32 %v3796, 16
        %v3947 = vrot.slane %v3945, 1
        %v3948 = vor.u32 %v3943, %v3947
        %v3950 = vshll.u32 %v3860, 16
        %v3952 = vrot.slane %v3950, 1
        %v3953 = vsel %vm1088, %v3948, %v3952
        %v3955 = vshrl.u32 %v3797, 16
        %v3957 = vshll.u32 %v3797, 16
        %v3959 = vrot.slane %v3957, 1
        %v3960 = vor.u32 %v3955, %v3959
        %v3962 = vshll.u32 %v3861, 16
        %v3964 = vrot.slane %v3962, 1
        %v3965 = vsel %vm1088, %v3960, %v3964
        %v3967 = vshrl.u32 %v3798, 16
        %v3969 = vshll.u32 %v3798, 16
        %v3971 = vrot.slane %v3969, 1
        %v3972 = vor.u32 %v3967, %v3971
        %v3974 = vshll.u32 %v3862, 16
        %v3976 = vrot.slane %v3974, 1
        %v3977 = vsel %vm1088, %v3972, %v3976
        %v3979 = vshrl.u32 %v3799, 16
        %v3981 = vshll.u32 %v3799, 16
        %v3983 = vrot.slane %v3981, 1
        %v3984 = vor.u32 %v3979, %v3983
        %v3986 = vshll.u32 %v3863, 16
        %v3988 = vrot.slane %v3986, 1
        %v3989 = vsel %vm1088, %v3984, %v3988
        %v3991 = vshrl.u32 %v3800, 16
        %v3993 = vshll.u32 %v3800, 16
        %v3995 = vrot.slane %v3993, 1
        %v3996 = vor.u32 %v3991, %v3995
        %v3998 = vshll.u32 %v3864, 16
        %v4000 = vrot.slane %v3998, 1
        %v4001 = vsel %vm1088, %v3996, %v4000
        %v4003 = vshrl.u32 %v3801, 16
        %v4005 = vshll.u32 %v3801, 16
        %v4007 = vrot.slane %v4005, 1
        %v4008 = vor.u32 %v4003, %v4007
        %v4010 = vshll.u32 %v3865, 16
        %v4012 = vrot.slane %v4010, 1
        %v4013 = vsel %vm1088, %v4008, %v4012
        %v4015 = vshrl.u32 %v3802, 16
        %v4017 = vshll.u32 %v3802, 16
        %v4019 = vrot.slane %v4017, 1
        %v4020 = vor.u32 %v4015, %v4019
        %v4022 = vshll.u32 %v3866, 16
        %v4024 = vrot.slane %v4022, 1
        %v4025 = vsel %vm1088, %v4020, %v4024
        %v4027 = vshrl.u32 %v3803, 16
        %v4029 = vshll.u32 %v3803, 16
        %v4031 = vrot.slane %v4029, 1
        %v4032 = vor.u32 %v4027, %v4031
        %v4034 = vshll.u32 %v3867, 16
        %v4036 = vrot.slane %v4034, 1
        %v4037 = vsel %vm1088, %v4032, %v4036
        %v4039 = vshrl.u32 %v3804, 16
        %v4041 = vshll.u32 %v3804, 16
        %v4043 = vrot.slane %v4041, 1
        %v4044 = vor.u32 %v4039, %v4043
        %v4046 = vshll.u32 %v3868, 16
        %v4048 = vrot.slane %v4046, 1
        %v4049 = vsel %vm1088, %v4044, %v4048
        %v4051 = vshrl.u32 %v3805, 16
        %v4053 = vshll.u32 %v3805, 16
        %v4055 = vrot.slane %v4053, 1
        %v4056 = vor.u32 %v4051, %v4055
        %v4058 = vshll.u32 %v3869, 16
        %v4060 = vrot.slane %v4058, 1
        %v4061 = vsel %vm1088, %v4056, %v4060
        %v4094 = vunpack.c.l.b16 %v3582
        %v4095 = vunpack.c.l.b16 %v3583
        %v4096 = vunpack.c.l.b16 %v3584
        %v4097 = vunpack.c.l.b16 %v3585
        %v4098 = vunpack.c.l.b16 %v3586
        %v4099 = vunpack.c.l.b16 %v3587
        %v4100 = vunpack.c.l.b16 %v3588
        %v4101 = vunpack.c.l.b16 %v3589
        %v4102 = vunpack.c.l.b16 %v3590
        %v4103 = vunpack.c.l.b16 %v3591
        %v4104 = vunpack.c.l.b16 %v3592
        %v4105 = vunpack.c.l.b16 %v3593
        %v4106 = vunpack.c.l.b16 %v3594
        %v4107 = vunpack.c.l.b16 %v3595
        %v4108 = vunpack.c.l.b16 %v3596
        %v4109 = vunpack.c.l.b16 %v3597
        %v4110 = vpack.c.b16 %v3759, %v4094
        %v4111 = vpack.c.b16 %v3761, %v4095
        %v4112 = vpack.c.b16 %v3763, %v4096
        %v4113 = vpack.c.b16 %v3765, %v4097
        %v4114 = vpack.c.b16 %v3767, %v4098
        %v4115 = vpack.c.b16 %v3769, %v4099
        %v4116 = vpack.c.b16 %v3771, %v4100
        %v4117 = vpack.c.b16 %v3773, %v4101
        %v4118 = vpack.c.b16 %v3775, %v4102
        %v4119 = vpack.c.b16 %v3777, %v4103
        %v4120 = vpack.c.b16 %v3779, %v4104
        %v4121 = vpack.c.b16 %v3781, %v4105
        %v4122 = vpack.c.b16 %v3783, %v4106
        %v4123 = vpack.c.b16 %v3785, %v4107
        %v4124 = vpack.c.b16 %v3787, %v4108
        %v4125 = vpack.c.b16 %v3789, %v4109
        %v4126 = vrot.slane %v4110, 1
        %v4127 = vrot.slane %v3854, 1
        %v4128 = vsel %vm1361, %v4126, %v4127
        %v4129 = vrot.slane %v4111, 1
        %v4130 = vrot.slane %v3855, 1
        %v4131 = vsel %vm1361, %v4129, %v4130
        %v4132 = vrot.slane %v4112, 1
        %v4133 = vrot.slane %v3856, 1
        %v4134 = vsel %vm1361, %v4132, %v4133
        %v4135 = vrot.slane %v4113, 1
        %v4136 = vrot.slane %v3857, 1
        %v4137 = vsel %vm1361, %v4135, %v4136
        %v4138 = vrot.slane %v4114, 1
        %v4139 = vrot.slane %v3858, 1
        %v4140 = vsel %vm1361, %v4138, %v4139
        %v4141 = vrot.slane %v4115, 1
        %v4142 = vrot.slane %v3859, 1
        %v4143 = vsel %vm1361, %v4141, %v4142
        %v4144 = vrot.slane %v4116, 1
        %v4145 = vrot.slane %v3860, 1
        %v4146 = vsel %vm1361, %v4144, %v4145
        %v4147 = vrot.slane %v4117, 1
        %v4148 = vrot.slane %v3861, 1
        %v4149 = vsel %vm1361, %v4147, %v4148
        %v4150 = vrot.slane %v4118, 1
        %v4151 = vrot.slane %v3862, 1
        %v4152 = vsel %vm1361, %v4150, %v4151
        %v4153 = vrot.slane %v4119, 1
        %v4154 = vrot.slane %v3863, 1
        %v4155 = vsel %vm1361, %v4153, %v4154
        %v4156 = vrot.slane %v4120, 1
        %v4157 = vrot.slane %v3864, 1
        %v4158 = vsel %vm1361, %v4156, %v4157
        %v4159 = vrot.slane %v4121, 1
        %v4160 = vrot.slane %v3865, 1
        %v4161 = vsel %vm1361, %v4159, %v4160
        %v4162 = vrot.slane %v4122, 1
        %v4163 = vrot.slane %v3866, 1
        %v4164 = vsel %vm1361, %v4162, %v4163
        %v4165 = vrot.slane %v4123, 1
        %v4166 = vrot.slane %v3867, 1
        %v4167 = vsel %vm1361, %v4165, %v4166
        %v4168 = vrot.slane %v4124, 1
        %v4169 = vrot.slane %v3868, 1
        %v4170 = vsel %vm1361, %v4168, %v4169
        %v4171 = vrot.slane %v4125, 1
        %v4172 = vrot.slane %v3869, 1
        %v4173 = vsel %vm1361, %v4171, %v4172
        %v4222 = vunpack.c.l.b16 %v3598
        %v4223 = vunpack.c.l.b16 %v3599
        %v4224 = vunpack.c.l.b16 %v3600
        %v4225 = vunpack.c.l.b16 %v3601
        %v4226 = vunpack.c.l.b16 %v3602
        %v4227 = vunpack.c.l.b16 %v3603
        %v4228 = vunpack.c.l.b16 %v3604
        %v4229 = vunpack.c.l.b16 %v3605
        %v4230 = vunpack.c.l.b16 %v3606
        %v4231 = vunpack.c.l.b16 %v3607
        %v4232 = vunpack.c.l.b16 %v3608
        %v4233 = vunpack.c.l.b16 %v3609
        %v4234 = vunpack.c.l.b16 %v3610
        %v4235 = vunpack.c.l.b16 %v3611
        %v4236 = vunpack.c.l.b16 %v3612
        %v4237 = vunpack.c.l.b16 %v3613
        %v4238 = vunpack.c.l.b16 %v3614
        %v4239 = vunpack.c.l.b16 %v3615
        %v4240 = vunpack.c.l.b16 %v3616
        %v4241 = vunpack.c.l.b16 %v3617
        %v4242 = vunpack.c.l.b16 %v3618
        %v4243 = vunpack.c.l.b16 %v3619
        %v4244 = vunpack.c.l.b16 %v3620
        %v4245 = vunpack.c.l.b16 %v3621
        %v4246 = vunpack.c.l.b16 %v3622
        %v4247 = vunpack.c.l.b16 %v3623
        %v4248 = vunpack.c.l.b16 %v3624
        %v4249 = vunpack.c.l.b16 %v3625
        %v4250 = vunpack.c.l.b16 %v3626
        %v4251 = vunpack.c.l.b16 %v3627
        %v4252 = vunpack.c.l.b16 %v3628
        %v4253 = vunpack.c.l.b16 %v3629
        %v4254 = vpack.c.b16 %v4223, %v4222
        %v4255 = vpack.c.b16 %v4225, %v4224
        %v4256 = vpack.c.b16 %v4227, %v4226
        %v4257 = vpack.c.b16 %v4229, %v4228
        %v4258 = vpack.c.b16 %v4231, %v4230
        %v4259 = vpack.c.b16 %v4233, %v4232
        %v4260 = vpack.c.b16 %v4235, %v4234
        %v4261 = vpack.c.b16 %v4237, %v4236
        %v4262 = vpack.c.b16 %v4239, %v4238
        %v4263 = vpack.c.b16 %v4241, %v4240
        %v4264 = vpack.c.b16 %v4243, %v4242
        %v4265 = vpack.c.b16 %v4245, %v4244
        %v4266 = vpack.c.b16 %v4247, %v4246
        %v4267 = vpack.c.b16 %v4249, %v4248
        %v4268 = vpack.c.b16 %v4251, %v4250
        %v4269 = vpack.c.b16 %v4253, %v4252
        %v4302 = vunpack.c.l.b16 %v3630
        %v4303 = vunpack.c.l.b16 %v3631
        %v4304 = vunpack.c.l.b16 %v3632
        %v4305 = vunpack.c.l.b16 %v3633
        %v4306 = vunpack.c.l.b16 %v3634
        %v4307 = vunpack.c.l.b16 %v3635
        %v4308 = vunpack.c.l.b16 %v3636
        %v4309 = vunpack.c.l.b16 %v3637
        %v4310 = vunpack.c.l.b16 %v3638
        %v4311 = vunpack.c.l.b16 %v3639
        %v4312 = vunpack.c.l.b16 %v3640
        %v4313 = vunpack.c.l.b16 %v3641
        %v4314 = vunpack.c.l.b16 %v3642
        %v4315 = vunpack.c.l.b16 %v3643
        %v4316 = vunpack.c.l.b16 %v3644
        %v4317 = vunpack.c.l.b16 %v3645
        %v4318 = vpack.c.b16 %v4302, %v4302
        %v4319 = vpack.c.b16 %v4303, %v4303
        %v4320 = vpack.c.b16 %v4304, %v4304
        %v4321 = vpack.c.b16 %v4305, %v4305
        %v4322 = vpack.c.b16 %v4306, %v4306
        %v4323 = vpack.c.b16 %v4307, %v4307
        %v4324 = vpack.c.b16 %v4308, %v4308
        %v4325 = vpack.c.b16 %v4309, %v4309
        %v4326 = vpack.c.b16 %v4310, %v4310
        %v4327 = vpack.c.b16 %v4311, %v4311
        %v4328 = vpack.c.b16 %v4312, %v4312
        %v4329 = vpack.c.b16 %v4313, %v4313
        %v4330 = vpack.c.b16 %v4314, %v4314
        %v4331 = vpack.c.b16 %v4315, %v4315
        %v4332 = vpack.c.b16 %v4316, %v4316
        %v4333 = vpack.c.b16 %v4317, %v4317
        %v4335 = vshrl.u32 %v4254, 16
        %v4337 = vshll.u32 %v4254, 16
        %v4339 = vrot.slane %v4337, 1
        %v4340 = vor.u32 %v4335, %v4339
        %v4342 = vshll.u32 %v4318, 16
        %v4344 = vrot.slane %v4342, 1
        %v4345 = vsel %vm1088, %v4340, %v4344
        %v4347 = vshrl.u32 %v4255, 16
        %v4349 = vshll.u32 %v4255, 16
        %v4351 = vrot.slane %v4349, 1
        %v4352 = vor.u32 %v4347, %v4351
        %v4354 = vshll.u32 %v4319, 16
        %v4356 = vrot.slane %v4354, 1
        %v4357 = vsel %vm1088, %v4352, %v4356
        %v4359 = vshrl.u32 %v4256, 16
        %v4361 = vshll.u32 %v4256, 16
        %v4363 = vrot.slane %v4361, 1
        %v4364 = vor.u32 %v4359, %v4363
        %v4366 = vshll.u32 %v4320, 16
        %v4368 = vrot.slane %v4366, 1
        %v4369 = vsel %vm1088, %v4364, %v4368
        %v4371 = vshrl.u32 %v4257, 16
        %v4373 = vshll.u32 %v4257, 16
        %v4375 = vrot.slane %v4373, 1
        %v4376 = vor.u32 %v4371, %v4375
        %v4378 = vshll.u32 %v4321, 16
        %v4380 = vrot.slane %v4378, 1
        %v4381 = vsel %vm1088, %v4376, %v4380
        %v4383 = vshrl.u32 %v4258, 16
        %v4385 = vshll.u32 %v4258, 16
        %v4387 = vrot.slane %v4385, 1
        %v4388 = vor.u32 %v4383, %v4387
        %v4390 = vshll.u32 %v4322, 16
        %v4392 = vrot.slane %v4390, 1
        %v4393 = vsel %vm1088, %v4388, %v4392
        %v4395 = vshrl.u32 %v4259, 16
        %v4397 = vshll.u32 %v4259, 16
        %v4399 = vrot.slane %v4397, 1
        %v4400 = vor.u32 %v4395, %v4399
        %v4402 = vshll.u32 %v4323, 16
        %v4404 = vrot.slane %v4402, 1
        %v4405 = vsel %vm1088, %v4400, %v4404
        %v4407 = vshrl.u32 %v4260, 16
        %v4409 = vshll.u32 %v4260, 16
        %v4411 = vrot.slane %v4409, 1
        %v4412 = vor.u32 %v4407, %v4411
        %v4414 = vshll.u32 %v4324, 16
        %v4416 = vrot.slane %v4414, 1
        %v4417 = vsel %vm1088, %v4412, %v4416
        %v4419 = vshrl.u32 %v4261, 16
        %v4421 = vshll.u32 %v4261, 16
        %v4423 = vrot.slane %v4421, 1
        %v4424 = vor.u32 %v4419, %v4423
        %v4426 = vshll.u32 %v4325, 16
        %v4428 = vrot.slane %v4426, 1
        %v4429 = vsel %vm1088, %v4424, %v4428
        %v4431 = vshrl.u32 %v4262, 16
        %v4433 = vshll.u32 %v4262, 16
        %v4435 = vrot.slane %v4433, 1
        %v4436 = vor.u32 %v4431, %v4435
        %v4438 = vshll.u32 %v4326, 16
        %v4440 = vrot.slane %v4438, 1
        %v4441 = vsel %vm1088, %v4436, %v4440
        %v4443 = vshrl.u32 %v4263, 16
        %v4445 = vshll.u32 %v4263, 16
        %v4447 = vrot.slane %v4445, 1
        %v4448 = vor.u32 %v4443, %v4447
        %v4450 = vshll.u32 %v4327, 16
        %v4452 = vrot.slane %v4450, 1
        %v4453 = vsel %vm1088, %v4448, %v4452
        %v4455 = vshrl.u32 %v4264, 16
        %v4457 = vshll.u32 %v4264, 16
        %v4459 = vrot.slane %v4457, 1
        %v4460 = vor.u32 %v4455, %v4459
        %v4462 = vshll.u32 %v4328, 16
        %v4464 = vrot.slane %v4462, 1
        %v4465 = vsel %vm1088, %v4460, %v4464
        %v4467 = vshrl.u32 %v4265, 16
        %v4469 = vshll.u32 %v4265, 16
        %v4471 = vrot.slane %v4469, 1
        %v4472 = vor.u32 %v4467, %v4471
        %v4474 = vshll.u32 %v4329, 16
        %v4476 = vrot.slane %v4474, 1
        %v4477 = vsel %vm1088, %v4472, %v4476
        %v4479 = vshrl.u32 %v4266, 16
        %v4481 = vshll.u32 %v4266, 16
        %v4483 = vrot.slane %v4481, 1
        %v4484 = vor.u32 %v4479, %v4483
        %v4486 = vshll.u32 %v4330, 16
        %v4488 = vrot.slane %v4486, 1
        %v4489 = vsel %vm1088, %v4484, %v4488
        %v4491 = vshrl.u32 %v4267, 16
        %v4493 = vshll.u32 %v4267, 16
        %v4495 = vrot.slane %v4493, 1
        %v4496 = vor.u32 %v4491, %v4495
        %v4498 = vshll.u32 %v4331, 16
        %v4500 = vrot.slane %v4498, 1
        %v4501 = vsel %vm1088, %v4496, %v4500
        %v4503 = vshrl.u32 %v4268, 16
        %v4505 = vshll.u32 %v4268, 16
        %v4507 = vrot.slane %v4505, 1
        %v4508 = vor.u32 %v4503, %v4507
        %v4510 = vshll.u32 %v4332, 16
        %v4512 = vrot.slane %v4510, 1
        %v4513 = vsel %vm1088, %v4508, %v4512
        %v4515 = vshrl.u32 %v4269, 16
        %v4517 = vshll.u32 %v4269, 16
        %v4519 = vrot.slane %v4517, 1
        %v4520 = vor.u32 %v4515, %v4519
        %v4522 = vshll.u32 %v4333, 16
        %v4524 = vrot.slane %v4522, 1
        %v4525 = vsel %vm1088, %v4520, %v4524
        %v4558 = vunpack.c.l.b16 %v3646
        %v4559 = vunpack.c.l.b16 %v3647
        %v4560 = vunpack.c.l.b16 %v3648
        %v4561 = vunpack.c.l.b16 %v3649
        %v4562 = vunpack.c.l.b16 %v3650
        %v4563 = vunpack.c.l.b16 %v3651
        %v4564 = vunpack.c.l.b16 %v3652
        %v4565 = vunpack.c.l.b16 %v3653
        %v4566 = vunpack.c.l.b16 %v3654
        %v4567 = vunpack.c.l.b16 %v3655
        %v4568 = vunpack.c.l.b16 %v3656
        %v4569 = vunpack.c.l.b16 %v3657
        %v4570 = vunpack.c.l.b16 %v3658
        %v4571 = vunpack.c.l.b16 %v3659
        %v4572 = vunpack.c.l.b16 %v3660
        %v4573 = vunpack.c.l.b16 %v3661
        %v4574 = vpack.c.b16 %v4223, %v4558
        %v4575 = vpack.c.b16 %v4225, %v4559
        %v4576 = vpack.c.b16 %v4227, %v4560
        %v4577 = vpack.c.b16 %v4229, %v4561
        %v4578 = vpack.c.b16 %v4231, %v4562
        %v4579 = vpack.c.b16 %v4233, %v4563
        %v4580 = vpack.c.b16 %v4235, %v4564
        %v4581 = vpack.c.b16 %v4237, %v4565
        %v4582 = vpack.c.b16 %v4239, %v4566
        %v4583 = vpack.c.b16 %v4241, %v4567
        %v4584 = vpack.c.b16 %v4243, %v4568
        %v4585 = vpack.c.b16 %v4245, %v4569
        %v4586 = vpack.c.b16 %v4247, %v4570
        %v4587 = vpack.c.b16 %v4249, %v4571
        %v4588 = vpack.c.b16 %v4251, %v4572
        %v4589 = vpack.c.b16 %v4253, %v4573
        %v4590 = vrot.slane %v4574, 1
        %v4591 = vrot.slane %v4318, 1
        %v4592 = vsel %vm1361, %v4590, %v4591
        %v4593 = vrot.slane %v4575, 1
        %v4594 = vrot.slane %v4319, 1
        %v4595 = vsel %vm1361, %v4593, %v4594
        %v4596 = vrot.slane %v4576, 1
        %v4597 = vrot.slane %v4320, 1
        %v4598 = vsel %vm1361, %v4596, %v4597
        %v4599 = vrot.slane %v4577, 1
        %v4600 = vrot.slane %v4321, 1
        %v4601 = vsel %vm1361, %v4599, %v4600
        %v4602 = vrot.slane %v4578, 1
        %v4603 = vrot.slane %v4322, 1
        %v4604 = vsel %vm1361, %v4602, %v4603
        %v4605 = vrot.slane %v4579, 1
        %v4606 = vrot.slane %v4323, 1
        %v4607 = vsel %vm1361, %v4605, %v4606
        %v4608 = vrot.slane %v4580, 1
        %v4609 = vrot.slane %v4324, 1
        %v4610 = vsel %vm1361, %v4608, %v4609
        %v4611 = vrot.slane %v4581, 1
        %v4612 = vrot.slane %v4325, 1
        %v4613 = vsel %vm1361, %v4611, %v4612
        %v4614 = vrot.slane %v4582, 1
        %v4615 = vrot.slane %v4326, 1
        %v4616 = vsel %vm1361, %v4614, %v4615
        %v4617 = vrot.slane %v4583, 1
        %v4618 = vrot.slane %v4327, 1
        %v4619 = vsel %vm1361, %v4617, %v4618
        %v4620 = vrot.slane %v4584, 1
        %v4621 = vrot.slane %v4328, 1
        %v4622 = vsel %vm1361, %v4620, %v4621
        %v4623 = vrot.slane %v4585, 1
        %v4624 = vrot.slane %v4329, 1
        %v4625 = vsel %vm1361, %v4623, %v4624
        %v4626 = vrot.slane %v4586, 1
        %v4627 = vrot.slane %v4330, 1
        %v4628 = vsel %vm1361, %v4626, %v4627
        %v4629 = vrot.slane %v4587, 1
        %v4630 = vrot.slane %v4331, 1
        %v4631 = vsel %vm1361, %v4629, %v4630
        %v4632 = vrot.slane %v4588, 1
        %v4633 = vrot.slane %v4332, 1
        %v4634 = vsel %vm1361, %v4632, %v4633
        %v4635 = vrot.slane %v4589, 1
        %v4636 = vrot.slane %v4333, 1
        %v4637 = vsel %vm1361, %v4635, %v4636
        %v4686 = vunpack.c.l.b16 %v3662
        %v4687 = vunpack.c.l.b16 %v3663
        %v4688 = vunpack.c.l.b16 %v3664
        %v4689 = vunpack.c.l.b16 %v3665
        %v4690 = vunpack.c.l.b16 %v3666
        %v4691 = vunpack.c.l.b16 %v3667
        %v4692 = vunpack.c.l.b16 %v3668
        %v4693 = vunpack.c.l.b16 %v3669
        %v4694 = vunpack.c.l.b16 %v3670
        %v4695 = vunpack.c.l.b16 %v3671
        %v4696 = vunpack.c.l.b16 %v3672
        %v4697 = vunpack.c.l.b16 %v3673
        %v4698 = vunpack.c.l.b16 %v3674
        %v4699 = vunpack.c.l.b16 %v3675
        %v4700 = vunpack.c.l.b16 %v3676
        %v4701 = vunpack.c.l.b16 %v3677
        %v4702 = vunpack.c.l.b16 %v3678
        %v4703 = vunpack.c.l.b16 %v3679
        %v4704 = vunpack.c.l.b16 %v3680
        %v4705 = vunpack.c.l.b16 %v3681
        %v4706 = vunpack.c.l.b16 %v3682
        %v4707 = vunpack.c.l.b16 %v3683
        %v4708 = vunpack.c.l.b16 %v3684
        %v4709 = vunpack.c.l.b16 %v3685
        %v4710 = vunpack.c.l.b16 %v3686
        %v4711 = vunpack.c.l.b16 %v3687
        %v4712 = vunpack.c.l.b16 %v3688
        %v4713 = vunpack.c.l.b16 %v3689
        %v4714 = vunpack.c.l.b16 %v3690
        %v4715 = vunpack.c.l.b16 %v3691
        %v4716 = vunpack.c.l.b16 %v3692
        %v4717 = vunpack.c.l.b16 %v3693
        %v4718 = vpack.c.b16 %v4687, %v4686
        %v4719 = vpack.c.b16 %v4689, %v4688
        %v4720 = vpack.c.b16 %v4691, %v4690
        %v4721 = vpack.c.b16 %v4693, %v4692
        %v4722 = vpack.c.b16 %v4695, %v4694
        %v4723 = vpack.c.b16 %v4697, %v4696
        %v4724 = vpack.c.b16 %v4699, %v4698
        %v4725 = vpack.c.b16 %v4701, %v4700
        %v4726 = vpack.c.b16 %v4703, %v4702
        %v4727 = vpack.c.b16 %v4705, %v4704
        %v4728 = vpack.c.b16 %v4707, %v4706
        %v4729 = vpack.c.b16 %v4709, %v4708
        %v4730 = vpack.c.b16 %v4711, %v4710
        %v4731 = vpack.c.b16 %v4713, %v4712
        %v4732 = vpack.c.b16 %v4715, %v4714
        %v4733 = vpack.c.b16 %v4717, %v4716
        %v4766 = vunpack.c.l.b16 %v3694
        %v4767 = vunpack.c.l.b16 %v3695
        %v4768 = vunpack.c.l.b16 %v3696
        %v4769 = vunpack.c.l.b16 %v3697
        %v4770 = vunpack.c.l.b16 %v3698
        %v4771 = vunpack.c.l.b16 %v3699
        %v4772 = vunpack.c.l.b16 %v3700
        %v4773 = vunpack.c.l.b16 %v3701
        %v4774 = vunpack.c.l.b16 %v3702
        %v4775 = vunpack.c.l.b16 %v3703
        %v4776 = vunpack.c.l.b16 %v3704
        %v4777 = vunpack.c.l.b16 %v3705
        %v4778 = vunpack.c.l.b16 %v3706
        %v4779 = vunpack.c.l.b16 %v3707
        %v4780 = vunpack.c.l.b16 %v3708
        %v4781 = vunpack.c.l.b16 %v3709
        %v4782 = vpack.c.b16 %v4766, %v4766
        %v4783 = vpack.c.b16 %v4767, %v4767
        %v4784 = vpack.c.b16 %v4768, %v4768
        %v4785 = vpack.c.b16 %v4769, %v4769
        %v4786 = vpack.c.b16 %v4770, %v4770
        %v4787 = vpack.c.b16 %v4771, %v4771
        %v4788 = vpack.c.b16 %v4772, %v4772
        %v4789 = vpack.c.b16 %v4773, %v4773
        %v4790 = vpack.c.b16 %v4774, %v4774
        %v4791 = vpack.c.b16 %v4775, %v4775
        %v4792 = vpack.c.b16 %v4776, %v4776
        %v4793 = vpack.c.b16 %v4777, %v4777
        %v4794 = vpack.c.b16 %v4778, %v4778
        %v4795 = vpack.c.b16 %v4779, %v4779
        %v4796 = vpack.c.b16 %v4780, %v4780
        %v4797 = vpack.c.b16 %v4781, %v4781
        %v4799 = vshrl.u32 %v4718, 16
        %v4801 = vshll.u32 %v4718, 16
        %v4803 = vrot.slane %v4801, 1
        %v4804 = vor.u32 %v4799, %v4803
        %v4806 = vshll.u32 %v4782, 16
        %v4808 = vrot.slane %v4806, 1
        %v4809 = vsel %vm1088, %v4804, %v4808
        %v4811 = vshrl.u32 %v4719, 16
        %v4813 = vshll.u32 %v4719, 16
        %v4815 = vrot.slane %v4813, 1
        %v4816 = vor.u32 %v4811, %v4815
        %v4818 = vshll.u32 %v4783, 16
        %v4820 = vrot.slane %v4818, 1
        %v4821 = vsel %vm1088, %v4816, %v4820
        %v4823 = vshrl.u32 %v4720, 16
        %v4825 = vshll.u32 %v4720, 16
        %v4827 = vrot.slane %v4825, 1
        %v4828 = vor.u32 %v4823, %v4827
        %v4830 = vshll.u32 %v4784, 16
        %v4832 = vrot.slane %v4830, 1
        %v4833 = vsel %vm1088, %v4828, %v4832
        %v4835 = vshrl.u32 %v4721, 16
        %v4837 = vshll.u32 %v4721, 16
        %v4839 = vrot.slane %v4837, 1
        %v4840 = vor.u32 %v4835, %v4839
        %v4842 = vshll.u32 %v4785, 16
        %v4844 = vrot.slane %v4842, 1
        %v4845 = vsel %vm1088, %v4840, %v4844
        %v4847 = vshrl.u32 %v4722, 16
        %v4849 = vshll.u32 %v4722, 16
        %v4851 = vrot.slane %v4849, 1
        %v4852 = vor.u32 %v4847, %v4851
        %v4854 = vshll.u32 %v4786, 16
        %v4856 = vrot.slane %v4854, 1
        %v4857 = vsel %vm1088, %v4852, %v4856
        %v4859 = vshrl.u32 %v4723, 16
        %v4861 = vshll.u32 %v4723, 16
        %v4863 = vrot.slane %v4861, 1
        %v4864 = vor.u32 %v4859, %v4863
        %v4866 = vshll.u32 %v4787, 16
        %v4868 = vrot.slane %v4866, 1
        %v4869 = vsel %vm1088, %v4864, %v4868
        %v4871 = vshrl.u32 %v4724, 16
        %v4873 = vshll.u32 %v4724, 16
        %v4875 = vrot.slane %v4873, 1
        %v4876 = vor.u32 %v4871, %v4875
        %v4878 = vshll.u32 %v4788, 16
        %v4880 = vrot.slane %v4878, 1
        %v4881 = vsel %vm1088, %v4876, %v4880
        %v4883 = vshrl.u32 %v4725, 16
        %v4885 = vshll.u32 %v4725, 16
        %v4887 = vrot.slane %v4885, 1
        %v4888 = vor.u32 %v4883, %v4887
        %v4890 = vshll.u32 %v4789, 16
        %v4892 = vrot.slane %v4890, 1
        %v4893 = vsel %vm1088, %v4888, %v4892
        %v4895 = vshrl.u32 %v4726, 16
        %v4897 = vshll.u32 %v4726, 16
        %v4899 = vrot.slane %v4897, 1
        %v4900 = vor.u32 %v4895, %v4899
        %v4902 = vshll.u32 %v4790, 16
        %v4904 = vrot.slane %v4902, 1
        %v4905 = vsel %vm1088, %v4900, %v4904
        %v4907 = vshrl.u32 %v4727, 16
        %v4909 = vshll.u32 %v4727, 16
        %v4911 = vrot.slane %v4909, 1
        %v4912 = vor.u32 %v4907, %v4911
        %v4914 = vshll.u32 %v4791, 16
        %v4916 = vrot.slane %v4914, 1
        %v4917 = vsel %vm1088, %v4912, %v4916
        %v4919 = vshrl.u32 %v4728, 16
        %v4921 = vshll.u32 %v4728, 16
        %v4923 = vrot.slane %v4921, 1
        %v4924 = vor.u32 %v4919, %v4923
        %v4926 = vshll.u32 %v4792, 16
        %v4928 = vrot.slane %v4926, 1
        %v4929 = vsel %vm1088, %v4924, %v4928
        %v4931 = vshrl.u32 %v4729, 16
        %v4933 = vshll.u32 %v4729, 16
        %v4935 = vrot.slane %v4933, 1
        %v4936 = vor.u32 %v4931, %v4935
        %v4938 = vshll.u32 %v4793, 16
        %v4940 = vrot.slane %v4938, 1
        %v4941 = vsel %vm1088, %v4936, %v4940
        %v4943 = vshrl.u32 %v4730, 16
        %v4945 = vshll.u32 %v4730, 16
        %v4947 = vrot.slane %v4945, 1
        %v4948 = vor.u32 %v4943, %v4947
        %v4950 = vshll.u32 %v4794, 16
        %v4952 = vrot.slane %v4950, 1
        %v4953 = vsel %vm1088, %v4948, %v4952
        %v4955 = vshrl.u32 %v4731, 16
        %v4957 = vshll.u32 %v4731, 16
        %v4959 = vrot.slane %v4957, 1
        %v4960 = vor.u32 %v4955, %v4959
        %v4962 = vshll.u32 %v4795, 16
        %v4964 = vrot.slane %v4962, 1
        %v4965 = vsel %vm1088, %v4960, %v4964
        %v4967 = vshrl.u32 %v4732, 16
        %v4969 = vshll.u32 %v4732, 16
        %v4971 = vrot.slane %v4969, 1
        %v4972 = vor.u32 %v4967, %v4971
        %v4974 = vshll.u32 %v4796, 16
        %v4976 = vrot.slane %v4974, 1
        %v4977 = vsel %vm1088, %v4972, %v4976
        %v4979 = vshrl.u32 %v4733, 16
        %v4981 = vshll.u32 %v4733, 16
        %v4983 = vrot.slane %v4981, 1
        %v4984 = vor.u32 %v4979, %v4983
        %v4986 = vshll.u32 %v4797, 16
        %v4988 = vrot.slane %v4986, 1
        %v4989 = vsel %vm1088, %v4984, %v4988
        %v5022 = vunpack.c.l.b16 %v3710
        %v5023 = vunpack.c.l.b16 %v3711
        %v5024 = vunpack.c.l.b16 %v3712
        %v5025 = vunpack.c.l.b16 %v3713
        %v5026 = vunpack.c.l.b16 %v3714
        %v5027 = vunpack.c.l.b16 %v3715
        %v5028 = vunpack.c.l.b16 %v3716
        %v5029 = vunpack.c.l.b16 %v3717
        %v5030 = vunpack.c.l.b16 %v3718
        %v5031 = vunpack.c.l.b16 %v3719
        %v5032 = vunpack.c.l.b16 %v3720
        %v5033 = vunpack.c.l.b16 %v3721
        %v5034 = vunpack.c.l.b16 %v3722
        %v5035 = vunpack.c.l.b16 %v3723
        %v5036 = vunpack.c.l.b16 %v3724
        %v5037 = vunpack.c.l.b16 %v3725
        %v5038 = vpack.c.b16 %v4687, %v5022
        %v5039 = vpack.c.b16 %v4689, %v5023
        %v5040 = vpack.c.b16 %v4691, %v5024
        %v5041 = vpack.c.b16 %v4693, %v5025
        %v5042 = vpack.c.b16 %v4695, %v5026
        %v5043 = vpack.c.b16 %v4697, %v5027
        %v5044 = vpack.c.b16 %v4699, %v5028
        %v5045 = vpack.c.b16 %v4701, %v5029
        %v5046 = vpack.c.b16 %v4703, %v5030
        %v5047 = vpack.c.b16 %v4705, %v5031
        %v5048 = vpack.c.b16 %v4707, %v5032
        %v5049 = vpack.c.b16 %v4709, %v5033
        %v5050 = vpack.c.b16 %v4711, %v5034
        %v5051 = vpack.c.b16 %v4713, %v5035
        %v5052 = vpack.c.b16 %v4715, %v5036
        %v5053 = vpack.c.b16 %v4717, %v5037
        %v5054 = vrot.slane %v5038, 1
        %v5055 = vrot.slane %v4782, 1
        %v5056 = vsel %vm1361, %v5054, %v5055
        %v5057 = vrot.slane %v5039, 1
        %v5058 = vrot.slane %v4783, 1
        %v5059 = vsel %vm1361, %v5057, %v5058
        %v5060 = vrot.slane %v5040, 1
        %v5061 = vrot.slane %v4784, 1
        %v5062 = vsel %vm1361, %v5060, %v5061
        %v5063 = vrot.slane %v5041, 1
        %v5064 = vrot.slane %v4785, 1
        %v5065 = vsel %vm1361, %v5063, %v5064
        %v5066 = vrot.slane %v5042, 1
        %v5067 = vrot.slane %v4786, 1
        %v5068 = vsel %vm1361, %v5066, %v5067
        %v5069 = vrot.slane %v5043, 1
        %v5070 = vrot.slane %v4787, 1
        %v5071 = vsel %vm1361, %v5069, %v5070
        %v5072 = vrot.slane %v5044, 1
        %v5073 = vrot.slane %v4788, 1
        %v5074 = vsel %vm1361, %v5072, %v5073
        %v5075 = vrot.slane %v5045, 1
        %v5076 = vrot.slane %v4789, 1
        %v5077 = vsel %vm1361, %v5075, %v5076
        %v5078 = vrot.slane %v5046, 1
        %v5079 = vrot.slane %v4790, 1
        %v5080 = vsel %vm1361, %v5078, %v5079
        %v5081 = vrot.slane %v5047, 1
        %v5082 = vrot.slane %v4791, 1
        %v5083 = vsel %vm1361, %v5081, %v5082
        %v5084 = vrot.slane %v5048, 1
        %v5085 = vrot.slane %v4792, 1
        %v5086 = vsel %vm1361, %v5084, %v5085
        %v5087 = vrot.slane %v5049, 1
        %v5088 = vrot.slane %v4793, 1
        %v5089 = vsel %vm1361, %v5087, %v5088
        %v5090 = vrot.slane %v5050, 1
        %v5091 = vrot.slane %v4794, 1
        %v5092 = vsel %vm1361, %v5090, %v5091
        %v5093 = vrot.slane %v5051, 1
        %v5094 = vrot.slane %v4795, 1
        %v5095 = vsel %vm1361, %v5093, %v5094
        %v5096 = vrot.slane %v5052, 1
        %v5097 = vrot.slane %v4796, 1
        %v5098 = vsel %vm1361, %v5096, %v5097
        %v5099 = vrot.slane %v5053, 1
        %v5100 = vrot.slane %v4797, 1
        %v5101 = vsel %vm1361, %v5099, %v5100
        %v5118 = vld [vmem:[#allocation3] sm:$0xf]
        %v5119 = vld [vmem:[#allocation3 + $0x4] sm:$0xf]
        %v5120 = vld [vmem:[#allocation3 + $0x8] sm:$0xf]
        %v5121 = vld [vmem:[#allocation3 + $0xc] sm:$0xf]
        %v5122 = vld [vmem:[#allocation3 + $0x10] sm:$0xf]
        %v5123 = vld [vmem:[#allocation3 + $0x14] sm:$0xf]
        %v5124 = vld [vmem:[#allocation3 + $0x18] sm:$0xf]
        %v5125 = vld [vmem:[#allocation3 + $0x1c] sm:$0xf]
        %v5126 = vld [vmem:[#allocation3 + $0x20] sm:$0xf]
        %v5127 = vld [vmem:[#allocation3 + $0x24] sm:$0xf]
        %v5128 = vld [vmem:[#allocation3 + $0x28] sm:$0xf]
        %v5129 = vld [vmem:[#allocation3 + $0x2c] sm:$0xf]
        %v5130 = vld [vmem:[#allocation3 + $0x30] sm:$0xf]
        %v5131 = vld [vmem:[#allocation3 + $0x34] sm:$0xf]
        %v5132 = vld [vmem:[#allocation3 + $0x38] sm:$0xf]
        %v5133 = vld [vmem:[#allocation3 + $0x3c] sm:$0xf]
        %v5134 = vld [vmem:[#allocation3 + $0x40] sm:$0xf]
        %v5135 = vld [vmem:[#allocation3 + $0x44] sm:$0xf]
        %v5136 = vld [vmem:[#allocation3 + $0x48] sm:$0xf]
        %v5137 = vld [vmem:[#allocation3 + $0x4c] sm:$0xf]
        %v5138 = vld [vmem:[#allocation3 + $0x50] sm:$0xf]
        %v5139 = vld [vmem:[#allocation3 + $0x54] sm:$0xf]
        %v5140 = vld [vmem:[#allocation3 + $0x58] sm:$0xf]
        %v5141 = vld [vmem:[#allocation3 + $0x5c] sm:$0xf]
        %v5142 = vld [vmem:[#allocation3 + $0x60] sm:$0xf]
        %v5143 = vld [vmem:[#allocation3 + $0x64] sm:$0xf]
        %v5144 = vld [vmem:[#allocation3 + $0x68] sm:$0xf]
        %v5145 = vld [vmem:[#allocation3 + $0x6c] sm:$0xf]
        %v5146 = vld [vmem:[#allocation3 + $0x70] sm:$0xf]
        %v5147 = vld [vmem:[#allocation3 + $0x74] sm:$0xf]
        %v5148 = vld [vmem:[#allocation3 + $0x78] sm:$0xf]
        %v5149 = vld [vmem:[#allocation3 + $0x7c] sm:$0xf]
        %v5150 = vld [vmem:[#allocation3 + $0x80] sm:$0xf]
        %v5151 = vld [vmem:[#allocation3 + $0x84] sm:$0xf]
        %v5152 = vld [vmem:[#allocation3 + $0x88] sm:$0xf]
        %v5153 = vld [vmem:[#allocation3 + $0x8c] sm:$0xf]
        %v5154 = vld [vmem:[#allocation3 + $0x90] sm:$0xf]
        %v5155 = vld [vmem:[#allocation3 + $0x94] sm:$0xf]
        %v5156 = vld [vmem:[#allocation3 + $0x98] sm:$0xf]
        %v5157 = vld [vmem:[#allocation3 + $0x9c] sm:$0xf]
        %v5158 = vld [vmem:[#allocation3 + $0xa0] sm:$0xf]
        %v5159 = vld [vmem:[#allocation3 + $0xa4] sm:$0xf]
        %v5160 = vld [vmem:[#allocation3 + $0xa8] sm:$0xf]
        %v5161 = vld [vmem:[#allocation3 + $0xac] sm:$0xf]
        %v5162 = vld [vmem:[#allocation3 + $0xb0] sm:$0xf]
        %v5163 = vld [vmem:[#allocation3 + $0xb4] sm:$0xf]
        %v5164 = vld [vmem:[#allocation3 + $0xb8] sm:$0xf]
        %v5165 = vld [vmem:[#allocation3 + $0xbc] sm:$0xf]
        %v5166 = vld [vmem:[#allocation3 + $0xc0] sm:$0xf]
        %v5167 = vld [vmem:[#allocation3 + $0xc4] sm:$0xf]
        %v5168 = vld [vmem:[#allocation3 + $0xc8] sm:$0xf]
        %v5169 = vld [vmem:[#allocation3 + $0xcc] sm:$0xf]
        %v5170 = vld [vmem:[#allocation3 + $0xd0] sm:$0xf]
        %v5171 = vld [vmem:[#allocation3 + $0xd4] sm:$0xf]
        %v5172 = vld [vmem:[#allocation3 + $0xd8] sm:$0xf]
        %v5173 = vld [vmem:[#allocation3 + $0xdc] sm:$0xf]
        %v5174 = vld [vmem:[#allocation3 + $0xe0] sm:$0xf]
        %v5175 = vld [vmem:[#allocation3 + $0xe4] sm:$0xf]
        %v5176 = vld [vmem:[#allocation3 + $0xe8] sm:$0xf]
        %v5177 = vld [vmem:[#allocation3 + $0xec] sm:$0xf]
        %v5178 = vld [vmem:[#allocation3 + $0xf0] sm:$0xf]
        %v5179 = vld [vmem:[#allocation3 + $0xf4] sm:$0xf]
        %v5180 = vld [vmem:[#allocation3 + $0xf8] sm:$0xf]
        %v5181 = vld [vmem:[#allocation3 + $0xfc] sm:$0xf]
        %v5182 = vld [vmem:[#allocation3 + $0x100] sm:$0xf]
        %v5183 = vld [vmem:[#allocation3 + $0x104] sm:$0xf]
        %v5184 = vld [vmem:[#allocation3 + $0x108] sm:$0xf]
        %v5185 = vld [vmem:[#allocation3 + $0x10c] sm:$0xf]
        %v5186 = vld [vmem:[#allocation3 + $0x110] sm:$0xf]
        %v5187 = vld [vmem:[#allocation3 + $0x114] sm:$0xf]
        %v5188 = vld [vmem:[#allocation3 + $0x118] sm:$0xf]
        %v5189 = vld [vmem:[#allocation3 + $0x11c] sm:$0xf]
        %v5190 = vld [vmem:[#allocation3 + $0x120] sm:$0xf]
        %v5191 = vld [vmem:[#allocation3 + $0x124] sm:$0xf]
        %v5192 = vld [vmem:[#allocation3 + $0x128] sm:$0xf]
        %v5193 = vld [vmem:[#allocation3 + $0x12c] sm:$0xf]
        %v5194 = vld [vmem:[#allocation3 + $0x130] sm:$0xf]
        %v5195 = vld [vmem:[#allocation3 + $0x134] sm:$0xf]
        %v5196 = vld [vmem:[#allocation3 + $0x138] sm:$0xf]
        %v5197 = vld [vmem:[#allocation3 + $0x13c] sm:$0xf]
        %v5198 = vld [vmem:[#allocation3 + $0x140] sm:$0xf]
        %v5199 = vld [vmem:[#allocation3 + $0x144] sm:$0xf]
        %v5200 = vld [vmem:[#allocation3 + $0x148] sm:$0xf]
        %v5201 = vld [vmem:[#allocation3 + $0x14c] sm:$0xf]
        %v5202 = vld [vmem:[#allocation3 + $0x150] sm:$0xf]
        %v5203 = vld [vmem:[#allocation3 + $0x154] sm:$0xf]
        %v5204 = vld [vmem:[#allocation3 + $0x158] sm:$0xf]
        %v5205 = vld [vmem:[#allocation3 + $0x15c] sm:$0xf]
        %v5206 = vld [vmem:[#allocation3 + $0x160] sm:$0xf]
        %v5207 = vld [vmem:[#allocation3 + $0x164] sm:$0xf]
        %v5208 = vld [vmem:[#allocation3 + $0x168] sm:$0xf]
        %v5209 = vld [vmem:[#allocation3 + $0x16c] sm:$0xf]
        %v5210 = vld [vmem:[#allocation3 + $0x170] sm:$0xf]
        %v5211 = vld [vmem:[#allocation3 + $0x174] sm:$0xf]
        %v5212 = vld [vmem:[#allocation3 + $0x178] sm:$0xf]
        %v5213 = vld [vmem:[#allocation3 + $0x17c] sm:$0xf]
        %v5214 = vld [vmem:[#allocation3 + $0x180] sm:$0xf]
        %v5215 = vld [vmem:[#allocation3 + $0x184] sm:$0xf]
        %v5216 = vld [vmem:[#allocation3 + $0x188] sm:$0xf]
        %v5217 = vld [vmem:[#allocation3 + $0x18c] sm:$0xf]
        %v5218 = vld [vmem:[#allocation3 + $0x190] sm:$0xf]
        %v5219 = vld [vmem:[#allocation3 + $0x194] sm:$0xf]
        %v5220 = vld [vmem:[#allocation3 + $0x198] sm:$0xf]
        %v5221 = vld [vmem:[#allocation3 + $0x19c] sm:$0xf]
        %v5222 = vld [vmem:[#allocation3 + $0x1a0] sm:$0xf]
        %v5223 = vld [vmem:[#allocation3 + $0x1a4] sm:$0xf]
        %v5224 = vld [vmem:[#allocation3 + $0x1a8] sm:$0xf]
        %v5225 = vld [vmem:[#allocation3 + $0x1ac] sm:$0xf]
        %v5226 = vld [vmem:[#allocation3 + $0x1b0] sm:$0xf]
        %v5227 = vld [vmem:[#allocation3 + $0x1b4] sm:$0xf]
        %v5228 = vld [vmem:[#allocation3 + $0x1b8] sm:$0xf]
        %v5229 = vld [vmem:[#allocation3 + $0x1bc] sm:$0xf]
        %v5230 = vld [vmem:[#allocation3 + $0x1c0] sm:$0xf]
        %v5231 = vld [vmem:[#allocation3 + $0x1c4] sm:$0xf]
        %v5232 = vld [vmem:[#allocation3 + $0x1c8] sm:$0xf]
        %v5233 = vld [vmem:[#allocation3 + $0x1cc] sm:$0xf]
        %v5234 = vld [vmem:[#allocation3 + $0x1d0] sm:$0xf]
        %v5235 = vld [vmem:[#allocation3 + $0x1d4] sm:$0xf]
        %v5236 = vld [vmem:[#allocation3 + $0x1d8] sm:$0xf]
        %v5237 = vld [vmem:[#allocation3 + $0x1dc] sm:$0xf]
        %v5238 = vld [vmem:[#allocation3 + $0x1e0] sm:$0xf]
        %v5239 = vld [vmem:[#allocation3 + $0x1e4] sm:$0xf]
        %v5240 = vld [vmem:[#allocation3 + $0x1e8] sm:$0xf]
        %v5241 = vld [vmem:[#allocation3 + $0x1ec] sm:$0xf]
        %v5242 = vld [vmem:[#allocation3 + $0x1f0] sm:$0xf]
        %v5243 = vld [vmem:[#allocation3 + $0x1f4] sm:$0xf]
        %v5244 = vld [vmem:[#allocation3 + $0x1f8] sm:$0xf]
        %v5245 = vld [vmem:[#allocation3 + $0x1fc] sm:$0xf]
        %v5246 = vld [vmem:[#allocation3 + $0x200] sm:$0xf]
        %v5247 = vld [vmem:[#allocation3 + $0x204] sm:$0xf]
        %v5248 = vld [vmem:[#allocation3 + $0x208] sm:$0xf]
        %v5249 = vld [vmem:[#allocation3 + $0x20c] sm:$0xf]
        %v5250 = vld [vmem:[#allocation3 + $0x210] sm:$0xf]
        %v5251 = vld [vmem:[#allocation3 + $0x214] sm:$0xf]
        %v5252 = vld [vmem:[#allocation3 + $0x218] sm:$0xf]
        %v5253 = vld [vmem:[#allocation3 + $0x21c] sm:$0xf]
        %v5254 = vld [vmem:[#allocation3 + $0x220] sm:$0xf]
        %v5255 = vld [vmem:[#allocation3 + $0x224] sm:$0xf]
        %v5256 = vld [vmem:[#allocation3 + $0x228] sm:$0xf]
        %v5257 = vld [vmem:[#allocation3 + $0x22c] sm:$0xf]
        %v5258 = vld [vmem:[#allocation3 + $0x230] sm:$0xf]
        %v5259 = vld [vmem:[#allocation3 + $0x234] sm:$0xf]
        %v5260 = vld [vmem:[#allocation3 + $0x238] sm:$0xf]
        %v5261 = vld [vmem:[#allocation3 + $0x23c] sm:$0xf]
        %v5262 = vld [vmem:[%s4] sm:$0x1]
        %v5264 = vlaneseq
        %v5265 = vshrl.u32 %v5264, 7
        %v5266 = vsub.s32 0, %v5265
        %v5267 = vrot.slane %v5262, %v5266
        %v5413 = vunpack.c.l.b16 %v5118
        %v5414 = vunpack.c.l.b16 %v5119
        %v5415 = vunpack.c.l.b16 %v5120
        %v5416 = vunpack.c.l.b16 %v5121
        %v5417 = vunpack.c.l.b16 %v5122
        %v5418 = vunpack.c.l.b16 %v5123
        %v5419 = vunpack.c.l.b16 %v5124
        %v5420 = vunpack.c.l.b16 %v5125
        %v5421 = vunpack.c.l.b16 %v5126
        %v5422 = vunpack.c.l.b16 %v5127
        %v5423 = vunpack.c.l.b16 %v5128
        %v5424 = vunpack.c.l.b16 %v5129
        %v5425 = vunpack.c.l.b16 %v5130
        %v5426 = vunpack.c.l.b16 %v5131
        %v5427 = vunpack.c.l.b16 %v5132
        %v5428 = vunpack.c.l.b16 %v5133
        %v5429 = vunpack.c.l.b16 %v5134
        %v5430 = vunpack.c.l.b16 %v5135
        %v5431 = vunpack.c.l.b16 %v5136
        %v5432 = vunpack.c.l.b16 %v5137
        %v5433 = vunpack.c.l.b16 %v5138
        %v5434 = vunpack.c.l.b16 %v5139
        %v5435 = vunpack.c.l.b16 %v5140
        %v5436 = vunpack.c.l.b16 %v5141
        %v5437 = vunpack.c.l.b16 %v5142
        %v5438 = vunpack.c.l.b16 %v5143
        %v5439 = vunpack.c.l.b16 %v5144
        %v5440 = vunpack.c.l.b16 %v5145
        %v5441 = vunpack.c.l.b16 %v5146
        %v5442 = vunpack.c.l.b16 %v5147
        %v5443 = vunpack.c.l.b16 %v5148
        %v5444 = vunpack.c.l.b16 %v5149
        %v5445 = vunpack.c.l.b16 %v5150
        %v5446 = vunpack.c.l.b16 %v5151
        %v5447 = vunpack.c.l.b16 %v5152
        %v5448 = vunpack.c.l.b16 %v5153
        %v5449 = vunpack.c.l.b16 %v5154
        %v5450 = vunpack.c.l.b16 %v5155
        %v5451 = vunpack.c.l.b16 %v5156
        %v5452 = vunpack.c.l.b16 %v5157
        %v5453 = vunpack.c.l.b16 %v5158
        %v5454 = vunpack.c.l.b16 %v5159
        %v5455 = vunpack.c.l.b16 %v5160
        %v5456 = vunpack.c.l.b16 %v5161
        %v5457 = vunpack.c.l.b16 %v5162
        %v5458 = vunpack.c.l.b16 %v5163
        %v5459 = vunpack.c.l.b16 %v5164
        %v5460 = vunpack.c.l.b16 %v5165
        %v5461 = vunpack.c.l.b16 %v5166
        %v5462 = vunpack.c.l.b16 %v5167
        %v5463 = vunpack.c.l.b16 %v5168
        %v5464 = vunpack.c.l.b16 %v5169
        %v5465 = vunpack.c.l.b16 %v5170
        %v5466 = vunpack.c.l.b16 %v5171
        %v5467 = vunpack.c.l.b16 %v5172
        %v5468 = vunpack.c.l.b16 %v5173
        %v5469 = vunpack.c.l.b16 %v5174
        %v5470 = vunpack.c.l.b16 %v5175
        %v5471 = vunpack.c.l.b16 %v5176
        %v5472 = vunpack.c.l.b16 %v5177
        %v5473 = vunpack.c.l.b16 %v5178
        %v5474 = vunpack.c.l.b16 %v5179
        %v5475 = vunpack.c.l.b16 %v5180
        %v5476 = vunpack.c.l.b16 %v5181
        %v5477 = vunpack.c.l.b16 %v5182
        %v5478 = vunpack.c.l.b16 %v5183
        %v5479 = vunpack.c.l.b16 %v5184
        %v5480 = vunpack.c.l.b16 %v5185
        %v5481 = vunpack.c.l.b16 %v5186
        %v5482 = vunpack.c.l.b16 %v5187
        %v5483 = vunpack.c.l.b16 %v5188
        %v5484 = vunpack.c.l.b16 %v5189
        %v5485 = vunpack.c.l.b16 %v5190
        %v5486 = vunpack.c.l.b16 %v5191
        %v5487 = vunpack.c.l.b16 %v5192
        %v5488 = vunpack.c.l.b16 %v5193
        %v5489 = vunpack.c.l.b16 %v5194
        %v5490 = vunpack.c.l.b16 %v5195
        %v5491 = vunpack.c.l.b16 %v5196
        %v5492 = vunpack.c.l.b16 %v5197
        %v5493 = vunpack.c.l.b16 %v5198
        %v5494 = vunpack.c.l.b16 %v5199
        %v5495 = vunpack.c.l.b16 %v5200
        %v5496 = vunpack.c.l.b16 %v5201
        %v5497 = vunpack.c.l.b16 %v5202
        %v5498 = vunpack.c.l.b16 %v5203
        %v5499 = vunpack.c.l.b16 %v5204
        %v5500 = vunpack.c.l.b16 %v5205
        %v5501 = vunpack.c.l.b16 %v5206
        %v5502 = vunpack.c.l.b16 %v5207
        %v5503 = vunpack.c.l.b16 %v5208
        %v5504 = vunpack.c.l.b16 %v5209
        %v5505 = vunpack.c.l.b16 %v5210
        %v5506 = vunpack.c.l.b16 %v5211
        %v5507 = vunpack.c.l.b16 %v5212
        %v5508 = vunpack.c.l.b16 %v5213
        %v5509 = vunpack.c.l.b16 %v5214
        %v5510 = vunpack.c.l.b16 %v5215
        %v5511 = vunpack.c.l.b16 %v5216
        %v5512 = vunpack.c.l.b16 %v5217
        %v5513 = vunpack.c.l.b16 %v5218
        %v5514 = vunpack.c.l.b16 %v5219
        %v5515 = vunpack.c.l.b16 %v5220
        %v5516 = vunpack.c.l.b16 %v5221
        %v5517 = vunpack.c.l.b16 %v5222
        %v5518 = vunpack.c.l.b16 %v5223
        %v5519 = vunpack.c.l.b16 %v5224
        %v5520 = vunpack.c.l.b16 %v5225
        %v5521 = vunpack.c.l.b16 %v5226
        %v5522 = vunpack.c.l.b16 %v5227
        %v5523 = vunpack.c.l.b16 %v5228
        %v5524 = vunpack.c.l.b16 %v5229
        %v5525 = vunpack.c.l.b16 %v5230
        %v5526 = vunpack.c.l.b16 %v5231
        %v5527 = vunpack.c.l.b16 %v5232
        %v5528 = vunpack.c.l.b16 %v5233
        %v5529 = vunpack.c.l.b16 %v5234
        %v5530 = vunpack.c.l.b16 %v5235
        %v5531 = vunpack.c.l.b16 %v5236
        %v5532 = vunpack.c.l.b16 %v5237
        %v5533 = vunpack.c.l.b16 %v5238
        %v5534 = vunpack.c.l.b16 %v5239
        %v5535 = vunpack.c.l.b16 %v5240
        %v5536 = vunpack.c.l.b16 %v5241
        %v5537 = vunpack.c.l.b16 %v5242
        %v5538 = vunpack.c.l.b16 %v5243
        %v5539 = vunpack.c.l.b16 %v5244
        %v5540 = vunpack.c.l.b16 %v5245
        %v5541 = vunpack.c.l.b16 %v5246
        %v5542 = vunpack.c.l.b16 %v5247
        %v5543 = vunpack.c.l.b16 %v5248
        %v5544 = vunpack.c.l.b16 %v5249
        %v5545 = vunpack.c.l.b16 %v5250
        %v5546 = vunpack.c.l.b16 %v5251
        %v5547 = vunpack.c.l.b16 %v5252
        %v5548 = vunpack.c.l.b16 %v5253
        %v5549 = vunpack.c.l.b16 %v5254
        %v5550 = vunpack.c.l.b16 %v5255
        %v5551 = vunpack.c.l.b16 %v5256
        %v5552 = vunpack.c.l.b16 %v5257
        %v5553 = vunpack.c.l.b16 %v5258
        %v5554 = vunpack.c.l.b16 %v5259
        %v5555 = vunpack.c.l.b16 %v5260
        %v5556 = vunpack.c.l.b16 %v5261
        %v5557 = vpack.c.b16 %v5414, %v5413
        %v5558 = vpack.c.b16 %v5416, %v5415
        %v5559 = vpack.c.b16 %v5418, %v5417
        %v5560 = vpack.c.b16 %v5420, %v5419
        %v5561 = vpack.c.b16 %v5422, %v5421
        %v5562 = vpack.c.b16 %v5424, %v5423
        %v5563 = vpack.c.b16 %v5426, %v5425
        %v5564 = vpack.c.b16 %v5428, %v5427
        %v5565 = vpack.c.b16 %v5430, %v5429
        %v5566 = vpack.c.b16 %v5432, %v5431
        %v5567 = vpack.c.b16 %v5434, %v5433
        %v5568 = vpack.c.b16 %v5436, %v5435
        %v5569 = vpack.c.b16 %v5438, %v5437
        %v5570 = vpack.c.b16 %v5440, %v5439
        %v5571 = vpack.c.b16 %v5442, %v5441
        %v5572 = vpack.c.b16 %v5444, %v5443
        %v5573 = vpack.c.b16 %v5446, %v5445
        %v5574 = vpack.c.b16 %v5448, %v5447
        %v5575 = vpack.c.b16 %v5450, %v5449
        %v5576 = vpack.c.b16 %v5452, %v5451
        %v5577 = vpack.c.b16 %v5454, %v5453
        %v5578 = vpack.c.b16 %v5456, %v5455
        %v5579 = vpack.c.b16 %v5458, %v5457
        %v5580 = vpack.c.b16 %v5460, %v5459
        %v5581 = vpack.c.b16 %v5462, %v5461
        %v5582 = vpack.c.b16 %v5464, %v5463
        %v5583 = vpack.c.b16 %v5466, %v5465
        %v5584 = vpack.c.b16 %v5468, %v5467
        %v5585 = vpack.c.b16 %v5470, %v5469
        %v5586 = vpack.c.b16 %v5472, %v5471
        %v5587 = vpack.c.b16 %v5474, %v5473
        %v5588 = vpack.c.b16 %v5476, %v5475
        %v5589 = vpack.c.b16 %v5478, %v5477
        %v5590 = vpack.c.b16 %v5480, %v5479
        %v5591 = vpack.c.b16 %v5482, %v5481
        %v5592 = vpack.c.b16 %v5484, %v5483
        %v5593 = vpack.c.b16 %v5486, %v5485
        %v5594 = vpack.c.b16 %v5488, %v5487
        %v5595 = vpack.c.b16 %v5490, %v5489
        %v5596 = vpack.c.b16 %v5492, %v5491
        %v5597 = vpack.c.b16 %v5494, %v5493
        %v5598 = vpack.c.b16 %v5496, %v5495
        %v5599 = vpack.c.b16 %v5498, %v5497
        %v5600 = vpack.c.b16 %v5500, %v5499
        %v5601 = vpack.c.b16 %v5502, %v5501
        %v5602 = vpack.c.b16 %v5504, %v5503
        %v5603 = vpack.c.b16 %v5506, %v5505
        %v5604 = vpack.c.b16 %v5508, %v5507
        %v5605 = vpack.c.b16 %v5510, %v5509
        %v5606 = vpack.c.b16 %v5512, %v5511
        %v5607 = vpack.c.b16 %v5514, %v5513
        %v5608 = vpack.c.b16 %v5516, %v5515
        %v5609 = vpack.c.b16 %v5518, %v5517
        %v5610 = vpack.c.b16 %v5520, %v5519
        %v5611 = vpack.c.b16 %v5522, %v5521
        %v5612 = vpack.c.b16 %v5524, %v5523
        %v5613 = vpack.c.b16 %v5526, %v5525
        %v5614 = vpack.c.b16 %v5528, %v5527
        %v5615 = vpack.c.b16 %v5530, %v5529
        %v5616 = vpack.c.b16 %v5532, %v5531
        %v5617 = vpack.c.b16 %v5534, %v5533
        %v5618 = vpack.c.b16 %v5536, %v5535
        %v5619 = vpack.c.b16 %v5538, %v5537
        %v5620 = vpack.c.b16 %v5540, %v5539
        %v5621 = vpack.c.b16 %v5542, %v5541
        %v5622 = vpack.c.b16 %v5544, %v5543
        %v5623 = vpack.c.b16 %v5546, %v5545
        %v5624 = vpack.c.b16 %v5548, %v5547
        %v5625 = vpack.c.b16 %v5550, %v5549
        %v5626 = vpack.c.b16 %v5552, %v5551
        %v5627 = vpack.c.b16 %v5554, %v5553
        %v5628 = vpack.c.b16 %v5556, %v5555
        %5701 = vmatprep.subr.bf16.mxu0 0
        %5702 = vmatpush1.bf16.msra.mxu0 %v5557
        %5703 = vmatprep.subr.bf16.mxu0 0
        %5704 = vmatpush1.bf16.msra.mxu0 %v5558
        %5705 = vmatprep.subr.bf16.mxu0 0
        %5706 = vmatpush1.bf16.msra.mxu0 %v5559
        %5707 = vmatprep.subr.bf16.mxu0 0
        %5708 = vmatpush1.bf16.msra.mxu0 %v5560
        %5709 = vmatprep.subr.bf16.mxu0 0
        %5710 = vmatpush1.bf16.msra.mxu0 %v5561
        %5711 = vmatprep.subr.bf16.mxu0 0
        %5712 = vmatpush1.bf16.msra.mxu0 %v5562
        %5713 = vmatprep.subr.bf16.mxu0 0
        %5714 = vmatpush1.bf16.msra.mxu0 %v5563
        %5715 = vmatprep.subr.bf16.mxu0 0
        %5716 = vmatpush1.bf16.msra.mxu0 %v5564
        %5717 = vmatprep.subr.bf16.mxu0 0
        %5718 = vmatpush1.bf16.msra.mxu0 %v5565
        %5719 = vmatprep.subr.bf16.mxu0 0
        %5720 = vmatpush1.bf16.msra.mxu0 %v5566
        %5721 = vmatprep.subr.bf16.mxu0 0
        %5722 = vmatpush1.bf16.msra.mxu0 %v5567
        %5723 = vmatprep.subr.bf16.mxu0 0
        %5724 = vmatpush1.bf16.msra.mxu0 %v5568
        %5725 = vmatprep.subr.bf16.mxu0 0
        %5726 = vmatpush1.bf16.msra.mxu0 %v5569
        %5727 = vmatprep.subr.bf16.mxu0 0
        %5728 = vmatpush1.bf16.msra.mxu0 %v5570
        %5729 = vmatprep.subr.bf16.mxu0 0
        %5730 = vmatpush1.bf16.msra.mxu0 %v5571
        %5731 = vmatprep.subr.bf16.mxu0 0
        %5732 = vmatpush1.bf16.msra.mxu0 %v5572
        %5733 = vmatprep.mubr.bf16.mxu0 %v3881
        %5734 = vmatmul.mubr.bf16.gmra.mrb[0].mxu0 %v3790
        %v5735 = vpop.f32.mrb[0].mxu0
        %v5736 = vadd.f32 %v5267, %v5735
        %v5737 = vpop.f32.mrb[0].mxu0
        %v5738 = vpop.f32.mrb[0].mxu0
        %v5739 = vadd.f32 %v5267, %v5738
        %v5740 = vpop.f32.mrb[0].mxu0
        %5741 = vmatprep.mubr.bf16.mxu0 %v3893
        %5742 = vmatmul.mubr.bf16.gmra.mrb[0].mxu0 %v3791
        %v5743 = vpop.f32.mrb[0].mxu0
        %v5744 = vadd.f32 %v5267, %v5743
        %v5745 = vpop.f32.mrb[0].mxu0
        %v5746 = vpop.f32.mrb[0].mxu0
        %v5747 = vadd.f32 %v5267, %v5746
        %v5748 = vpop.f32.mrb[0].mxu0
        %5749 = vmatprep.mubr.bf16.mxu0 %v3905
        %5750 = vmatmul.mubr.bf16.gmra.mrb[0].mxu0 %v3792
        %v5751 = vpop.f32.mrb[0].mxu0
        %v5752 = vadd.f32 %v5267, %v5751
        %v5753 = vpop.f32.mrb[0].mxu0
        %v5754 = vpop.f32.mrb[0].mxu0
        %v5755 = vadd.f32 %v5267, %v5754
        %v5756 = vpop.f32.mrb[0].mxu0
        %5757 = vmatprep.mubr.bf16.mxu0 %v3917
        %5758 = vmatmul.mubr.bf16.gmra.mrb[0].mxu0 %v3793
        %v5759 = vpop.f32.mrb[0].mxu0
        %v5760 = vadd.f32 %v5267, %v5759
        %v5761 = vpop.f32.mrb[0].mxu0
        %v5762 = vpop.f32.mrb[0].mxu0
        %v5763 = vadd.f32 %v5267, %v5762
        %v5764 = vpop.f32.mrb[0].mxu0
        %5765 = vmatprep.mubr.bf16.mxu0 %v3929
        %5766 = vmatmul.mubr.bf16.gmra.mrb[0].mxu0 %v3794
        %v5767 = vpop.f32.mrb[0].mxu0
        %v5768 = vadd.f32 %v5267, %v5767
        %v5769 = vpop.f32.mrb[0].mxu0
        %v5770 = vpop.f32.mrb[0].mxu0
        %v5771 = vadd.f32 %v5267, %v5770
        %v5772 = vpop.f32.mrb[0].mxu0
        %5773 = vmatprep.mubr.bf16.mxu0 %v3941
        %5774 = vmatmul.mubr.bf16.gmra.mrb[0].mxu0 %v3795
        %v5775 = vpop.f32.mrb[0].mxu0
        %v5776 = vadd.f32 %v5267, %v5775
        %v5777 = vpop.f32.mrb[0].mxu0
        %v5778 = vpop.f32.mrb[0].mxu0
        %v5779 = vadd.f32 %v5267, %v5778
        %v5780 = vpop.f32.mrb[0].mxu0
        %5781 = vmatprep.mubr.bf16.mxu0 %v3953
        %5782 = vmatmul.mubr.bf16.gmra.mrb[0].mxu0 %v3796
        %v5783 = vpop.f32.mrb[0].mxu0
        %v5784 = vadd.f32 %v5267, %v5783
        %v5785 = vpop.f32.mrb[0].mxu0
        %v5786 = vpop.f32.mrb[0].mxu0
        %v5787 = vadd.f32 %v5267, %v5786
        %v5788 = vpop.f32.mrb[0].mxu0
        %5789 = vmatprep.mubr.bf16.mxu0 %v3965
        %5790 = vmatmul.mubr.bf16.gmra.mrb[0].mxu0 %v3797
        %v5791 = vpop.f32.mrb[0].mxu0
        %v5792 = vadd.f32 %v5267, %v5791
        %v5793 = vpop.f32.mrb[0].mxu0
        %v5794 = vpop.f32.mrb[0].mxu0
        %v5795 = vadd.f32 %v5267, %v5794
        %v5796 = vpop.f32.mrb[0].mxu0
        %5797 = vmatprep.mubr.bf16.mxu0 %v3977
        %5798 = vmatmul.mubr.bf16.gmra.mrb[0].mxu0 %v3798
        %v5799 = vpop.f32.mrb[0].mxu0
        %v5800 = vadd.f32 %v5267, %v5799
        %v5801 = vpop.f32.mrb[0].mxu0
        %v5802 = vpop.f32.mrb[0].mxu0
        %v5803 = vadd.f32 %v5267, %v5802
        %v5804 = vpop.f32.mrb[0].mxu0
        %5805 = vmatprep.mubr.bf16.mxu0 %v3989
        %5806 = vmatmul.mubr.bf16.gmra.mrb[0].mxu0 %v3799
        %v5807 = vpop.f32.mrb[0].mxu0
        %v5808 = vadd.f32 %v5267, %v5807
        %v5809 = vpop.f32.mrb[0].mxu0
        %v5810 = vpop.f32.mrb[0].mxu0
        %v5811 = vadd.f32 %v5267, %v5810
        %v5812 = vpop.f32.mrb[0].mxu0
        %5813 = vmatprep.mubr.bf16.mxu0 %v4001
        %5814 = vmatmul.mubr.bf16.gmra.mrb[0].mxu0 %v3800
        %v5815 = vpop.f32.mrb[0].mxu0
        %v5816 = vadd.f32 %v5267, %v5815
        %v5817 = vpop.f32.mrb[0].mxu0
        %v5818 = vpop.f32.mrb[0].mxu0
        %v5819 = vadd.f32 %v5267, %v5818
        %v5820 = vpop.f32.mrb[0].mxu0
        %5821 = vmatprep.mubr.bf16.mxu0 %v4013
        %5822 = vmatmul.mubr.bf16.gmra.mrb[0].mxu0 %v3801
        %v5823 = vpop.f32.mrb[0].mxu0
        %v5824 = vadd.f32 %v5267, %v5823
        %v5825 = vpop.f32.mrb[0].mxu0
        %v5826 = vpop.f32.mrb[0].mxu0
        %v5827 = vadd.f32 %v5267, %v5826
        %v5828 = vpop.f32.mrb[0].mxu0
        %5829 = vmatprep.mubr.bf16.mxu0 %v4025
        %5830 = vmatmul.mubr.bf16.gmra.mrb[0].mxu0 %v3802
        %v5831 = vpop.f32.mrb[0].mxu0
        %v5832 = vadd.f32 %v5267, %v5831
        %v5833 = vpop.f32.mrb[0].mxu0
        %v5834 = vpop.f32.mrb[0].mxu0
        %v5835 = vadd.f32 %v5267, %v5834
        %v5836 = vpop.f32.mrb[0].mxu0
        %5837 = vmatprep.mubr.bf16.mxu0 %v4037
        %5838 = vmatmul.mubr.bf16.gmra.mrb[0].mxu0 %v3803
        %v5839 = vpop.f32.mrb[0].mxu0
        %v5840 = vadd.f32 %v5267, %v5839
        %v5841 = vpop.f32.mrb[0].mxu0
        %v5842 = vpop.f32.mrb[0].mxu0
        %v5843 = vadd.f32 %v5267, %v5842
        %v5844 = vpop.f32.mrb[0].mxu0
        %5845 = vmatprep.mubr.bf16.mxu0 %v4049
        %5846 = vmatmul.mubr.bf16.gmra.mrb[0].mxu0 %v3804
        %v5847 = vpop.f32.mrb[0].mxu0
        %v5848 = vadd.f32 %v5267, %v5847
        %v5849 = vpop.f32.mrb[0].mxu0
        %v5850 = vpop.f32.mrb[0].mxu0
        %v5851 = vadd.f32 %v5267, %v5850
        %v5852 = vpop.f32.mrb[0].mxu0
        %5853 = vmatprep.mubr.bf16.mxu0 %v4061
        %5854 = vmatmul.mubr.bf16.gmra.mrb[0].mxu0 %v3805
        %v5855 = vpop.f32.mrb[0].mxu0
        %v5856 = vadd.f32 %v5267, %v5855
        %v5857 = vpop.f32.mrb[0].mxu0
        %v5858 = vpop.f32.mrb[0].mxu0
        %v5859 = vadd.f32 %v5267, %v5858
        %v5860 = vpop.f32.mrb[0].mxu0
        %5861 = vdwg.mxu0
        %5862 = vmatprep.subr.bf16.mxu0 0
        %5863 = vmatpush1.bf16.msra.mxu0 %v5573
        %5864 = vmatprep.subr.bf16.mxu0 0
        %5865 = vmatpush1.bf16.msra.mxu0 %v5574
        %5866 = vmatprep.subr.bf16.mxu0 0
        %5867 = vmatpush1.bf16.msra.mxu0 %v5575
        %5868 = vmatprep.subr.bf16.mxu0 0
        %5869 = vmatpush1.bf16.msra.mxu0 %v5576
        %5870 = vmatprep.subr.bf16.mxu0 0
        %5871 = vmatpush1.bf16.msra.mxu0 %v5577
        %5872 = vmatprep.subr.bf16.mxu0 0
        %5873 = vmatpush1.bf16.msra.mxu0 %v5578
        %5874 = vmatprep.subr.bf16.mxu0 0
        %5875 = vmatpush1.bf16.msra.mxu0 %v5579
        %5876 = vmatprep.subr.bf16.mxu0 0
        %5877 = vmatpush1.bf16.msra.mxu0 %v5580
        %5878 = vmatprep.subr.bf16.mxu0 0
        %5879 = vmatpush1.bf16.msra.mxu0 %v5581
        %5880 = vmatprep.subr.bf16.mxu0 0
        %5881 = vmatpush1.bf16.msra.mxu0 %v5582
        %5882 = vmatprep.subr.bf16.mxu0 0
        %5883 = vmatpush1.bf16.msra.mxu0 %v5583
        %5884 = vmatprep.subr.bf16.mxu0 0
        %5885 = vmatpush1.bf16.msra.mxu0 %v5584
        %5886 = vmatprep.subr.bf16.mxu0 0
        %5887 = vmatpush1.bf16.msra.mxu0 %v5585
        %5888 = vmatprep.subr.bf16.mxu0 0
        %5889 = vmatpush1.bf16.msra.mxu0 %v5586
        %5890 = vmatprep.subr.bf16.mxu0 0
        %5891 = vmatpush1.bf16.msra.mxu0 %v5587
        %5892 = vmatprep.subr.bf16.mxu0 0
        %5893 = vmatpush1.bf16.msra.mxu0 %v5588
        %5894 = vmatprep.mubr.bf16.mxu0 %v4254
        %5895 = vmatmul.mubr.bf16.gmra.mrb[0].mxu0 %v4128
        %v5896 = vpop.f32.mrb[0].mxu0
        %v5897 = vadd.f32 %v5736, %v5896
        %v5898 = vpop.f32.mrb[0].mxu0
        %v5899 = vpop.f32.mrb[0].mxu0
        %v5900 = vadd.f32 %v5739, %v5899
        %v5901 = vpop.f32.mrb[0].mxu0
        %5902 = vmatprep.mubr.bf16.mxu0 %v4255
        %5903 = vmatmul.mubr.bf16.gmra.mrb[0].mxu0 %v4131
        %v5904 = vpop.f32.mrb[0].mxu0
        %v5905 = vadd.f32 %v5744, %v5904
        %v5906 = vpop.f32.mrb[0].mxu0
        %v5907 = vpop.f32.mrb[0].mxu0
        %v5908 = vadd.f32 %v5747, %v5907
        %v5909 = vpop.f32.mrb[0].mxu0
        %5910 = vmatprep.mubr.bf16.mxu0 %v4256
        %5911 = vmatmul.mubr.bf16.gmra.mrb[0].mxu0 %v4134
        %v5912 = vpop.f32.mrb[0].mxu0
        %v5913 = vadd.f32 %v5752, %v5912
        %v5914 = vpop.f32.mrb[0].mxu0
        %v5915 = vpop.f32.mrb[0].mxu0
        %v5916 = vadd.f32 %v5755, %v5915
        %v5917 = vpop.f32.mrb[0].mxu0
        %5918 = vmatprep.mubr.bf16.mxu0 %v4257
        %5919 = vmatmul.mubr.bf16.gmra.mrb[0].mxu0 %v4137
        %v5920 = vpop.f32.mrb[0].mxu0
        %v5921 = vadd.f32 %v5760, %v5920
        %v5922 = vpop.f32.mrb[0].mxu0
        %v5923 = vpop.f32.mrb[0].mxu0
        %v5924 = vadd.f32 %v5763, %v5923
        %v5925 = vpop.f32.mrb[0].mxu0
        %5926 = vmatprep.mubr.bf16.mxu0 %v4258
        %5927 = vmatmul.mubr.bf16.gmra.mrb[0].mxu0 %v4140
        %v5928 = vpop.f32.mrb[0].mxu0
        %v5929 = vadd.f32 %v5768, %v5928
        %v5930 = vpop.f32.mrb[0].mxu0
        %v5931 = vpop.f32.mrb[0].mxu0
        %v5932 = vadd.f32 %v5771, %v5931
        %v5933 = vpop.f32.mrb[0].mxu0
        %5934 = vmatprep.mubr.bf16.mxu0 %v4259
        %5935 = vmatmul.mubr.bf16.gmra.mrb[0].mxu0 %v4143
        %v5936 = vpop.f32.mrb[0].mxu0
        %v5937 = vadd.f32 %v5776, %v5936
        %v5938 = vpop.f32.mrb[0].mxu0
        %v5939 = vpop.f32.mrb[0].mxu0
        %v5940 = vadd.f32 %v5779, %v5939
        %v5941 = vpop.f32.mrb[0].mxu0
        %5942 = vmatprep.mubr.bf16.mxu0 %v4260
        %5943 = vmatmul.mubr.bf16.gmra.mrb[0].mxu0 %v4146
        %v5944 = vpop.f32.mrb[0].mxu0
        %v5945 = vadd.f32 %v5784, %v5944
        %v5946 = vpop.f32.mrb[0].mxu0
        %v5947 = vpop.f32.mrb[0].mxu0
        %v5948 = vadd.f32 %v5787, %v5947
        %v5949 = vpop.f32.mrb[0].mxu0
        %5950 = vmatprep.mubr.bf16.mxu0 %v4261
        %5951 = vmatmul.mubr.bf16.gmra.mrb[0].mxu0 %v4149
        %v5952 = vpop.f32.mrb[0].mxu0
        %v5953 = vadd.f32 %v5792, %v5952
        %v5954 = vpop.f32.mrb[0].mxu0
        %v5955 = vpop.f32.mrb[0].mxu0
        %v5956 = vadd.f32 %v5795, %v5955
        %v5957 = vpop.f32.mrb[0].mxu0
        %5958 = vmatprep.mubr.bf16.mxu0 %v4262
        %5959 = vmatmul.mubr.bf16.gmra.mrb[0].mxu0 %v4152
        %v5960 = vpop.f32.mrb[0].mxu0
        %v5961 = vadd.f32 %v5800, %v5960
        %v5962 = vpop.f32.mrb[0].mxu0
        %v5963 = vpop.f32.mrb[0].mxu0
        %v5964 = vadd.f32 %v5803, %v5963
        %v5965 = vpop.f32.mrb[0].mxu0
        %5966 = vmatprep.mubr.bf16.mxu0 %v4263
        %5967 = vmatmul.mubr.bf16.gmra.mrb[0].mxu0 %v4155
        %v5968 = vpop.f32.mrb[0].mxu0
        %v5969 = vadd.f32 %v5808, %v5968
        %v5970 = vpop.f32.mrb[0].mxu0
        %v5971 = vpop.f32.mrb[0].mxu0
        %v5972 = vadd.f32 %v5811, %v5971
        %v5973 = vpop.f32.mrb[0].mxu0
        %5974 = vmatprep.mubr.bf16.mxu0 %v4264
        %5975 = vmatmul.mubr.bf16.gmra.mrb[0].mxu0 %v4158
        %v5976 = vpop.f32.mrb[0].mxu0
        %v5977 = vadd.f32 %v5816, %v5976
        %v5978 = vpop.f32.mrb[0].mxu0
        %v5979 = vpop.f32.mrb[0].mxu0
        %v5980 = vadd.f32 %v5819, %v5979
        %v5981 = vpop.f32.mrb[0].mxu0
        %5982 = vmatprep.mubr.bf16.mxu0 %v4265
        %5983 = vmatmul.mubr.bf16.gmra.mrb[0].mxu0 %v4161
        %v5984 = vpop.f32.mrb[0].mxu0
        %v5985 = vadd.f32 %v5824, %v5984
        %v5986 = vpop.f32.mrb[0].mxu0
        %v5987 = vpop.f32.mrb[0].mxu0
        %v5988 = vadd.f32 %v5827, %v5987
        %v5989 = vpop.f32.mrb[0].mxu0
        %5990 = vmatprep.mubr.bf16.mxu0 %v4266
        %5991 = vmatmul.mubr.bf16.gmra.mrb[0].mxu0 %v4164
        %v5992 = vpop.f32.mrb[0].mxu0
        %v5993 = vadd.f32 %v5832, %v5992
        %v5994 = vpop.f32.mrb[0].mxu0
        %v5995 = vpop.f32.mrb[0].mxu0
        %v5996 = vadd.f32 %v5835, %v5995
        %v5997 = vpop.f32.mrb[0].mxu0
        %5998 = vmatprep.mubr.bf16.mxu0 %v4267
        %5999 = vmatmul.mubr.bf16.gmra.mrb[0].mxu0 %v4167
        %v6000 = vpop.f32.mrb[0].mxu0
        %v6001 = vadd.f32 %v5840, %v6000
        %v6002 = vpop.f32.mrb[0].mxu0
        %v6003 = vpop.f32.mrb[0].mxu0
        %v6004 = vadd.f32 %v5843, %v6003
        %v6005 = vpop.f32.mrb[0].mxu0
        %6006 = vmatprep.mubr.bf16.mxu0 %v4268
        %6007 = vmatmul.mubr.bf16.gmra.mrb[0].mxu0 %v4170
        %v6008 = vpop.f32.mrb[0].mxu0
        %v6009 = vadd.f32 %v5848, %v6008
        %v6010 = vpop.f32.mrb[0].mxu0
        %v6011 = vpop.f32.mrb[0].mxu0
        %v6012 = vadd.f32 %v5851, %v6011
        %v6013 = vpop.f32.mrb[0].mxu0
        %6014 = vmatprep.mubr.bf16.mxu0 %v4269
        %6015 = vmatmul.mubr.bf16.gmra.mrb[0].mxu0 %v4173
        %v6016 = vpop.f32.mrb[0].mxu0
        %v6017 = vadd.f32 %v5856, %v6016
        %v6018 = vpop.f32.mrb[0].mxu0
        %v6019 = vpop.f32.mrb[0].mxu0
        %v6020 = vadd.f32 %v5859, %v6019
        %v6021 = vpop.f32.mrb[0].mxu0
        %6022 = vdwg.mxu0
        %6023 = vmatprep.subr.bf16.mxu0 0
        %6024 = vmatpush1.bf16.msra.mxu0 %v5589
        %6025 = vmatprep.subr.bf16.mxu0 0
        %6026 = vmatpush1.bf16.msra.mxu0 %v5590
        %6027 = vmatprep.subr.bf16.mxu0 0
        %6028 = vmatpush1.bf16.msra.mxu0 %v5591
        %6029 = vmatprep.subr.bf16.mxu0 0
        %6030 = vmatpush1.bf16.msra.mxu0 %v5592
        %6031 = vmatprep.subr.bf16.mxu0 0
        %6032 = vmatpush1.bf16.msra.mxu0 %v5593
        %6033 = vmatprep.subr.bf16.mxu0 0
        %6034 = vmatpush1.bf16.msra.mxu0 %v5594
        %6035 = vmatprep.subr.bf16.mxu0 0
        %6036 = vmatpush1.bf16.msra.mxu0 %v5595
        %6037 = vmatprep.subr.bf16.mxu0 0
        %6038 = vmatpush1.bf16.msra.mxu0 %v5596
        %6039 = vmatprep.subr.bf16.mxu0 0
        %6040 = vmatpush1.bf16.msra.mxu0 %v5597
        %6041 = vmatprep.subr.bf16.mxu0 0
        %6042 = vmatpush1.bf16.msra.mxu0 %v5598
        %6043 = vmatprep.subr.bf16.mxu0 0
        %6044 = vmatpush1.bf16.msra.mxu0 %v5599
        %6045 = vmatprep.subr.bf16.mxu0 0
        %6046 = vmatpush1.bf16.msra.mxu0 %v5600
        %6047 = vmatprep.subr.bf16.mxu0 0
        %6048 = vmatpush1.bf16.msra.mxu0 %v5601
        %6049 = vmatprep.subr.bf16.mxu0 0
        %6050 = vmatpush1.bf16.msra.mxu0 %v5602
        %6051 = vmatprep.subr.bf16.mxu0 0
        %6052 = vmatpush1.bf16.msra.mxu0 %v5603
        %6053 = vmatprep.subr.bf16.mxu0 0
        %6054 = vmatpush1.bf16.msra.mxu0 %v5604
        %6055 = vmatprep.mubr.bf16.mxu0 %v4592
        %6056 = vmatmul.mubr.bf16.gmra.mrb[0].mxu0 %v4345
        %v6057 = vpop.f32.mrb[0].mxu0
        %v6058 = vadd.f32 %v5897, %v6057
        %v6059 = vpop.f32.mrb[0].mxu0
        %v6060 = vpop.f32.mrb[0].mxu0
        %v6061 = vadd.f32 %v5900, %v6060
        %v6062 = vpop.f32.mrb[0].mxu0
        %6063 = vmatprep.mubr.bf16.mxu0 %v4595
        %6064 = vmatmul.mubr.bf16.gmra.mrb[0].mxu0 %v4357
        %v6065 = vpop.f32.mrb[0].mxu0
        %v6066 = vadd.f32 %v5905, %v6065
        %v6067 = vpop.f32.mrb[0].mxu0
        %v6068 = vpop.f32.mrb[0].mxu0
        %v6069 = vadd.f32 %v5908, %v6068
        %v6070 = vpop.f32.mrb[0].mxu0
        %6071 = vmatprep.mubr.bf16.mxu0 %v4598
        %6072 = vmatmul.mubr.bf16.gmra.mrb[0].mxu0 %v4369
        %v6073 = vpop.f32.mrb[0].mxu0
        %v6074 = vadd.f32 %v5913, %v6073
        %v6075 = vpop.f32.mrb[0].mxu0
        %v6076 = vpop.f32.mrb[0].mxu0
        %v6077 = vadd.f32 %v5916, %v6076
        %v6078 = vpop.f32.mrb[0].mxu0
        %6079 = vmatprep.mubr.bf16.mxu0 %v4601
        %6080 = vmatmul.mubr.bf16.gmra.mrb[0].mxu0 %v4381
        %v6081 = vpop.f32.mrb[0].mxu0
        %v6082 = vadd.f32 %v5921, %v6081
        %v6083 = vpop.f32.mrb[0].mxu0
        %v6084 = vpop.f32.mrb[0].mxu0
        %v6085 = vadd.f32 %v5924, %v6084
        %v6086 = vpop.f32.mrb[0].mxu0
        %6087 = vmatprep.mubr.bf16.mxu0 %v4604
        %6088 = vmatmul.mubr.bf16.gmra.mrb[0].mxu0 %v4393
        %v6089 = vpop.f32.mrb[0].mxu0
        %v6090 = vadd.f32 %v5929, %v6089
        %v6091 = vpop.f32.mrb[0].mxu0
        %v6092 = vpop.f32.mrb[0].mxu0
        %v6093 = vadd.f32 %v5932, %v6092
        %v6094 = vpop.f32.mrb[0].mxu0
        %6095 = vmatprep.mubr.bf16.mxu0 %v4607
        %6096 = vmatmul.mubr.bf16.gmra.mrb[0].mxu0 %v4405
        %v6097 = vpop.f32.mrb[0].mxu0
        %v6098 = vadd.f32 %v5937, %v6097
        %v6099 = vpop.f32.mrb[0].mxu0
        %v6100 = vpop.f32.mrb[0].mxu0
        %v6101 = vadd.f32 %v5940, %v6100
        %v6102 = vpop.f32.mrb[0].mxu0
        %6103 = vmatprep.mubr.bf16.mxu0 %v4610
        %6104 = vmatmul.mubr.bf16.gmra.mrb[0].mxu0 %v4417
        %v6105 = vpop.f32.mrb[0].mxu0
        %v6106 = vadd.f32 %v5945, %v6105
        %v6107 = vpop.f32.mrb[0].mxu0
        %v6108 = vpop.f32.mrb[0].mxu0
        %v6109 = vadd.f32 %v5948, %v6108
        %v6110 = vpop.f32.mrb[0].mxu0
        %6111 = vmatprep.mubr.bf16.mxu0 %v4613
        %6112 = vmatmul.mubr.bf16.gmra.mrb[0].mxu0 %v4429
        %v6113 = vpop.f32.mrb[0].mxu0
        %v6114 = vadd.f32 %v5953, %v6113
        %v6115 = vpop.f32.mrb[0].mxu0
        %v6116 = vpop.f32.mrb[0].mxu0
        %v6117 = vadd.f32 %v5956, %v6116
        %v6118 = vpop.f32.mrb[0].mxu0
        %6119 = vmatprep.mubr.bf16.mxu0 %v4616
        %6120 = vmatmul.mubr.bf16.gmra.mrb[0].mxu0 %v4441
        %v6121 = vpop.f32.mrb[0].mxu0
        %v6122 = vadd.f32 %v5961, %v6121
        %v6123 = vpop.f32.mrb[0].mxu0
        %v6124 = vpop.f32.mrb[0].mxu0
        %v6125 = vadd.f32 %v5964, %v6124
        %v6126 = vpop.f32.mrb[0].mxu0
        %6127 = vmatprep.mubr.bf16.mxu0 %v4619
        %6128 = vmatmul.mubr.bf16.gmra.mrb[0].mxu0 %v4453
        %v6129 = vpop.f32.mrb[0].mxu0
        %v6130 = vadd.f32 %v5969, %v6129
        %v6131 = vpop.f32.mrb[0].mxu0
        %v6132 = vpop.f32.mrb[0].mxu0
        %v6133 = vadd.f32 %v5972, %v6132
        %v6134 = vpop.f32.mrb[0].mxu0
        %6135 = vmatprep.mubr.bf16.mxu0 %v4622
        %6136 = vmatmul.mubr.bf16.gmra.mrb[0].mxu0 %v4465
        %v6137 = vpop.f32.mrb[0].mxu0
        %v6138 = vadd.f32 %v5977, %v6137
        %v6139 = vpop.f32.mrb[0].mxu0
        %v6140 = vpop.f32.mrb[0].mxu0
        %v6141 = vadd.f32 %v5980, %v6140
        %v6142 = vpop.f32.mrb[0].mxu0
        %6143 = vmatprep.mubr.bf16.mxu0 %v4625
        %6144 = vmatmul.mubr.bf16.gmra.mrb[0].mxu0 %v4477
        %v6145 = vpop.f32.mrb[0].mxu0
        %v6146 = vadd.f32 %v5985, %v6145
        %v6147 = vpop.f32.mrb[0].mxu0
        %v6148 = vpop.f32.mrb[0].mxu0
        %v6149 = vadd.f32 %v5988, %v6148
        %v6150 = vpop.f32.mrb[0].mxu0
        %6151 = vmatprep.mubr.bf16.mxu0 %v4628
        %6152 = vmatmul.mubr.bf16.gmra.mrb[0].mxu0 %v4489
        %v6153 = vpop.f32.mrb[0].mxu0
        %v6154 = vadd.f32 %v5993, %v6153
        %v6155 = vpop.f32.mrb[0].mxu0
        %v6156 = vpop.f32.mrb[0].mxu0
        %v6157 = vadd.f32 %v5996, %v6156
        %v6158 = vpop.f32.mrb[0].mxu0
        %6159 = vmatprep.mubr.bf16.mxu0 %v4631
        %6160 = vmatmul.mubr.bf16.gmra.mrb[0].mxu0 %v4501
        %v6161 = vpop.f32.mrb[0].mxu0
        %v6162 = vadd.f32 %v6001, %v6161
        %v6163 = vpop.f32.mrb[0].mxu0
        %v6164 = vpop.f32.mrb[0].mxu0
        %v6165 = vadd.f32 %v6004, %v6164
        %v6166 = vpop.f32.mrb[0].mxu0
        %6167 = vmatprep.mubr.bf16.mxu0 %v4634
        %6168 = vmatmul.mubr.bf16.gmra.mrb[0].mxu0 %v4513
        %v6169 = vpop.f32.mrb[0].mxu0
        %v6170 = vadd.f32 %v6009, %v6169
        %v6171 = vpop.f32.mrb[0].mxu0
        %v6172 = vpop.f32.mrb[0].mxu0
        %v6173 = vadd.f32 %v6012, %v6172
        %v6174 = vpop.f32.mrb[0].mxu0
        %6175 = vmatprep.mubr.bf16.mxu0 %v4637
        %6176 = vmatmul.mubr.bf16.gmra.mrb[0].mxu0 %v4525
        %v6177 = vpop.f32.mrb[0].mxu0
        %v6178 = vadd.f32 %v6017, %v6177
        %v6179 = vpop.f32.mrb[0].mxu0
        %v6180 = vpop.f32.mrb[0].mxu0
        %v6181 = vadd.f32 %v6020, %v6180
        %v6182 = vpop.f32.mrb[0].mxu0
        %6183 = vdwg.mxu0
        %6184 = vmatprep.subr.bf16.mxu0 0
        %6185 = vmatpush1.bf16.msra.mxu0 %v5605
        %6186 = vmatprep.subr.bf16.mxu0 0
        %6187 = vmatpush1.bf16.msra.mxu0 %v5606
        %6188 = vmatprep.subr.bf16.mxu0 0
        %6189 = vmatpush1.bf16.msra.mxu0 %v5607
        %6190 = vmatprep.subr.bf16.mxu0 0
        %6191 = vmatpush1.bf16.msra.mxu0 %v5608
        %6192 = vmatprep.subr.bf16.mxu0 0
        %6193 = vmatpush1.bf16.msra.mxu0 %v5609
        %6194 = vmatprep.subr.bf16.mxu0 0
        %6195 = vmatpush1.bf16.msra.mxu0 %v5610
        %6196 = vmatprep.subr.bf16.mxu0 0
        %6197 = vmatpush1.bf16.msra.mxu0 %v5611
        %6198 = vmatprep.subr.bf16.mxu0 0
        %6199 = vmatpush1.bf16.msra.mxu0 %v5612
        %6200 = vmatprep.subr.bf16.mxu0 0
        %6201 = vmatpush1.bf16.msra.mxu0 %v5613
        %6202 = vmatprep.subr.bf16.mxu0 0
        %6203 = vmatpush1.bf16.msra.mxu0 %v5614
        %6204 = vmatprep.subr.bf16.mxu0 0
        %6205 = vmatpush1.bf16.msra.mxu0 %v5615
        %6206 = vmatprep.subr.bf16.mxu0 0
        %6207 = vmatpush1.bf16.msra.mxu0 %v5616
        %6208 = vmatprep.subr.bf16.mxu0 0
        %6209 = vmatpush1.bf16.msra.mxu0 %v5617
        %6210 = vmatprep.subr.bf16.mxu0 0
        %6211 = vmatpush1.bf16.msra.mxu0 %v5618
        %6212 = vmatprep.subr.bf16.mxu0 0
        %6213 = vmatpush1.bf16.msra.mxu0 %v5619
        %6214 = vmatprep.subr.bf16.mxu0 0
        %6215 = vmatpush1.bf16.msra.mxu0 %v5620
        %6216 = vmatprep.mubr.bf16.mxu0 %v4809
        %6217 = vmatmul.mubr.bf16.gmra.mrb[0].mxu0 %v4718
        %v6218 = vpop.f32.mrb[0].mxu0
        %v6219 = vadd.f32 %v6058, %v6218
        %v6220 = vpop.f32.mrb[0].mxu0
        %v6221 = vpop.f32.mrb[0].mxu0
        %v6222 = vadd.f32 %v6061, %v6221
        %v6223 = vpop.f32.mrb[0].mxu0
        %6224 = vmatprep.mubr.bf16.mxu0 %v4821
        %6225 = vmatmul.mubr.bf16.gmra.mrb[0].mxu0 %v4719
        %v6226 = vpop.f32.mrb[0].mxu0
        %v6227 = vadd.f32 %v6066, %v6226
        %v6228 = vpop.f32.mrb[0].mxu0
        %v6229 = vpop.f32.mrb[0].mxu0
        %v6230 = vadd.f32 %v6069, %v6229
        %v6231 = vpop.f32.mrb[0].mxu0
        %6232 = vmatprep.mubr.bf16.mxu0 %v4833
        %6233 = vmatmul.mubr.bf16.gmra.mrb[0].mxu0 %v4720
        %v6234 = vpop.f32.mrb[0].mxu0
        %v6235 = vadd.f32 %v6074, %v6234
        %v6236 = vpop.f32.mrb[0].mxu0
        %v6237 = vpop.f32.mrb[0].mxu0
        %v6238 = vadd.f32 %v6077, %v6237
        %v6239 = vpop.f32.mrb[0].mxu0
        %6240 = vmatprep.mubr.bf16.mxu0 %v4845
        %6241 = vmatmul.mubr.bf16.gmra.mrb[0].mxu0 %v4721
        %v6242 = vpop.f32.mrb[0].mxu0
        %v6243 = vadd.f32 %v6082, %v6242
        %v6244 = vpop.f32.mrb[0].mxu0
        %v6245 = vpop.f32.mrb[0].mxu0
        %v6246 = vadd.f32 %v6085, %v6245
        %v6247 = vpop.f32.mrb[0].mxu0
        %6248 = vmatprep.mubr.bf16.mxu0 %v4857
        %6249 = vmatmul.mubr.bf16.gmra.mrb[0].mxu0 %v4722
        %v6250 = vpop.f32.mrb[0].mxu0
        %v6251 = vadd.f32 %v6090, %v6250
        %v6252 = vpop.f32.mrb[0].mxu0
        %v6253 = vpop.f32.mrb[0].mxu0
        %v6254 = vadd.f32 %v6093, %v6253
        %v6255 = vpop.f32.mrb[0].mxu0
        %6256 = vmatprep.mubr.bf16.mxu0 %v4869
        %6257 = vmatmul.mubr.bf16.gmra.mrb[0].mxu0 %v4723
        %v6258 = vpop.f32.mrb[0].mxu0
        %v6259 = vadd.f32 %v6098, %v6258
        %v6260 = vpop.f32.mrb[0].mxu0
        %v6261 = vpop.f32.mrb[0].mxu0
        %v6262 = vadd.f32 %v6101, %v6261
        %v6263 = vpop.f32.mrb[0].mxu0
        %6264 = vmatprep.mubr.bf16.mxu0 %v4881
        %6265 = vmatmul.mubr.bf16.gmra.mrb[0].mxu0 %v4724
        %v6266 = vpop.f32.mrb[0].mxu0
        %v6267 = vadd.f32 %v6106, %v6266
        %v6268 = vpop.f32.mrb[0].mxu0
        %v6269 = vpop.f32.mrb[0].mxu0
        %v6270 = vadd.f32 %v6109, %v6269
        %v6271 = vpop.f32.mrb[0].mxu0
        %6272 = vmatprep.mubr.bf16.mxu0 %v4893
        %6273 = vmatmul.mubr.bf16.gmra.mrb[0].mxu0 %v4725
        %v6274 = vpop.f32.mrb[0].mxu0
        %v6275 = vadd.f32 %v6114, %v6274
        %v6276 = vpop.f32.mrb[0].mxu0
        %v6277 = vpop.f32.mrb[0].mxu0
        %v6278 = vadd.f32 %v6117, %v6277
        %v6279 = vpop.f32.mrb[0].mxu0
        %6280 = vmatprep.mubr.bf16.mxu0 %v4905
        %6281 = vmatmul.mubr.bf16.gmra.mrb[0].mxu0 %v4726
        %v6282 = vpop.f32.mrb[0].mxu0
        %v6283 = vadd.f32 %v6122, %v6282
        %v6284 = vpop.f32.mrb[0].mxu0
        %v6285 = vpop.f32.mrb[0].mxu0
        %v6286 = vadd.f32 %v6125, %v6285
        %v6287 = vpop.f32.mrb[0].mxu0
        %6288 = vmatprep.mubr.bf16.mxu0 %v4917
        %6289 = vmatmul.mubr.bf16.gmra.mrb[0].mxu0 %v4727
        %v6290 = vpop.f32.mrb[0].mxu0
        %v6291 = vadd.f32 %v6130, %v6290
        %v6292 = vpop.f32.mrb[0].mxu0
        %v6293 = vpop.f32.mrb[0].mxu0
        %v6294 = vadd.f32 %v6133, %v6293
        %v6295 = vpop.f32.mrb[0].mxu0
        %6296 = vmatprep.mubr.bf16.mxu0 %v4929
        %6297 = vmatmul.mubr.bf16.gmra.mrb[0].mxu0 %v4728
        %v6298 = vpop.f32.mrb[0].mxu0
        %v6299 = vadd.f32 %v6138, %v6298
        %v6300 = vpop.f32.mrb[0].mxu0
        %v6301 = vpop.f32.mrb[0].mxu0
        %v6302 = vadd.f32 %v6141, %v6301
        %v6303 = vpop.f32.mrb[0].mxu0
        %6304 = vmatprep.mubr.bf16.mxu0 %v4941
        %6305 = vmatmul.mubr.bf16.gmra.mrb[0].mxu0 %v4729
        %v6306 = vpop.f32.mrb[0].mxu0
        %v6307 = vadd.f32 %v6146, %v6306
        %v6308 = vpop.f32.mrb[0].mxu0
        %v6309 = vpop.f32.mrb[0].mxu0
        %v6310 = vadd.f32 %v6149, %v6309
        %v6311 = vpop.f32.mrb[0].mxu0
        %6312 = vmatprep.mubr.bf16.mxu0 %v4953
        %6313 = vmatmul.mubr.bf16.gmra.mrb[0].mxu0 %v4730
        %v6314 = vpop.f32.mrb[0].mxu0
        %v6315 = vadd.f32 %v6154, %v6314
        %v6316 = vpop.f32.mrb[0].mxu0
        %v6317 = vpop.f32.mrb[0].mxu0
        %v6318 = vadd.f32 %v6157, %v6317
        %v6319 = vpop.f32.mrb[0].mxu0
        %6320 = vmatprep.mubr.bf16.mxu0 %v4965
        %6321 = vmatmul.mubr.bf16.gmra.mrb[0].mxu0 %v4731
        %v6322 = vpop.f32.mrb[0].mxu0
        %v6323 = vadd.f32 %v6162, %v6322
        %v6324 = vpop.f32.mrb[0].mxu0
        %v6325 = vpop.f32.mrb[0].mxu0
        %v6326 = vadd.f32 %v6165, %v6325
        %v6327 = vpop.f32.mrb[0].mxu0
        %6328 = vmatprep.mubr.bf16.mxu0 %v4977
        %6329 = vmatmul.mubr.bf16.gmra.mrb[0].mxu0 %v4732
        %v6330 = vpop.f32.mrb[0].mxu0
        %v6331 = vadd.f32 %v6170, %v6330
        %v6332 = vpop.f32.mrb[0].mxu0
        %v6333 = vpop.f32.mrb[0].mxu0
        %v6334 = vadd.f32 %v6173, %v6333
        %v6335 = vpop.f32.mrb[0].mxu0
        %6336 = vmatprep.mubr.bf16.mxu0 %v4989
        %6337 = vmatmul.mubr.bf16.gmra.mrb[0].mxu0 %v4733
        %v6338 = vpop.f32.mrb[0].mxu0
        %v6339 = vadd.f32 %v6178, %v6338
        %v6340 = vpop.f32.mrb[0].mxu0
        %v6341 = vpop.f32.mrb[0].mxu0
        %v6342 = vadd.f32 %v6181, %v6341
        %v6343 = vpop.f32.mrb[0].mxu0
        %6344 = vdwg.mxu0
        %6345 = vmatprep.subr.bf16.mxu0 0
        %6346 = vmatpush1.bf16.msra.mxu0 %v5621
        %6347 = vmatprep.subr.bf16.mxu0 0
        %6348 = vmatpush1.bf16.msra.mxu0 %v5622
        %6349 = vmatprep.subr.bf16.mxu0 0
        %6350 = vmatpush1.bf16.msra.mxu0 %v5623
        %6351 = vmatprep.subr.bf16.mxu0 0
        %6352 = vmatpush1.bf16.msra.mxu0 %v5624
        %6353 = vmatprep.subr.bf16.mxu0 0
        %6354 = vmatpush1.bf16.msra.mxu0 %v5625
        %6355 = vmatprep.subr.bf16.mxu0 0
        %6356 = vmatpush1.bf16.msra.mxu0 %v5626
        %6357 = vmatprep.subr.bf16.mxu0 0
        %6358 = vmatpush1.bf16.msra.mxu0 %v5627
        %6359 = vmatprep.subr.bf16.mxu0 0
        %6360 = vmatpush1.bf16.msra.mxu0 %v5628
        %6361 = vmatprep.subr.bf16.mxu0 0
        %6362 = vmatpush1.bf16.msra.mxu0 0
        %6363 = vmatprep.subr.bf16.mxu0 0
        %6364 = vmatpush1.bf16.msra.mxu0 0
        %6365 = vmatprep.subr.bf16.mxu0 0
        %6366 = vmatpush1.bf16.msra.mxu0 0
        %6367 = vmatprep.subr.bf16.mxu0 0
        %6368 = vmatpush1.bf16.msra.mxu0 0
        %6369 = vmatprep.subr.bf16.mxu0 0
        %6370 = vmatpush1.bf16.msra.mxu0 0
        %6371 = vmatprep.subr.bf16.mxu0 0
        %6372 = vmatpush1.bf16.msra.mxu0 0
        %6373 = vmatprep.subr.bf16.mxu0 0
        %6374 = vmatpush1.bf16.msra.mxu0 0
        %6375 = vmatprep.subr.bf16.mxu0 0
        %6376 = vmatpush1.bf16.msra.mxu0 0
        %6377 = vmatprep.mubr.bf16.mxu0 0
        %6378 = vmatmul.mubr.bf16.gmra.mrb[0].mxu0 %v5056
        %v6379 = vpop.f32.mrb[0].mxu0
        %v6380 = vadd.f32 %v6219, %v6379
        %v6381 = vpop.f32.mrb[0].mxu0
        %v6382 = vpop.f32.mrb[0].mxu0
        %v6383 = vadd.f32 %v6222, %v6382
        %v6384 = vpop.f32.mrb[0].mxu0
        %6385 = vmatprep.mubr.bf16.mxu0 0
        %6386 = vmatmul.mubr.bf16.gmra.mrb[0].mxu0 %v5059
        %v6387 = vpop.f32.mrb[0].mxu0
        %v6388 = vadd.f32 %v6227, %v6387
        %v6389 = vpop.f32.mrb[0].mxu0
        %v6390 = vpop.f32.mrb[0].mxu0
        %v6391 = vadd.f32 %v6230, %v6390
        %v6392 = vpop.f32.mrb[0].mxu0
        %6393 = vmatprep.mubr.bf16.mxu0 0
        %6394 = vmatmul.mubr.bf16.gmra.mrb[0].mxu0 %v5062
        %v6395 = vpop.f32.mrb[0].mxu0
        %v6396 = vadd.f32 %v6235, %v6395
        %v6397 = vpop.f32.mrb[0].mxu0
        %v6398 = vpop.f32.mrb[0].mxu0
        %v6399 = vadd.f32 %v6238, %v6398
        %v6400 = vpop.f32.mrb[0].mxu0
        %6401 = vmatprep.mubr.bf16.mxu0 0
        %6402 = vmatmul.mubr.bf16.gmra.mrb[0].mxu0 %v5065
        %v6403 = vpop.f32.mrb[0].mxu0
        %v6404 = vadd.f32 %v6243, %v6403
        %v6405 = vpop.f32.mrb[0].mxu0
        %v6406 = vpop.f32.mrb[0].mxu0
        %v6407 = vadd.f32 %v6246, %v6406
        %v6408 = vpop.f32.mrb[0].mxu0
        %6409 = vmatprep.mubr.bf16.mxu0 0
        %6410 = vmatmul.mubr.bf16.gmra.mrb[0].mxu0 %v5068
        %v6411 = vpop.f32.mrb[0].mxu0
        %v6412 = vadd.f32 %v6251, %v6411
        %v6413 = vpop.f32.mrb[0].mxu0
        %v6414 = vpop.f32.mrb[0].mxu0
        %v6415 = vadd.f32 %v6254, %v6414
        %v6416 = vpop.f32.mrb[0].mxu0
        %6417 = vmatprep.mubr.bf16.mxu0 0
        %6418 = vmatmul.mubr.bf16.gmra.mrb[0].mxu0 %v5071
        %v6419 = vpop.f32.mrb[0].mxu0
        %v6420 = vadd.f32 %v6259, %v6419
        %v6421 = vpop.f32.mrb[0].mxu0
        %v6422 = vpop.f32.mrb[0].mxu0
        %v6423 = vadd.f32 %v6262, %v6422
        %v6424 = vpop.f32.mrb[0].mxu0
        %6425 = vmatprep.mubr.bf16.mxu0 0
        %6426 = vmatmul.mubr.bf16.gmra.mrb[0].mxu0 %v5074
        %v6427 = vpop.f32.mrb[0].mxu0
        %v6428 = vadd.f32 %v6267, %v6427
        %v6429 = vpop.f32.mrb[0].mxu0
        %v6430 = vpop.f32.mrb[0].mxu0
        %v6431 = vadd.f32 %v6270, %v6430
        %v6432 = vpop.f32.mrb[0].mxu0
        %6433 = vmatprep.mubr.bf16.mxu0 0
        %6434 = vmatmul.mubr.bf16.gmra.mrb[0].mxu0 %v5077
        %v6435 = vpop.f32.mrb[0].mxu0
        %v6436 = vadd.f32 %v6275, %v6435
        %v6437 = vpop.f32.mrb[0].mxu0
        %v6438 = vpop.f32.mrb[0].mxu0
        %v6439 = vadd.f32 %v6278, %v6438
        %v6440 = vpop.f32.mrb[0].mxu0
        %6441 = vmatprep.mubr.bf16.mxu0 0
        %6442 = vmatmul.mubr.bf16.gmra.mrb[0].mxu0 %v5080
        %v6443 = vpop.f32.mrb[0].mxu0
        %v6444 = vadd.f32 %v6283, %v6443
        %v6445 = vpop.f32.mrb[0].mxu0
        %v6446 = vpop.f32.mrb[0].mxu0
        %v6447 = vadd.f32 %v6286, %v6446
        %v6448 = vpop.f32.mrb[0].mxu0
        %6449 = vmatprep.mubr.bf16.mxu0 0
        %6450 = vmatmul.mubr.bf16.gmra.mrb[0].mxu0 %v5083
        %v6451 = vpop.f32.mrb[0].mxu0
        %v6452 = vadd.f32 %v6291, %v6451
        %v6453 = vpop.f32.mrb[0].mxu0
        %v6454 = vpop.f32.mrb[0].mxu0
        %v6455 = vadd.f32 %v6294, %v6454
        %v6456 = vpop.f32.mrb[0].mxu0
        %6457 = vmatprep.mubr.bf16.mxu0 0
        %6458 = vmatmul.mubr.bf16.gmra.mrb[0].mxu0 %v5086
        %v6459 = vpop.f32.mrb[0].mxu0
        %v6460 = vadd.f32 %v6299, %v6459
        %v6461 = vpop.f32.mrb[0].mxu0
        %v6462 = vpop.f32.mrb[0].mxu0
        %v6463 = vadd.f32 %v6302, %v6462
        %v6464 = vpop.f32.mrb[0].mxu0
        %6465 = vmatprep.mubr.bf16.mxu0 0
        %6466 = vmatmul.mubr.bf16.gmra.mrb[0].mxu0 %v5089
        %v6467 = vpop.f32.mrb[0].mxu0
        %v6468 = vadd.f32 %v6307, %v6467
        %v6469 = vpop.f32.mrb[0].mxu0
        %v6470 = vpop.f32.mrb[0].mxu0
        %v6471 = vadd.f32 %v6310, %v6470
        %v6472 = vpop.f32.mrb[0].mxu0
        %6473 = vmatprep.mubr.bf16.mxu0 0
        %6474 = vmatmul.mubr.bf16.gmra.mrb[0].mxu0 %v5092
        %v6475 = vpop.f32.mrb[0].mxu0
        %v6476 = vadd.f32 %v6315, %v6475
        %v6477 = vpop.f32.mrb[0].mxu0
        %v6478 = vpop.f32.mrb[0].mxu0
        %v6479 = vadd.f32 %v6318, %v6478
        %v6480 = vpop.f32.mrb[0].mxu0
        %6481 = vmatprep.mubr.bf16.mxu0 0
        %6482 = vmatmul.mubr.bf16.gmra.mrb[0].mxu0 %v5095
        %v6483 = vpop.f32.mrb[0].mxu0
        %v6484 = vadd.f32 %v6323, %v6483
        %v6485 = vpop.f32.mrb[0].mxu0
        %v6486 = vpop.f32.mrb[0].mxu0
        %v6487 = vadd.f32 %v6326, %v6486
        %v6488 = vpop.f32.mrb[0].mxu0
        %6489 = vmatprep.mubr.bf16.mxu0 0
        %6490 = vmatmul.mubr.bf16.gmra.mrb[0].mxu0 %v5098
        %v6491 = vpop.f32.mrb[0].mxu0
        %v6492 = vadd.f32 %v6331, %v6491
        %v6493 = vpop.f32.mrb[0].mxu0
        %v6494 = vpop.f32.mrb[0].mxu0
        %v6495 = vadd.f32 %v6334, %v6494
        %v6496 = vpop.f32.mrb[0].mxu0
        %6497 = vmatprep.mubr.bf16.mxu0 0
        %6498 = vmatmul.mubr.bf16.gmra.mrb[0].mxu0 %v5101
        %v6499 = vpop.f32.mrb[0].mxu0
        %v6500 = vadd.f32 %v6339, %v6499
        %v6501 = vpop.f32.mrb[0].mxu0
        %v6502 = vpop.f32.mrb[0].mxu0
        %v6503 = vadd.f32 %v6342, %v6502
        %v6504 = vpop.f32.mrb[0].mxu0
        %6505 = vdwg.mxu0
        %v6506 = vmax.f32 %v6380, 0.0
        %v6507 = vmax.f32 %v6383, 0.0
        %v6508 = vmax.f32 %v6388, 0.0
        %v6509 = vmax.f32 %v6391, 0.0
        %v6510 = vmax.f32 %v6396, 0.0
        %v6511 = vmax.f32 %v6399, 0.0
        %v6512 = vmax.f32 %v6404, 0.0
        %v6513 = vmax.f32 %v6407, 0.0
        %v6514 = vmax.f32 %v6412, 0.0
        %v6515 = vmax.f32 %v6415, 0.0
        %v6516 = vmax.f32 %v6420, 0.0
        %v6517 = vmax.f32 %v6423, 0.0
        %v6518 = vmax.f32 %v6428, 0.0
        %v6519 = vmax.f32 %v6431, 0.0
        %v6520 = vmax.f32 %v6436, 0.0
        %v6521 = vmax.f32 %v6439, 0.0
        %v6522 = vmax.f32 %v6444, 0.0
        %v6523 = vmax.f32 %v6447, 0.0
        %v6524 = vmax.f32 %v6452, 0.0
        %v6525 = vmax.f32 %v6455, 0.0
        %v6526 = vmax.f32 %v6460, 0.0
        %v6527 = vmax.f32 %v6463, 0.0
        %v6528 = vmax.f32 %v6468, 0.0
        %v6529 = vmax.f32 %v6471, 0.0
        %v6530 = vmax.f32 %v6476, 0.0
        %v6531 = vmax.f32 %v6479, 0.0
        %v6532 = vmax.f32 %v6484, 0.0
        %v6533 = vmax.f32 %v6487, 0.0
        %v6534 = vmax.f32 %v6492, 0.0
        %v6535 = vmax.f32 %v6495, 0.0
        %v6536 = vmax.f32 %v6500, 0.0
        %v6537 = vmax.f32 %v6503, 0.0
        %v6538 = vpack.c.bf16 %v6507, %v6506
        %v6539 = vpack.c.bf16 %v6509, %v6508
        %v6540 = vpack.c.bf16 %v6511, %v6510
        %v6541 = vpack.c.bf16 %v6513, %v6512
        %v6542 = vpack.c.bf16 %v6515, %v6514
        %v6543 = vpack.c.bf16 %v6517, %v6516
        %v6544 = vpack.c.bf16 %v6519, %v6518
        %v6545 = vpack.c.bf16 %v6521, %v6520
        %v6546 = vpack.c.bf16 %v6523, %v6522
        %v6547 = vpack.c.bf16 %v6525, %v6524
        %v6548 = vpack.c.bf16 %v6527, %v6526
        %v6549 = vpack.c.bf16 %v6529, %v6528
        %v6550 = vpack.c.bf16 %v6531, %v6530
        %v6551 = vpack.c.bf16 %v6533, %v6532
        %v6552 = vpack.c.bf16 %v6535, %v6534
        %v6553 = vpack.c.bf16 %v6537, %v6536
        %v6570 = vunpack.c.l.b16 %v6538
        %v6571 = vunpack.c.h.b16 %v6538
        %v6572 = vunpack.c.l.b16 %v6539
        %v6573 = vunpack.c.h.b16 %v6539
        %v6574 = vunpack.c.l.b16 %v6540
        %v6575 = vunpack.c.h.b16 %v6540
        %v6576 = vunpack.c.l.b16 %v6541
        %v6577 = vunpack.c.h.b16 %v6541
        %v6578 = vunpack.c.l.b16 %v6542
        %v6579 = vunpack.c.h.b16 %v6542
        %v6580 = vunpack.c.l.b16 %v6543
        %v6581 = vunpack.c.h.b16 %v6543
        %v6582 = vunpack.c.l.b16 %v6544
        %v6583 = vunpack.c.h.b16 %v6544
        %v6584 = vunpack.c.l.b16 %v6545
        %v6585 = vunpack.c.h.b16 %v6545
        %v6586 = vunpack.c.l.b16 %v6546
        %v6587 = vunpack.c.h.b16 %v6546
        %v6588 = vunpack.c.l.b16 %v6547
        %v6589 = vunpack.c.h.b16 %v6547
        %v6590 = vunpack.c.l.b16 %v6548
        %v6591 = vunpack.c.h.b16 %v6548
        %v6592 = vunpack.c.l.b16 %v6549
        %v6593 = vunpack.c.h.b16 %v6549
        %v6594 = vunpack.c.l.b16 %v6550
        %v6595 = vunpack.c.h.b16 %v6550
        %v6596 = vunpack.c.l.b16 %v6551
        %v6597 = vunpack.c.h.b16 %v6551
        %v6598 = vunpack.c.l.b16 %v6552
        %v6599 = vunpack.c.h.b16 %v6552
        %v6600 = vunpack.c.l.b16 %v6553
        %v6601 = vunpack.c.h.b16 %v6553
        %v6602 = vpack.c.b16 %v6570, %v6570
        %v6603 = vpack.c.b16 %v6571, %v6571
        %v6604 = vpack.c.b16 %v6572, %v6572
        %v6605 = vpack.c.b16 %v6573, %v6573
        %v6606 = vpack.c.b16 %v6574, %v6574
        %v6607 = vpack.c.b16 %v6575, %v6575
        %v6608 = vpack.c.b16 %v6576, %v6576
        %v6609 = vpack.c.b16 %v6577, %v6577
        %v6610 = vpack.c.b16 %v6578, %v6578
        %v6611 = vpack.c.b16 %v6579, %v6579
        %v6612 = vpack.c.b16 %v6580, %v6580
        %v6613 = vpack.c.b16 %v6581, %v6581
        %v6614 = vpack.c.b16 %v6582, %v6582
        %v6615 = vpack.c.b16 %v6583, %v6583
        %v6616 = vpack.c.b16 %v6584, %v6584
        %v6617 = vpack.c.b16 %v6585, %v6585
        %v6618 = vpack.c.b16 %v6586, %v6586
        %v6619 = vpack.c.b16 %v6587, %v6587
        %v6620 = vpack.c.b16 %v6588, %v6588
        %v6621 = vpack.c.b16 %v6589, %v6589
        %v6622 = vpack.c.b16 %v6590, %v6590
        %v6623 = vpack.c.b16 %v6591, %v6591
        %v6624 = vpack.c.b16 %v6592, %v6592
        %v6625 = vpack.c.b16 %v6593, %v6593
        %v6626 = vpack.c.b16 %v6594, %v6594
        %v6627 = vpack.c.b16 %v6595, %v6595
        %v6628 = vpack.c.b16 %v6596, %v6596
        %v6629 = vpack.c.b16 %v6597, %v6597
        %v6630 = vpack.c.b16 %v6598, %v6598
        %v6631 = vpack.c.b16 %v6599, %v6599
        %v6632 = vpack.c.b16 %v6600, %v6600
        %v6633 = vpack.c.b16 %v6601, %v6601
        %6666 = vst [vmem:[%s232] sm:$0xf] %v6602
        %6667 = vst [vmem:[%s232 + $0x4] sm:$0xf] %v6603
        %6668 = vst [vmem:[%s232 + $0x8] sm:$0xf] %v6604
        %6669 = vst [vmem:[%s232 + $0xc] sm:$0xf] %v6605
        %6670 = vst [vmem:[%s232 + $0x10] sm:$0xf] %v6606
        %6671 = vst [vmem:[%s232 + $0x14] sm:$0xf] %v6607
        %6672 = vst [vmem:[%s232 + $0x18] sm:$0xf] %v6608
        %6673 = vst [vmem:[%s232 + $0x1c] sm:$0xf] %v6609
        %6674 = vst [vmem:[%s232 + $0x20] sm:$0xf] %v6610
        %6675 = vst [vmem:[%s232 + $0x24] sm:$0xf] %v6611
        %6676 = vst [vmem:[%s232 + $0x28] sm:$0xf] %v6612
        %6677 = vst [vmem:[%s232 + $0x2c] sm:$0xf] %v6613
        %6678 = vst [vmem:[%s232 + $0x30] sm:$0xf] %v6614
        %6679 = vst [vmem:[%s232 + $0x34] sm:$0xf] %v6615
        %6680 = vst [vmem:[%s232 + $0x38] sm:$0xf] %v6616
        %6681 = vst [vmem:[%s232 + $0x3c] sm:$0xf] %v6617
        %6682 = vst [vmem:[%s232 + $0x40] sm:$0xf] %v6618
        %6683 = vst [vmem:[%s232 + $0x44] sm:$0xf] %v6619
        %6684 = vst [vmem:[%s232 + $0x48] sm:$0xf] %v6620
        %6685 = vst [vmem:[%s232 + $0x4c] sm:$0xf] %v6621
        %6686 = vst [vmem:[%s232 + $0x50] sm:$0xf] %v6622
        %6687 = vst [vmem:[%s232 + $0x54] sm:$0xf] %v6623
        %6688 = vst [vmem:[%s232 + $0x58] sm:$0xf] %v6624
        %6689 = vst [vmem:[%s232 + $0x5c] sm:$0xf] %v6625
        %6690 = vst [vmem:[%s232 + $0x60] sm:$0xf] %v6626
        %6691 = vst [vmem:[%s232 + $0x64] sm:$0xf] %v6627
        %6692 = vst [vmem:[%s232 + $0x68] sm:$0xf] %v6628
        %6693 = vst [vmem:[%s232 + $0x6c] sm:$0xf] %v6629
        %6694 = vst [vmem:[%s232 + $0x70] sm:$0xf] %v6630
        %6695 = vst [vmem:[%s232 + $0x74] sm:$0xf] %v6631
        %6696 = vst [vmem:[%s232 + $0x78] sm:$0xf] %v6632
        %6697 = vst [vmem:[%s232 + $0x7c] sm:$0xf] %v6633
        %s6698 = sand.u32 %s138, 1
        %s6699 = scalar_lea.sflag [#allocation5], %s6698
        %s6700 = sand.u32 %s138, 1
        %s6701 = smul.addr %s6700, 128
        %s6702 = scalar_lea.vmem [#allocation6], %s6701
        // Predicated region
        $region45: #{tpu_custom_call.1} parent=39 // pred_check
          %p6703 = pneg %p148
        $region46: #{tpu_custom_call.1} parent=39 // pred_check_branch
          %6705 = sbr.rel (%p6703) target = $region48
        $region47: #{tpu_custom_call.1} parent=39 // pred_region
          %s6707 = ssub.s32 2048, 2048
          %6708 = vsyncadd %s6699, %s6707
          %s6709 = smul.addr %s20, 32
          %s6710 = smul.addr %s6709, 64
          %s6711 = scalar_lea.hbm %s5, %s6710
          %s6712 = sshll.u32 %s6702, 4
          %s6713 = int_to_ptr.vmem [resolvable:$true] %s6712
          %6718 = dma.vmem_to_hbm [thread:$0]  %s6713, 2048, %s6711, %s6699, 64, 64, 4
        $region48: #{tpu_custom_call.1} parent=39 // pred_fallthru
          _
      $region40: #{tpu_custom_call.1} parent=5 // pred_fallthru
        _
      %p6719 = scmp.le.s32.totalorder 2, %s15
      // Predicated region
      $region49: #{tpu_custom_call.1} parent=5 // pred_check
        %p6720 = pneg %p6719
      $region50: #{tpu_custom_call.1} parent=5 // pred_check_branch
        %6722 = sbr.rel (%p6720) target = $region52
      $region51: #{tpu_custom_call.1} parent=5 // pred_region
        %s6723 = ssub.s32 %s15, 2
        // Predicated region
        $region53: #{tpu_custom_call.1} parent=51 // pred_check
          %p6724 = pneg %p154
        $region54: #{tpu_custom_call.1} parent=51 // pred_check_branch
          %6726 = sbr.rel (%p6724) target = $region56
        $region55: #{tpu_custom_call.1} parent=51 // pred_region
          %s6727 = sand.u32 %s139, 1
          %s6728 = scalar_lea.sflag [#allocation5], %s6727
          %s6729 = sand.u32 %s139, 1
          %s6730 = smul.addr %s6729, 128
          %s6731 = scalar_lea.vmem [#allocation6], %s6730
          %6732 = dma.done %s6728, 2048
        $region56: #{tpu_custom_call.1} parent=51 // pred_fallthru
          _
      $region52: #{tpu_custom_call.1} parent=5 // pred_fallthru
        _
    $region6: #{tpu_custom_call.1} parent=1 // loop_footer
      %s19 = sadd.s32 1, %s15
    $region7: #{tpu_custom_call.1} parent=1 // loop_footer_branch
      %14 = sbr.rel target = $region3
    $region8: #{tpu_custom_call.1} parent=1 // loop_exit
      _
    %6733 = vsyncpa [#allocation4], 1
    %s6734 = scalar_lea.sflag [#allocation4], 1
    %6735 = vsyncpa %s6734, 1
    %6736 = vsyncpa [#allocation5], 1
    %s6737 = scalar_lea.sflag [#allocation5], 1
    %6738 = vsyncpa %s6737, 1

</llo_original>
